<compile_context>
chip_gen: v6e
topology: v6e:2x2x1
jax: 0.10.0
libtpu: 0.0.40
codegen_flags: <defaults>
</compile_context>

<pallas_src>
import jax
import jax.numpy as jnp
from jax.experimental import pallas as pl
from jax.experimental.pallas import tpu as pltpu


# ----------------------------- fused forward kernel -----------------------------
def _make_kernel(L, B_real, B_pad, H, Hh, n_cnn):
    N = L * B_pad
    inv_cnt = 1.0 / float(B_real * L)   # BN stats over real rows only

    def kernel(
        ids_ref,                                   # (N, 1)  int32 time-major ids
        len_ref,                                   # (B_pad, 1) int32 lengths (0 for pad rows)
        bnmask_ref,                                # (N, 1) f32 1.0 for real rows
        emb_ref,                                   # (V_pad, E) f32 embedding table
        w2c_w_ref, w2c_b_ref,                      # (E, H) bf16, (1, H) f32
        cnn_w_ref, cnn_b_ref, cnn_g_ref, cnn_bt_ref,  # (n_cnn,3,H,H) bf16, (n_cnn,1,H) f32 x3
        wih_ref, whh_ref, lstm_b_ref,              # (H,4Hh) bf16, (Hh,4Hh) f32, (1,4Hh) f32
        tag_w_ref, tag_b_ref,                      # (Hh, Npad) bf16, (1, Npad) f32
        tag_ref,                                   # out: (N, Npad) lane-dense tags
        feat_ref,                                  # out: (N, H) feat_1p (time-major flat)
    ):
        Vp = emb_ref.shape[0]

        # ---- fused embedding gather (exact one-hot matmul in f32) -------------
        ids = ids_ref[...]                                           # (N, 1)
        col = jax.lax.broadcasted_iota(jnp.int32, (N, Vp), 1)
        onehot = (col == ids).astype(jnp.float32)                    # (N, Vp)
        wrep = jnp.dot(onehot, emb_ref[...],
                       preferred_element_type=jnp.float32)           # (N, E)

        # ---- word2cnn + tanh ---------------------------------------------------
        x = jnp.tanh(jnp.dot(wrep.astype(jnp.bfloat16), w2c_w_ref[...],
                             preferred_element_type=jnp.float32) + w2c_b_ref[...])

        # ---- row masks: time-major flat rows r = l*B_pad + b --------------------
        row = jax.lax.broadcasted_iota(jnp.int32, (N, 1), 0)
        is_first = row < B_pad                 # time step 0 rows (one sublane tile)
        is_last = row >= N - B_pad             # time step L-1 rows
        bn_mask = bnmask_ref[...]              # excludes batch-pad rows from stats

        # ---- CNN stack: k=3 pad=1 conv as 3 accumulating matmuls + ReLU + BN ----
        for i in range(n_cnn):
            xb = x.astype(jnp.bfloat16)
            p_m1 = jnp.dot(xb, cnn_w_ref[i, 0], preferred_element_type=jnp.float32)
            p_c = jnp.dot(xb, cnn_w_ref[i, 1], preferred_element_type=jnp.float32)
            p_p1 = jnp.dot(xb, cnn_w_ref[i, 2], preferred_element_type=jnp.float32)
            y = (p_c
                 + jnp.where(is_first, 0.0, pltpu.roll(p_m1, B_pad, axis=0))
                 + jnp.where(is_last, 0.0, pltpu.roll(p_p1, N - B_pad, axis=0))
                 + cnn_b_ref[i])
            y = jnp.maximum(y, 0.0)                                   # ReLU
            # cnn_drop_list dropout -> identity (eval). BatchNorm1d (batch stats),
            # one-pass masked statistics, folded affine.
            ym = y * bn_mask
            mean = jnp.sum(ym, axis=0, keepdims=True) * inv_cnt
            e2 = jnp.sum(ym * y, axis=0, keepdims=True) * inv_cnt     # E[y^2] (f32)
            var = e2 - mean * mean
            scale = cnn_g_ref[i] * jax.lax.rsqrt(var + 1e-5)
            shift = cnn_bt_ref[i] - mean * scale
            x = y * scale + shift

        feat_ref[...] = x.astype(feat_ref.dtype)   # feature_out == feat_1p (droplstm id)

        # ---- lstm_ne: x@Wih hoisted; one tanh per step (sigmoid via tanh) -------
        gates_x = jnp.dot(x.astype(jnp.bfloat16), wih_ref[...],
                          preferred_element_type=jnp.float32) + lstm_b_ref[...]  # (N,4Hh)
        whh = whh_ref[...]                               # f32: serial recurrence stays f32
        lens = len_ref[...]                              # (B_pad, 1) int32
        lane = jax.lax.broadcasted_iota(jnp.int32, (B_pad, 4 * Hh), 1)
        is_g = jnp.logical_and(lane >= 2 * Hh, lane < 3 * Hh)   # tanh lanes (g gate)

        h = jnp.zeros((B_pad, Hh), jnp.float32)
        c = jnp.zeros((B_pad, Hh), jnp.float32)
        outs = []
        for t in range(L):                               # fully unrolled (L static, small)
            gates = gates_x[t * B_pad:(t + 1) * B_pad, :] + jnp.dot(
                h, whh, preferred_element_type=jnp.float32)
            th = jnp.tanh(gates)                         # single EUP pass over (B,4Hh)
            act = jnp.where(is_g, th, 0.5 * th + 0.5)    # i/f/o pre-scaled by 0.5 offline
            i_g = act[:, 0:Hh]
            f_g = act[:, Hh:2 * Hh]
            g_g = act[:, 2 * Hh:3 * Hh]
            o_g = act[:, 3 * Hh:4 * Hh]
            c_new = f_g * c + i_g * g_g
            h_new = o_g * jnp.tanh(c_new)
            valid = lens > t                             # pack_padded mask
            h = jnp.where(valid, h_new, h)
            c = jnp.where(valid, c_new, c)
            outs.append(jnp.where(valid, h_new, 0.0))    # pad_packed -> 0; stays in vregs

        h_all = jnp.concatenate(outs, axis=0)            # (N, Hh), no VMEM round-trip

        # ---- hidden2tag: one matmul, lane-dense (padded) label dim --------------
        tag = jnp.dot(h_all.astype(jnp.bfloat16), tag_w_ref[...],
                      preferred_element_type=jnp.float32) + tag_b_ref[...]
        tag_ref[...] = tag.astype(tag_ref.dtype)

    return kernel


def _spec(shape):
    return pl.BlockSpec(shape, lambda *_: (0,) * len(shape))


# --------------------------------- wrapper ---------------------------------------
@jax.jit
def word_sequence_forward(params, word_inputs, word_seq_lengths):
    B, L = word_inputs.shape
    vocab, E = params["word_emb"].shape
    H = params["w2c_w"].shape[1]
    Hh = params["lstm_whh"].shape[0]
    n_label = params["tag_w"].shape[1]
    n_cnn = params["cnn_w"].shape[0]

    B_pad = max(8, ((B + 7) // 8) * 8)            # one full sublane tile per time step
    n_pad = ((n_label + 127) // 128) * 128        # lane-dense tag output
    V_pad = max(8, ((vocab + 127) // 128) * 128)  # lane-dense one-hot / padded emb table
    N = B_pad * L

    # WordRep ~= embedding lookup; ids emitted time-major flat, batch padded to B_pad.
    ids_pad = jnp.zeros((B_pad, L), jnp.int32).at[:B, :].set(word_inputs.astype(jnp.int32))
    ids_tm = ids_pad.T.reshape(N, 1)                                   # (N, 1)
    lens = jnp.zeros((B_pad, 1), jnp.int32).at[:B, 0].set(word_seq_lengths.astype(jnp.int32))
    bn_mask = jnp.tile((jnp.arange(B_pad) < B).astype(jnp.float32), L).reshape(N, 1)
    emb = jnp.zeros((V_pad, E), jnp.float32).at[:vocab].set(params["word_emb"])

    # LSTM gate pre-scale for sigmoid-via-tanh: columns [i, f] x0.5, [g] x1, [o] x0.5,
    # applied to wih, whh AND the bias (order i,f,g,o as in PyTorch nn.LSTM).
    gate_scale = jnp.concatenate([
        jnp.full((Hh,), 0.5, jnp.float32), jnp.full((Hh,), 0.5, jnp.float32),
        jnp.ones((Hh,), jnp.float32), jnp.full((Hh,), 0.5, jnp.float32)])
    wih = (params["lstm_wih"] * gate_scale).astype(jnp.bfloat16)
    whh = params["lstm_whh"] * gate_scale                              # f32 recurrence
    lstm_b = (params["lstm_b"] * gate_scale).reshape(1, 4 * Hh)

    tag_w = (jnp.zeros((Hh, n_pad), jnp.float32)
             .at[:, :n_label].set(params["tag_w"]).astype(jnp.bfloat16))
    tag_b = jnp.zeros((1, n_pad), jnp.float32).at[:, :n_label].set(params["tag_b"])

    kernel = _make_kernel(L, B, B_pad, H, Hh, n_cnn)

    tag_flat, feat_flat = pl.pallas_call(
        kernel,
        out_shape=(
            jax.ShapeDtypeStruct((N, n_pad), jnp.float32),    # hidden2tag (lane padded)
            jax.ShapeDtypeStruct((N, H), jnp.float32),        # feat_1p (time-major flat)
        ),
        grid=(1,),
        in_specs=[
            _spec((N, 1)), _spec((B_pad, 1)), _spec((N, 1)),
            _spec((V_pad, E)),
            _spec((E, H)), _spec((1, H)),
            _spec((n_cnn, 3, H, H)), _spec((n_cnn, 1, H)),
            _spec((n_cnn, 1, H)), _spec((n_cnn, 1, H)),
            _spec((H, 4 * Hh)), _spec((Hh, 4 * Hh)), _spec((1, 4 * Hh)),
            _spec((Hh, n_pad)), _spec((1, n_pad)),
        ],
        out_specs=(_spec((N, n_pad)), _spec((N, H))),
        compiler_params=pltpu.CompilerParams(dimension_semantics=("arbitrary",)),
    )(
        ids_tm, lens, bn_mask, emb,
        params["w2c_w"].astype(jnp.bfloat16), params["w2c_b"].reshape(1, H),
        params["cnn_w"].astype(jnp.bfloat16), params["cnn_b"].reshape(n_cnn, 1, H),
        params["cnn_gamma"].reshape(n_cnn, 1, H), params["cnn_beta"].reshape(n_cnn, 1, H),
        wih, whh, lstm_b,
        tag_w, tag_b,
    )

    # back to batch-major; drop batch padding and tag lane padding (tiny XLA glue).
    outermost = tag_flat.reshape(L, B_pad, n_pad)[:, :B, :n_label].transpose(1, 0, 2)
    feat_1p = feat_flat.reshape(L, B_pad, H)[:, :B, :].transpose(1, 0, 2)
    return outermost, feat_1p


# ------------------------------- parameters --------------------------------------
def init_params(key, vocab, E, H, Hh, n_cnn, n_label):
    ks = jax.random.split(key, 10)
    s = 0.1
    # Conv taps stored as (n_cnn, 3, H_in, H_out): tap 0 -> x[l-1], 1 -> x[l], 2 -> x[l+1].
    # From a PyTorch Conv1d weight W[out, in, k]: cnn_w[i, k] = W[:, :, k].T
    return {
        "word_emb":  jax.random.normal(ks[0], (vocab, E), jnp.float32) * s,
        "w2c_w":     jax.random.normal(ks[1], (E, H), jnp.float32) * s,
        "w2c_b":     jax.random.normal(ks[2], (H,), jnp.float32) * s,
        "cnn_w":     jax.random.normal(ks[3], (n_cnn, 3, H, H), jnp.float32) * s,
        "cnn_b":     jax.random.normal(ks[4], (n_cnn, H), jnp.float32) * s,
        "cnn_gamma": jnp.ones((n_cnn, H), jnp.float32),     # BatchNorm1d defaults
        "cnn_beta":  jnp.zeros((n_cnn, H), jnp.float32),
        "lstm_wih":  jax.random.normal(ks[5], (H, 4 * Hh), jnp.float32) * s,
        "lstm_whh":  jax.random.normal(ks[6], (Hh, 4 * Hh), jnp.float32) * s,
        # single combined bias: for a PyTorch checkpoint set lstm_b = b_ih + b_hh
        "lstm_b":    jax.random.normal(ks[7], (4 * Hh,), jnp.float32) * s,
        "tag_w":     jax.random.normal(ks[8], (Hh, n_label), jnp.float32) * s,
        "tag_b":     jax.random.normal(ks[9], (n_label,), jnp.float32) * s,
    }


if __name__ == "__main__":
    B, L = 2, 16
    vocab, E, H = 50, 32, 64           # word_emb_dim=32, HP_hidden_dim=64
    Hh = H // 2                        # bilstm -> lstm_hidden = HP_hidden_dim // 2
    n_cnn, n_label = 2, 10             # HP_cnn_layer=2, label_alphabet_size=10

    key = jax.random.PRNGKey(0)
    pkey, dkey = jax.random.split(key)
    params = init_params(pkey, vocab, E, H, Hh, n_cnn, n_label)

    word_inputs = jax.random.randint(dkey, (B, L), 0, vocab, dtype=jnp.int32)
    word_seq_lengths = jnp.array([L, L - 3], dtype=jnp.int32)   # sorted descending

    outermost, feat_1p = word_sequence_forward(params, word_inputs, word_seq_lengths)
    jax.block_until_ready((outermost, feat_1p))

    assert outermost.shape == (B, L, n_label), outermost.shape
    assert feat_1p.shape == (B, L, H), feat_1p.shape
    assert bool(jnp.all(jnp.isfinite(outermost))), "non-finite outermost"
    assert bool(jnp.all(jnp.isfinite(feat_1p))), "non-finite feat_1p"
    print("KERNEL_OK")
</pallas_src>

<mosaic_0001>
module attributes {stable_mosaic.version = 11 : i64} {
  func.func @kernel(%arg0: i32, %arg1: memref<128x1xi32, #tpu.memory_space<vmem>>, %arg2: memref<8x1xi32, #tpu.memory_space<vmem>>, %arg3: memref<128x1xf32, #tpu.memory_space<vmem>>, %arg4: memref<128x32xf32, #tpu.memory_space<vmem>>, %arg5: memref<32x64xbf16, #tpu.memory_space<vmem>>, %arg6: memref<1x64xf32, #tpu.memory_space<vmem>>, %arg7: memref<2x3x64x64xbf16, #tpu.memory_space<vmem>>, %arg8: memref<2x1x64xf32, #tpu.memory_space<vmem>>, %arg9: memref<2x1x64xf32, #tpu.memory_space<vmem>>, %arg10: memref<2x1x64xf32, #tpu.memory_space<vmem>>, %arg11: memref<64x128xbf16, #tpu.memory_space<vmem>>, %arg12: memref<32x128xf32, #tpu.memory_space<vmem>>, %arg13: memref<1x128xf32, #tpu.memory_space<vmem>>, %arg14: memref<32x128xbf16, #tpu.memory_space<vmem>>, %arg15: memref<1x128xf32, #tpu.memory_space<vmem>>, %arg16: memref<128x128xf32, #tpu.memory_space<vmem>>, %arg17: memref<128x64xf32, #tpu.memory_space<vmem>>) attributes {dimension_semantics = [#tpu.dimension_semantics<arbitrary>], iteration_bounds = array<i64: 1>, scalar_prefetch = 0 : i64, scratch_operands = 0 : i64, tpu.core_type = #tpu.core_type<tc>, window_params = [{pipeline_mode = #tpu.pipeline_mode<synchronous>, transform_indices = @transform_0, window_bounds = array<i64: 128, 1>}, {pipeline_mode = #tpu.pipeline_mode<synchronous>, transform_indices = @transform_1, window_bounds = array<i64: 8, 1>}, {pipeline_mode = #tpu.pipeline_mode<synchronous>, transform_indices = @transform_2, window_bounds = array<i64: 128, 1>}, {pipeline_mode = #tpu.pipeline_mode<synchronous>, transform_indices = @transform_3, window_bounds = array<i64: 128, 32>}, {pipeline_mode = #tpu.pipeline_mode<synchronous>, transform_indices = @transform_4, window_bounds = array<i64: 32, 64>}, {pipeline_mode = #tpu.pipeline_mode<synchronous>, transform_indices = @transform_5, window_bounds = array<i64: 1, 64>}, {pipeline_mode = #tpu.pipeline_mode<synchronous>, transform_indices = @transform_6, window_bounds = array<i64: 2, 3, 64, 64>}, {pipeline_mode = #tpu.pipeline_mode<synchronous>, transform_indices = @transform_7, window_bounds = array<i64: 2, 1, 64>}, {pipeline_mode = #tpu.pipeline_mode<synchronous>, transform_indices = @transform_8, window_bounds = array<i64: 2, 1, 64>}, {pipeline_mode = #tpu.pipeline_mode<synchronous>, transform_indices = @transform_9, window_bounds = array<i64: 2, 1, 64>}, {pipeline_mode = #tpu.pipeline_mode<synchronous>, transform_indices = @transform_10, window_bounds = array<i64: 64, 128>}, {pipeline_mode = #tpu.pipeline_mode<synchronous>, transform_indices = @transform_11, window_bounds = array<i64: 32, 128>}, {pipeline_mode = #tpu.pipeline_mode<synchronous>, transform_indices = @transform_12, window_bounds = array<i64: 1, 128>}, {pipeline_mode = #tpu.pipeline_mode<synchronous>, transform_indices = @transform_13, window_bounds = array<i64: 32, 128>}, {pipeline_mode = #tpu.pipeline_mode<synchronous>, transform_indices = @transform_14, window_bounds = array<i64: 1, 128>}, {pipeline_mode = #tpu.pipeline_mode<synchronous>, transform_indices = @transform_15, window_bounds = array<i64: 128, 128>}, {pipeline_mode = #tpu.pipeline_mode<synchronous>, transform_indices = @transform_16, window_bounds = array<i64: 128, 64>}]} {
    %c0 = arith.constant 0 : index
    %c0_0 = arith.constant 0 : index
    %0 = vector.load %arg1[%c0, %c0_0] : memref<128x1xi32, #tpu.memory_space<vmem>>, vector<128x1xi32>
    %1 = tpu.iota {dimensions = array<i32: 1>} : vector<128x128xi32>
    %2 = vector.broadcast %0 : vector<128x1xi32> to vector<128x128xi32>
    %3 = arith.cmpi eq, %1, %2 : vector<128x128xi32>
    %4 = arith.extui %3 : vector<128x128xi1> to vector<128x128xi32>
    %5 = arith.sitofp %4 : vector<128x128xi32> to vector<128x128xf32>
    %c0_1 = arith.constant 0 : index
    %c0_2 = arith.constant 0 : index
    %6 = vector.load %arg4[%c0_1, %c0_2] : memref<128x32xf32, #tpu.memory_space<vmem>>, vector<128x32xf32>
    %cst = arith.constant dense<0.000000e+00> : vector<128x32xf32>
    %7 = tpu.matmul %5, %6, %cst {dimension_numbers = #tpu.dot_dimension_numbers<[1], [0], [0], [1], [0, 0, 1, 1], [], []>} : vector<128x128xf32>, vector<128x32xf32>, vector<128x32xf32> -> vector<128x32xf32>
    %8 = arith.truncf %7 : vector<128x32xf32> to vector<128x32xbf16>
    %c0_3 = arith.constant 0 : index
    %c0_4 = arith.constant 0 : index
    %9 = vector.load %arg5[%c0_3, %c0_4] : memref<32x64xbf16, #tpu.memory_space<vmem>>, vector<32x64xbf16>
    %cst_5 = arith.constant dense<0.000000e+00> : vector<128x64xf32>
    %10 = tpu.matmul %8, %9, %cst_5 {dimension_numbers = #tpu.dot_dimension_numbers<[1], [0], [0], [1], [0, 0, 1, 1], [], []>} : vector<128x32xbf16>, vector<32x64xbf16>, vector<128x64xf32> -> vector<128x64xf32>
    %c0_6 = arith.constant 0 : index
    %c0_7 = arith.constant 0 : index
    %11 = vector.load %arg6[%c0_6, %c0_7] : memref<1x64xf32, #tpu.memory_space<vmem>>, vector<1x64xf32>
    %12 = vector.broadcast %11 : vector<1x64xf32> to vector<128x64xf32>
    %13 = arith.addf %10, %12 : vector<128x64xf32>
    %14 = math.tanh %13 : vector<128x64xf32>
    %15 = tpu.iota {dimensions = array<i32: 0>} : vector<128x1xi32>
    %c8_i32 = arith.constant 8 : i32
    %16 = vector.broadcast %c8_i32 : i32 to vector<128x1xi32>
    %17 = arith.cmpi slt, %15, %16 : vector<128x1xi32>
    %c120_i32 = arith.constant 120 : i32
    %18 = vector.broadcast %c120_i32 : i32 to vector<128x1xi32>
    %19 = arith.cmpi sge, %15, %18 : vector<128x1xi32>
    %c0_8 = arith.constant 0 : index
    %c0_9 = arith.constant 0 : index
    %20 = vector.load %arg3[%c0_8, %c0_9] : memref<128x1xf32, #tpu.memory_space<vmem>>, vector<128x1xf32>
    %21 = arith.truncf %14 : vector<128x64xf32> to vector<128x64xbf16>
    %c0_10 = arith.constant 0 : index
    %c0_11 = arith.constant 0 : index
    %c0_12 = arith.constant 0 : index
    %c0_13 = arith.constant 0 : index
    %22 = vector.load %arg7[%c0_10, %c0_11, %c0_12, %c0_13] : memref<2x3x64x64xbf16, #tpu.memory_space<vmem>>, vector<1x1x64x64xbf16>
    %23 = vector.shape_cast %22 : vector<1x1x64x64xbf16> to vector<64x64xbf16>
    %cst_14 = arith.constant dense<0.000000e+00> : vector<128x64xf32>
    %24 = tpu.matmul %21, %23, %cst_14 {dimension_numbers = #tpu.dot_dimension_numbers<[1], [0], [0], [1], [0, 0, 1, 1], [], []>} : vector<128x64xbf16>, vector<64x64xbf16>, vector<128x64xf32> -> vector<128x64xf32>
    %c0_15 = arith.constant 0 : index
    %c1 = arith.constant 1 : index
    %c0_16 = arith.constant 0 : index
    %c0_17 = arith.constant 0 : index
    %25 = vector.load %arg7[%c0_15, %c1, %c0_16, %c0_17] : memref<2x3x64x64xbf16, #tpu.memory_space<vmem>>, vector<1x1x64x64xbf16>
    %26 = vector.shape_cast %25 : vector<1x1x64x64xbf16> to vector<64x64xbf16>
    %cst_18 = arith.constant dense<0.000000e+00> : vector<128x64xf32>
    %27 = tpu.matmul %21, %26, %cst_18 {dimension_numbers = #tpu.dot_dimension_numbers<[1], [0], [0], [1], [0, 0, 1, 1], [], []>} : vector<128x64xbf16>, vector<64x64xbf16>, vector<128x64xf32> -> vector<128x64xf32>
    %c0_19 = arith.constant 0 : index
    %c2 = arith.constant 2 : index
    %c0_20 = arith.constant 0 : index
    %c0_21 = arith.constant 0 : index
    %28 = vector.load %arg7[%c0_19, %c2, %c0_20, %c0_21] : memref<2x3x64x64xbf16, #tpu.memory_space<vmem>>, vector<1x1x64x64xbf16>
    %29 = vector.shape_cast %28 : vector<1x1x64x64xbf16> to vector<64x64xbf16>
    %cst_22 = arith.constant dense<0.000000e+00> : vector<128x64xf32>
    %30 = tpu.matmul %21, %29, %cst_22 {dimension_numbers = #tpu.dot_dimension_numbers<[1], [0], [0], [1], [0, 0, 1, 1], [], []>} : vector<128x64xbf16>, vector<64x64xbf16>, vector<128x64xf32> -> vector<128x64xf32>
    %c8_i32_23 = arith.constant 8 : i32
    %31 = tpu.dynamic_rotate %24 by %c8_i32_23 dim 0 : vector<128x64xf32>, i32 -> vector<128x64xf32>
    %cst_24 = arith.constant 0.000000e+00 : f32
    %32 = vector.shape_cast %17 : vector<128x1xi1> to vector<128x1xi1>
    %33 = vector.broadcast %32 : vector<128x1xi1> to vector<128x64xi1>
    %34 = vector.broadcast %cst_24 : f32 to vector<128x64xf32>
    %35 = arith.select %33, %34, %31 : vector<128x64xi1>, vector<128x64xf32>
    %36 = arith.addf %27, %35 : vector<128x64xf32>
    %c120_i32_25 = arith.constant 120 : i32
    %37 = tpu.dynamic_rotate %30 by %c120_i32_25 dim 0 : vector<128x64xf32>, i32 -> vector<128x64xf32>
    %cst_26 = arith.constant 0.000000e+00 : f32
    %38 = vector.shape_cast %19 : vector<128x1xi1> to vector<128x1xi1>
    %39 = vector.broadcast %38 : vector<128x1xi1> to vector<128x64xi1>
    %40 = vector.broadcast %cst_26 : f32 to vector<128x64xf32>
    %41 = arith.select %39, %40, %37 : vector<128x64xi1>, vector<128x64xf32>
    %42 = arith.addf %36, %41 : vector<128x64xf32>
    %c0_27 = arith.constant 0 : index
    %c0_28 = arith.constant 0 : index
    %c0_29 = arith.constant 0 : index
    %43 = vector.load %arg8[%c0_27, %c0_28, %c0_29] : memref<2x1x64xf32, #tpu.memory_space<vmem>>, vector<1x1x64xf32>
    %44 = vector.shape_cast %43 : vector<1x1x64xf32> to vector<1x64xf32>
    %45 = vector.broadcast %44 : vector<1x64xf32> to vector<128x64xf32>
    %46 = arith.addf %42, %45 : vector<128x64xf32>
    %cst_30 = arith.constant 0.000000e+00 : f32
    %47 = vector.broadcast %cst_30 : f32 to vector<128x64xf32>
    %48 = arith.maximumf %46, %47 : vector<128x64xf32>
    %49 = vector.broadcast %20 : vector<128x1xf32> to vector<128x64xf32>
    %50 = arith.mulf %48, %49 : vector<128x64xf32>
    %cst_31 = arith.constant dense<0.000000e+00> : vector<64xf32>
    %51 = vector.multi_reduction <add>, %50, %cst_31 [0] : vector<128x64xf32> to vector<64xf32>
    %52 = vector.shape_cast %51 : vector<64xf32> to vector<1x64xf32>
    %cst_32 = arith.constant 3.125000e-02 : f32
    %53 = vector.broadcast %cst_32 : f32 to vector<1x64xf32>
    %54 = arith.mulf %52, %53 : vector<1x64xf32>
    %55 = arith.mulf %50, %48 : vector<128x64xf32>
    %cst_33 = arith.constant dense<0.000000e+00> : vector<64xf32>
    %56 = vector.multi_reduction <add>, %55, %cst_33 [0] : vector<128x64xf32> to vector<64xf32>
    %57 = vector.shape_cast %56 : vector<64xf32> to vector<1x64xf32>
    %cst_34 = arith.constant 3.125000e-02 : f32
    %58 = vector.broadcast %cst_34 : f32 to vector<1x64xf32>
    %59 = arith.mulf %57, %58 : vector<1x64xf32>
    %60 = arith.mulf %54, %54 : vector<1x64xf32>
    %61 = arith.subf %59, %60 : vector<1x64xf32>
    %c0_35 = arith.constant 0 : index
    %c0_36 = arith.constant 0 : index
    %c0_37 = arith.constant 0 : index
    %62 = vector.load %arg9[%c0_35, %c0_36, %c0_37] : memref<2x1x64xf32, #tpu.memory_space<vmem>>, vector<1x1x64xf32>
    %63 = vector.shape_cast %62 : vector<1x1x64xf32> to vector<1x64xf32>
    %cst_38 = arith.constant 9.99999974E-6 : f32
    %64 = vector.broadcast %cst_38 : f32 to vector<1x64xf32>
    %65 = arith.addf %61, %64 : vector<1x64xf32>
    %66 = math.rsqrt %65 : vector<1x64xf32>
    %67 = arith.mulf %63, %66 : vector<1x64xf32>
    %c0_39 = arith.constant 0 : index
    %c0_40 = arith.constant 0 : index
    %c0_41 = arith.constant 0 : index
    %68 = vector.load %arg10[%c0_39, %c0_40, %c0_41] : memref<2x1x64xf32, #tpu.memory_space<vmem>>, vector<1x1x64xf32>
    %69 = vector.shape_cast %68 : vector<1x1x64xf32> to vector<1x64xf32>
    %70 = arith.mulf %54, %67 : vector<1x64xf32>
    %71 = arith.subf %69, %70 : vector<1x64xf32>
    %72 = vector.broadcast %67 : vector<1x64xf32> to vector<128x64xf32>
    %73 = arith.mulf %48, %72 : vector<128x64xf32>
    %74 = vector.broadcast %71 : vector<1x64xf32> to vector<128x64xf32>
    %75 = arith.addf %73, %74 : vector<128x64xf32>
    %76 = arith.truncf %75 : vector<128x64xf32> to vector<128x64xbf16>
    %c1_42 = arith.constant 1 : index
    %c0_43 = arith.constant 0 : index
    %c0_44 = arith.constant 0 : index
    %c0_45 = arith.constant 0 : index
    %77 = vector.load %arg7[%c1_42, %c0_43, %c0_44, %c0_45] : memref<2x3x64x64xbf16, #tpu.memory_space<vmem>>, vector<1x1x64x64xbf16>
    %78 = vector.shape_cast %77 : vector<1x1x64x64xbf16> to vector<64x64xbf16>
    %cst_46 = arith.constant dense<0.000000e+00> : vector<128x64xf32>
    %79 = tpu.matmul %76, %78, %cst_46 {dimension_numbers = #tpu.dot_dimension_numbers<[1], [0], [0], [1], [0, 0, 1, 1], [], []>} : vector<128x64xbf16>, vector<64x64xbf16>, vector<128x64xf32> -> vector<128x64xf32>
    %c1_47 = arith.constant 1 : index
    %c1_48 = arith.constant 1 : index
    %c0_49 = arith.constant 0 : index
    %c0_50 = arith.constant 0 : index
    %80 = vector.load %arg7[%c1_47, %c1_48, %c0_49, %c0_50] : memref<2x3x64x64xbf16, #tpu.memory_space<vmem>>, vector<1x1x64x64xbf16>
    %81 = vector.shape_cast %80 : vector<1x1x64x64xbf16> to vector<64x64xbf16>
    %cst_51 = arith.constant dense<0.000000e+00> : vector<128x64xf32>
    %82 = tpu.matmul %76, %81, %cst_51 {dimension_numbers = #tpu.dot_dimension_numbers<[1], [0], [0], [1], [0, 0, 1, 1], [], []>} : vector<128x64xbf16>, vector<64x64xbf16>, vector<128x64xf32> -> vector<128x64xf32>
    %c1_52 = arith.constant 1 : index
    %c2_53 = arith.constant 2 : index
    %c0_54 = arith.constant 0 : index
    %c0_55 = arith.constant 0 : index
    %83 = vector.load %arg7[%c1_52, %c2_53, %c0_54, %c0_55] : memref<2x3x64x64xbf16, #tpu.memory_space<vmem>>, vector<1x1x64x64xbf16>
    %84 = vector.shape_cast %83 : vector<1x1x64x64xbf16> to vector<64x64xbf16>
    %cst_56 = arith.constant dense<0.000000e+00> : vector<128x64xf32>
    %85 = tpu.matmul %76, %84, %cst_56 {dimension_numbers = #tpu.dot_dimension_numbers<[1], [0], [0], [1], [0, 0, 1, 1], [], []>} : vector<128x64xbf16>, vector<64x64xbf16>, vector<128x64xf32> -> vector<128x64xf32>
    %c8_i32_57 = arith.constant 8 : i32
    %86 = tpu.dynamic_rotate %79 by %c8_i32_57 dim 0 : vector<128x64xf32>, i32 -> vector<128x64xf32>
    %cst_58 = arith.constant 0.000000e+00 : f32
    %87 = vector.shape_cast %17 : vector<128x1xi1> to vector<128x1xi1>
    %88 = vector.broadcast %87 : vector<128x1xi1> to vector<128x64xi1>
    %89 = vector.broadcast %cst_58 : f32 to vector<128x64xf32>
    %90 = arith.select %88, %89, %86 : vector<128x64xi1>, vector<128x64xf32>
    %91 = arith.addf %82, %90 : vector<128x64xf32>
    %c120_i32_59 = arith.constant 120 : i32
    %92 = tpu.dynamic_rotate %85 by %c120_i32_59 dim 0 : vector<128x64xf32>, i32 -> vector<128x64xf32>
    %cst_60 = arith.constant 0.000000e+00 : f32
    %93 = vector.shape_cast %19 : vector<128x1xi1> to vector<128x1xi1>
    %94 = vector.broadcast %93 : vector<128x1xi1> to vector<128x64xi1>
    %95 = vector.broadcast %cst_60 : f32 to vector<128x64xf32>
    %96 = arith.select %94, %95, %92 : vector<128x64xi1>, vector<128x64xf32>
    %97 = arith.addf %91, %96 : vector<128x64xf32>
    %c1_61 = arith.constant 1 : index
    %c0_62 = arith.constant 0 : index
    %c0_63 = arith.constant 0 : index
    %98 = vector.load %arg8[%c1_61, %c0_62, %c0_63] : memref<2x1x64xf32, #tpu.memory_space<vmem>>, vector<1x1x64xf32>
    %99 = vector.shape_cast %98 : vector<1x1x64xf32> to vector<1x64xf32>
    %100 = vector.broadcast %99 : vector<1x64xf32> to vector<128x64xf32>
    %101 = arith.addf %97, %100 : vector<128x64xf32>
    %cst_64 = arith.constant 0.000000e+00 : f32
    %102 = vector.broadcast %cst_64 : f32 to vector<128x64xf32>
    %103 = arith.maximumf %101, %102 : vector<128x64xf32>
    %104 = vector.broadcast %20 : vector<128x1xf32> to vector<128x64xf32>
    %105 = arith.mulf %103, %104 : vector<128x64xf32>
    %cst_65 = arith.constant dense<0.000000e+00> : vector<64xf32>
    %106 = vector.multi_reduction <add>, %105, %cst_65 [0] : vector<128x64xf32> to vector<64xf32>
    %107 = vector.shape_cast %106 : vector<64xf32> to vector<1x64xf32>
    %cst_66 = arith.constant 3.125000e-02 : f32
    %108 = vector.broadcast %cst_66 : f32 to vector<1x64xf32>
    %109 = arith.mulf %107, %108 : vector<1x64xf32>
    %110 = arith.mulf %105, %103 : vector<128x64xf32>
    %cst_67 = arith.constant dense<0.000000e+00> : vector<64xf32>
    %111 = vector.multi_reduction <add>, %110, %cst_67 [0] : vector<128x64xf32> to vector<64xf32>
    %112 = vector.shape_cast %111 : vector<64xf32> to vector<1x64xf32>
    %cst_68 = arith.constant 3.125000e-02 : f32
    %113 = vector.broadcast %cst_68 : f32 to vector<1x64xf32>
    %114 = arith.mulf %112, %113 : vector<1x64xf32>
    %115 = arith.mulf %109, %109 : vector<1x64xf32>
    %116 = arith.subf %114, %115 : vector<1x64xf32>
    %c1_69 = arith.constant 1 : index
    %c0_70 = arith.constant 0 : index
    %c0_71 = arith.constant 0 : index
    %117 = vector.load %arg9[%c1_69, %c0_70, %c0_71] : memref<2x1x64xf32, #tpu.memory_space<vmem>>, vector<1x1x64xf32>
    %118 = vector.shape_cast %117 : vector<1x1x64xf32> to vector<1x64xf32>
    %cst_72 = arith.constant 9.99999974E-6 : f32
    %119 = vector.broadcast %cst_72 : f32 to vector<1x64xf32>
    %120 = arith.addf %116, %119 : vector<1x64xf32>
    %121 = math.rsqrt %120 : vector<1x64xf32>
    %122 = arith.mulf %118, %121 : vector<1x64xf32>
    %c1_73 = arith.constant 1 : index
    %c0_74 = arith.constant 0 : index
    %c0_75 = arith.constant 0 : index
    %123 = vector.load %arg10[%c1_73, %c0_74, %c0_75] : memref<2x1x64xf32, #tpu.memory_space<vmem>>, vector<1x1x64xf32>
    %124 = vector.shape_cast %123 : vector<1x1x64xf32> to vector<1x64xf32>
    %125 = arith.mulf %109, %122 : vector<1x64xf32>
    %126 = arith.subf %124, %125 : vector<1x64xf32>
    %127 = vector.broadcast %122 : vector<1x64xf32> to vector<128x64xf32>
    %128 = arith.mulf %103, %127 : vector<128x64xf32>
    %129 = vector.broadcast %126 : vector<1x64xf32> to vector<128x64xf32>
    %130 = arith.addf %128, %129 : vector<128x64xf32>
    %c0_76 = arith.constant 0 : index
    %c0_77 = arith.constant 0 : index
    %131 = vector.load %arg17[%c0_76, %c0_77] : memref<128x64xf32, #tpu.memory_space<vmem>>, vector<128x64xf32>
    tpu.vector_store %arg17[%c0_76, %c0_77], %130 {strides = array<i32>} : memref<128x64xf32, #tpu.memory_space<vmem>>, vector<128x64xf32>,
    %132 = arith.truncf %130 : vector<128x64xf32> to vector<128x64xbf16>
    %c0_78 = arith.constant 0 : index
    %c0_79 = arith.constant 0 : index
    %133 = vector.load %arg11[%c0_78, %c0_79] : memref<64x128xbf16, #tpu.memory_space<vmem>>, vector<64x128xbf16>
    %cst_80 = arith.constant dense<0.000000e+00> : vector<128x128xf32>
    %134 = tpu.matmul %132, %133, %cst_80 {dimension_numbers = #tpu.dot_dimension_numbers<[1], [0], [0], [1], [0, 0, 1, 1], [], []>} : vector<128x64xbf16>, vector<64x128xbf16>, vector<128x128xf32> -> vector<128x128xf32>
    %c0_81 = arith.constant 0 : index
    %c0_82 = arith.constant 0 : index
    %135 = vector.load %arg13[%c0_81, %c0_82] : memref<1x128xf32, #tpu.memory_space<vmem>>, vector<1x128xf32>
    %136 = vector.broadcast %135 : vector<1x128xf32> to vector<128x128xf32>
    %137 = arith.addf %134, %136 : vector<128x128xf32>
    %c0_83 = arith.constant 0 : index
    %c0_84 = arith.constant 0 : index
    %138 = vector.load %arg12[%c0_83, %c0_84] : memref<32x128xf32, #tpu.memory_space<vmem>>, vector<32x128xf32>
    %c0_85 = arith.constant 0 : index
    %c0_86 = arith.constant 0 : index
    %139 = vector.load %arg2[%c0_85, %c0_86] : memref<8x1xi32, #tpu.memory_space<vmem>>, vector<8x1xi32>
    %140 = tpu.iota {dimensions = array<i32: 1>} : vector<8x128xi32>
    %c64_i32 = arith.constant 64 : i32
    %141 = vector.broadcast %c64_i32 : i32 to vector<8x128xi32>
    %142 = arith.cmpi sge, %140, %141 : vector<8x128xi32>
    %c96_i32 = arith.constant 96 : i32
    %143 = vector.broadcast %c96_i32 : i32 to vector<8x128xi32>
    %144 = arith.cmpi slt, %140, %143 : vector<8x128xi32>
    %145 = arith.andi %142, %144 : vector<8x128xi1>
    %cst_87 = arith.constant 0.000000e+00 : f32
    %146 = vector.broadcast %cst_87 : f32 to vector<8x32xf32>
    %cst_88 = arith.constant 0.000000e+00 : f32
    %147 = vector.broadcast %cst_88 : f32 to vector<8x32xf32>
    %148 = vector.extract_strided_slice %137 {offsets = [0, 0], sizes = [8, 128], strides = [1, 1]} : vector<128x128xf32> to vector<8x128xf32>
    %cst_89 = arith.constant dense<0.000000e+00> : vector<8x128xf32>
    %149 = tpu.matmul %146, %138, %cst_89 {dimension_numbers = #tpu.dot_dimension_numbers<[1], [0], [0], [1], [0, 0, 1, 1], [], []>} : vector<8x32xf32>, vector<32x128xf32>, vector<8x128xf32> -> vector<8x128xf32>
    %150 = arith.addf %148, %149 : vector<8x128xf32>
    %151 = math.tanh %150 : vector<8x128xf32>
    %cst_90 = arith.constant 5.000000e-01 : f32
    %152 = vector.broadcast %cst_90 : f32 to vector<8x128xf32>
    %153 = arith.mulf %152, %151 : vector<8x128xf32>
    %cst_91 = arith.constant 5.000000e-01 : f32
    %154 = vector.broadcast %cst_91 : f32 to vector<8x128xf32>
    %155 = arith.addf %153, %154 : vector<8x128xf32>
    %156 = arith.select %145, %151, %155 : vector<8x128xi1>, vector<8x128xf32>
    %157 = vector.extract_strided_slice %156 {offsets = [0, 0], sizes = [8, 32], strides = [1, 1]} : vector<8x128xf32> to vector<8x32xf32>
    %158 = vector.extract_strided_slice %156 {offsets = [0, 32], sizes = [8, 32], strides = [1, 1]} : vector<8x128xf32> to vector<8x32xf32>
    %159 = vector.extract_strided_slice %156 {offsets = [0, 64], sizes = [8, 32], strides = [1, 1]} : vector<8x128xf32> to vector<8x32xf32>
    %160 = vector.extract_strided_slice %156 {offsets = [0, 96], sizes = [8, 32], strides = [1, 1]} : vector<8x128xf32> to vector<8x32xf32>
    %161 = arith.mulf %158, %147 : vector<8x32xf32>
    %162 = arith.mulf %157, %159 : vector<8x32xf32>
    %163 = arith.addf %161, %162 : vector<8x32xf32>
    %164 = math.tanh %163 : vector<8x32xf32>
    %165 = arith.mulf %160, %164 : vector<8x32xf32>
    %c0_i32 = arith.constant 0 : i32
    %166 = vector.broadcast %c0_i32 : i32 to vector<8x1xi32>
    %167 = arith.cmpi sgt, %139, %166 : vector<8x1xi32>
    %168 = vector.shape_cast %167 : vector<8x1xi1> to vector<8x1xi1>
    %169 = vector.broadcast %168 : vector<8x1xi1> to vector<8x32xi1>
    %170 = arith.select %169, %165, %146 : vector<8x32xi1>, vector<8x32xf32>
    %171 = vector.shape_cast %167 : vector<8x1xi1> to vector<8x1xi1>
    %172 = vector.broadcast %171 : vector<8x1xi1> to vector<8x32xi1>
    %173 = arith.select %172, %163, %147 : vector<8x32xi1>, vector<8x32xf32>
    %cst_92 = arith.constant 0.000000e+00 : f32
    %174 = vector.shape_cast %167 : vector<8x1xi1> to vector<8x1xi1>
    %175 = vector.broadcast %174 : vector<8x1xi1> to vector<8x32xi1>
    %176 = vector.broadcast %cst_92 : f32 to vector<8x32xf32>
    %177 = arith.select %175, %165, %176 : vector<8x32xi1>, vector<8x32xf32>
    %178 = vector.extract_strided_slice %137 {offsets = [8, 0], sizes = [8, 128], strides = [1, 1]} : vector<128x128xf32> to vector<8x128xf32>
    %cst_93 = arith.constant dense<0.000000e+00> : vector<8x128xf32>
    %179 = tpu.matmul %170, %138, %cst_93 {dimension_numbers = #tpu.dot_dimension_numbers<[1], [0], [0], [1], [0, 0, 1, 1], [], []>} : vector<8x32xf32>, vector<32x128xf32>, vector<8x128xf32> -> vector<8x128xf32>
    %180 = arith.addf %178, %179 : vector<8x128xf32>
    %181 = math.tanh %180 : vector<8x128xf32>
    %cst_94 = arith.constant 5.000000e-01 : f32
    %182 = vector.broadcast %cst_94 : f32 to vector<8x128xf32>
    %183 = arith.mulf %182, %181 : vector<8x128xf32>
    %cst_95 = arith.constant 5.000000e-01 : f32
    %184 = vector.broadcast %cst_95 : f32 to vector<8x128xf32>
    %185 = arith.addf %183, %184 : vector<8x128xf32>
    %186 = arith.select %145, %181, %185 : vector<8x128xi1>, vector<8x128xf32>
    %187 = vector.extract_strided_slice %186 {offsets = [0, 0], sizes = [8, 32], strides = [1, 1]} : vector<8x128xf32> to vector<8x32xf32>
    %188 = vector.extract_strided_slice %186 {offsets = [0, 32], sizes = [8, 32], strides = [1, 1]} : vector<8x128xf32> to vector<8x32xf32>
    %189 = vector.extract_strided_slice %186 {offsets = [0, 64], sizes = [8, 32], strides = [1, 1]} : vector<8x128xf32> to vector<8x32xf32>
    %190 = vector.extract_strided_slice %186 {offsets = [0, 96], sizes = [8, 32], strides = [1, 1]} : vector<8x128xf32> to vector<8x32xf32>
    %191 = arith.mulf %188, %173 : vector<8x32xf32>
    %192 = arith.mulf %187, %189 : vector<8x32xf32>
    %193 = arith.addf %191, %192 : vector<8x32xf32>
    %194 = math.tanh %193 : vector<8x32xf32>
    %195 = arith.mulf %190, %194 : vector<8x32xf32>
    %c1_i32 = arith.constant 1 : i32
    %196 = vector.broadcast %c1_i32 : i32 to vector<8x1xi32>
    %197 = arith.cmpi sgt, %139, %196 : vector<8x1xi32>
    %198 = vector.shape_cast %197 : vector<8x1xi1> to vector<8x1xi1>
    %199 = vector.broadcast %198 : vector<8x1xi1> to vector<8x32xi1>
    %200 = arith.select %199, %195, %170 : vector<8x32xi1>, vector<8x32xf32>
    %201 = vector.shape_cast %197 : vector<8x1xi1> to vector<8x1xi1>
    %202 = vector.broadcast %201 : vector<8x1xi1> to vector<8x32xi1>
    %203 = arith.select %202, %193, %173 : vector<8x32xi1>, vector<8x32xf32>
    %cst_96 = arith.constant 0.000000e+00 : f32
    %204 = vector.shape_cast %197 : vector<8x1xi1> to vector<8x1xi1>
    %205 = vector.broadcast %204 : vector<8x1xi1> to vector<8x32xi1>
    %206 = vector.broadcast %cst_96 : f32 to vector<8x32xf32>
    %207 = arith.select %205, %195, %206 : vector<8x32xi1>, vector<8x32xf32>
    %208 = vector.extract_strided_slice %137 {offsets = [16, 0], sizes = [8, 128], strides = [1, 1]} : vector<128x128xf32> to vector<8x128xf32>
    %cst_97 = arith.constant dense<0.000000e+00> : vector<8x128xf32>
    %209 = tpu.matmul %200, %138, %cst_97 {dimension_numbers = #tpu.dot_dimension_numbers<[1], [0], [0], [1], [0, 0, 1, 1], [], []>} : vector<8x32xf32>, vector<32x128xf32>, vector<8x128xf32> -> vector<8x128xf32>
    %210 = arith.addf %208, %209 : vector<8x128xf32>
    %211 = math.tanh %210 : vector<8x128xf32>
    %cst_98 = arith.constant 5.000000e-01 : f32
    %212 = vector.broadcast %cst_98 : f32 to vector<8x128xf32>
    %213 = arith.mulf %212, %211 : vector<8x128xf32>
    %cst_99 = arith.constant 5.000000e-01 : f32
    %214 = vector.broadcast %cst_99 : f32 to vector<8x128xf32>
    %215 = arith.addf %213, %214 : vector<8x128xf32>
    %216 = arith.select %145, %211, %215 : vector<8x128xi1>, vector<8x128xf32>
    %217 = vector.extract_strided_slice %216 {offsets = [0, 0], sizes = [8, 32], strides = [1, 1]} : vector<8x128xf32> to vector<8x32xf32>
    %218 = vector.extract_strided_slice %216 {offsets = [0, 32], sizes = [8, 32], strides = [1, 1]} : vector<8x128xf32> to vector<8x32xf32>
    %219 = vector.extract_strided_slice %216 {offsets = [0, 64], sizes = [8, 32], strides = [1, 1]} : vector<8x128xf32> to vector<8x32xf32>
    %220 = vector.extract_strided_slice %216 {offsets = [0, 96], sizes = [8, 32], strides = [1, 1]} : vector<8x128xf32> to vector<8x32xf32>
    %221 = arith.mulf %218, %203 : vector<8x32xf32>
    %222 = arith.mulf %217, %219 : vector<8x32xf32>
    %223 = arith.addf %221, %222 : vector<8x32xf32>
    %224 = math.tanh %223 : vector<8x32xf32>
    %225 = arith.mulf %220, %224 : vector<8x32xf32>
    %c2_i32 = arith.constant 2 : i32
    %226 = vector.broadcast %c2_i32 : i32 to vector<8x1xi32>
    %227 = arith.cmpi sgt, %139, %226 : vector<8x1xi32>
    %228 = vector.shape_cast %227 : vector<8x1xi1> to vector<8x1xi1>
    %229 = vector.broadcast %228 : vector<8x1xi1> to vector<8x32xi1>
    %230 = arith.select %229, %225, %200 : vector<8x32xi1>, vector<8x32xf32>
    %231 = vector.shape_cast %227 : vector<8x1xi1> to vector<8x1xi1>
    %232 = vector.broadcast %231 : vector<8x1xi1> to vector<8x32xi1>
    %233 = arith.select %232, %223, %203 : vector<8x32xi1>, vector<8x32xf32>
    %cst_100 = arith.constant 0.000000e+00 : f32
    %234 = vector.shape_cast %227 : vector<8x1xi1> to vector<8x1xi1>
    %235 = vector.broadcast %234 : vector<8x1xi1> to vector<8x32xi1>
    %236 = vector.broadcast %cst_100 : f32 to vector<8x32xf32>
    %237 = arith.select %235, %225, %236 : vector<8x32xi1>, vector<8x32xf32>
    %238 = vector.extract_strided_slice %137 {offsets = [24, 0], sizes = [8, 128], strides = [1, 1]} : vector<128x128xf32> to vector<8x128xf32>
    %cst_101 = arith.constant dense<0.000000e+00> : vector<8x128xf32>
    %239 = tpu.matmul %230, %138, %cst_101 {dimension_numbers = #tpu.dot_dimension_numbers<[1], [0], [0], [1], [0, 0, 1, 1], [], []>} : vector<8x32xf32>, vector<32x128xf32>, vector<8x128xf32> -> vector<8x128xf32>
    %240 = arith.addf %238, %239 : vector<8x128xf32>
    %241 = math.tanh %240 : vector<8x128xf32>
    %cst_102 = arith.constant 5.000000e-01 : f32
    %242 = vector.broadcast %cst_102 : f32 to vector<8x128xf32>
    %243 = arith.mulf %242, %241 : vector<8x128xf32>
    %cst_103 = arith.constant 5.000000e-01 : f32
    %244 = vector.broadcast %cst_103 : f32 to vector<8x128xf32>
    %245 = arith.addf %243, %244 : vector<8x128xf32>
    %246 = arith.select %145, %241, %245 : vector<8x128xi1>, vector<8x128xf32>
    %247 = vector.extract_strided_slice %246 {offsets = [0, 0], sizes = [8, 32], strides = [1, 1]} : vector<8x128xf32> to vector<8x32xf32>
    %248 = vector.extract_strided_slice %246 {offsets = [0, 32], sizes = [8, 32], strides = [1, 1]} : vector<8x128xf32> to vector<8x32xf32>
    %249 = vector.extract_strided_slice %246 {offsets = [0, 64], sizes = [8, 32], strides = [1, 1]} : vector<8x128xf32> to vector<8x32xf32>
    %250 = vector.extract_strided_slice %246 {offsets = [0, 96], sizes = [8, 32], strides = [1, 1]} : vector<8x128xf32> to vector<8x32xf32>
    %251 = arith.mulf %248, %233 : vector<8x32xf32>
    %252 = arith.mulf %247, %249 : vector<8x32xf32>
    %253 = arith.addf %251, %252 : vector<8x32xf32>
    %254 = math.tanh %253 : vector<8x32xf32>
    %255 = arith.mulf %250, %254 : vector<8x32xf32>
    %c3_i32 = arith.constant 3 : i32
    %256 = vector.broadcast %c3_i32 : i32 to vector<8x1xi32>
    %257 = arith.cmpi sgt, %139, %256 : vector<8x1xi32>
    %258 = vector.shape_cast %257 : vector<8x1xi1> to vector<8x1xi1>
    %259 = vector.broadcast %258 : vector<8x1xi1> to vector<8x32xi1>
    %260 = arith.select %259, %255, %230 : vector<8x32xi1>, vector<8x32xf32>
    %261 = vector.shape_cast %257 : vector<8x1xi1> to vector<8x1xi1>
    %262 = vector.broadcast %261 : vector<8x1xi1> to vector<8x32xi1>
    %263 = arith.select %262, %253, %233 : vector<8x32xi1>, vector<8x32xf32>
    %cst_104 = arith.constant 0.000000e+00 : f32
    %264 = vector.shape_cast %257 : vector<8x1xi1> to vector<8x1xi1>
    %265 = vector.broadcast %264 : vector<8x1xi1> to vector<8x32xi1>
    %266 = vector.broadcast %cst_104 : f32 to vector<8x32xf32>
    %267 = arith.select %265, %255, %266 : vector<8x32xi1>, vector<8x32xf32>
    %268 = vector.extract_strided_slice %137 {offsets = [32, 0], sizes = [8, 128], strides = [1, 1]} : vector<128x128xf32> to vector<8x128xf32>
    %cst_105 = arith.constant dense<0.000000e+00> : vector<8x128xf32>
    %269 = tpu.matmul %260, %138, %cst_105 {dimension_numbers = #tpu.dot_dimension_numbers<[1], [0], [0], [1], [0, 0, 1, 1], [], []>} : vector<8x32xf32>, vector<32x128xf32>, vector<8x128xf32> -> vector<8x128xf32>
    %270 = arith.addf %268, %269 : vector<8x128xf32>
    %271 = math.tanh %270 : vector<8x128xf32>
    %cst_106 = arith.constant 5.000000e-01 : f32
    %272 = vector.broadcast %cst_106 : f32 to vector<8x128xf32>
    %273 = arith.mulf %272, %271 : vector<8x128xf32>
    %cst_107 = arith.constant 5.000000e-01 : f32
    %274 = vector.broadcast %cst_107 : f32 to vector<8x128xf32>
    %275 = arith.addf %273, %274 : vector<8x128xf32>
    %276 = arith.select %145, %271, %275 : vector<8x128xi1>, vector<8x128xf32>
    %277 = vector.extract_strided_slice %276 {offsets = [0, 0], sizes = [8, 32], strides = [1, 1]} : vector<8x128xf32> to vector<8x32xf32>
    %278 = vector.extract_strided_slice %276 {offsets = [0, 32], sizes = [8, 32], strides = [1, 1]} : vector<8x128xf32> to vector<8x32xf32>
    %279 = vector.extract_strided_slice %276 {offsets = [0, 64], sizes = [8, 32], strides = [1, 1]} : vector<8x128xf32> to vector<8x32xf32>
    %280 = vector.extract_strided_slice %276 {offsets = [0, 96], sizes = [8, 32], strides = [1, 1]} : vector<8x128xf32> to vector<8x32xf32>
    %281 = arith.mulf %278, %263 : vector<8x32xf32>
    %282 = arith.mulf %277, %279 : vector<8x32xf32>
    %283 = arith.addf %281, %282 : vector<8x32xf32>
    %284 = math.tanh %283 : vector<8x32xf32>
    %285 = arith.mulf %280, %284 : vector<8x32xf32>
    %c4_i32 = arith.constant 4 : i32
    %286 = vector.broadcast %c4_i32 : i32 to vector<8x1xi32>
    %287 = arith.cmpi sgt, %139, %286 : vector<8x1xi32>
    %288 = vector.shape_cast %287 : vector<8x1xi1> to vector<8x1xi1>
    %289 = vector.broadcast %288 : vector<8x1xi1> to vector<8x32xi1>
    %290 = arith.select %289, %285, %260 : vector<8x32xi1>, vector<8x32xf32>
    %291 = vector.shape_cast %287 : vector<8x1xi1> to vector<8x1xi1>
    %292 = vector.broadcast %291 : vector<8x1xi1> to vector<8x32xi1>
    %293 = arith.select %292, %283, %263 : vector<8x32xi1>, vector<8x32xf32>
    %cst_108 = arith.constant 0.000000e+00 : f32
    %294 = vector.shape_cast %287 : vector<8x1xi1> to vector<8x1xi1>
    %295 = vector.broadcast %294 : vector<8x1xi1> to vector<8x32xi1>
    %296 = vector.broadcast %cst_108 : f32 to vector<8x32xf32>
    %297 = arith.select %295, %285, %296 : vector<8x32xi1>, vector<8x32xf32>
    %298 = vector.extract_strided_slice %137 {offsets = [40, 0], sizes = [8, 128], strides = [1, 1]} : vector<128x128xf32> to vector<8x128xf32>
    %cst_109 = arith.constant dense<0.000000e+00> : vector<8x128xf32>
    %299 = tpu.matmul %290, %138, %cst_109 {dimension_numbers = #tpu.dot_dimension_numbers<[1], [0], [0], [1], [0, 0, 1, 1], [], []>} : vector<8x32xf32>, vector<32x128xf32>, vector<8x128xf32> -> vector<8x128xf32>
    %300 = arith.addf %298, %299 : vector<8x128xf32>
    %301 = math.tanh %300 : vector<8x128xf32>
    %cst_110 = arith.constant 5.000000e-01 : f32
    %302 = vector.broadcast %cst_110 : f32 to vector<8x128xf32>
    %303 = arith.mulf %302, %301 : vector<8x128xf32>
    %cst_111 = arith.constant 5.000000e-01 : f32
    %304 = vector.broadcast %cst_111 : f32 to vector<8x128xf32>
    %305 = arith.addf %303, %304 : vector<8x128xf32>
    %306 = arith.select %145, %301, %305 : vector<8x128xi1>, vector<8x128xf32>
    %307 = vector.extract_strided_slice %306 {offsets = [0, 0], sizes = [8, 32], strides = [1, 1]} : vector<8x128xf32> to vector<8x32xf32>
    %308 = vector.extract_strided_slice %306 {offsets = [0, 32], sizes = [8, 32], strides = [1, 1]} : vector<8x128xf32> to vector<8x32xf32>
    %309 = vector.extract_strided_slice %306 {offsets = [0, 64], sizes = [8, 32], strides = [1, 1]} : vector<8x128xf32> to vector<8x32xf32>
    %310 = vector.extract_strided_slice %306 {offsets = [0, 96], sizes = [8, 32], strides = [1, 1]} : vector<8x128xf32> to vector<8x32xf32>
    %311 = arith.mulf %308, %293 : vector<8x32xf32>
    %312 = arith.mulf %307, %309 : vector<8x32xf32>
    %313 = arith.addf %311, %312 : vector<8x32xf32>
    %314 = math.tanh %313 : vector<8x32xf32>
    %315 = arith.mulf %310, %314 : vector<8x32xf32>
    %c5_i32 = arith.constant 5 : i32
    %316 = vector.broadcast %c5_i32 : i32 to vector<8x1xi32>
    %317 = arith.cmpi sgt, %139, %316 : vector<8x1xi32>
    %318 = vector.shape_cast %317 : vector<8x1xi1> to vector<8x1xi1>
    %319 = vector.broadcast %318 : vector<8x1xi1> to vector<8x32xi1>
    %320 = arith.select %319, %315, %290 : vector<8x32xi1>, vector<8x32xf32>
    %321 = vector.shape_cast %317 : vector<8x1xi1> to vector<8x1xi1>
    %322 = vector.broadcast %321 : vector<8x1xi1> to vector<8x32xi1>
    %323 = arith.select %322, %313, %293 : vector<8x32xi1>, vector<8x32xf32>
    %cst_112 = arith.constant 0.000000e+00 : f32
    %324 = vector.shape_cast %317 : vector<8x1xi1> to vector<8x1xi1>
    %325 = vector.broadcast %324 : vector<8x1xi1> to vector<8x32xi1>
    %326 = vector.broadcast %cst_112 : f32 to vector<8x32xf32>
    %327 = arith.select %325, %315, %326 : vector<8x32xi1>, vector<8x32xf32>
    %328 = vector.extract_strided_slice %137 {offsets = [48, 0], sizes = [8, 128], strides = [1, 1]} : vector<128x128xf32> to vector<8x128xf32>
    %cst_113 = arith.constant dense<0.000000e+00> : vector<8x128xf32>
    %329 = tpu.matmul %320, %138, %cst_113 {dimension_numbers = #tpu.dot_dimension_numbers<[1], [0], [0], [1], [0, 0, 1, 1], [], []>} : vector<8x32xf32>, vector<32x128xf32>, vector<8x128xf32> -> vector<8x128xf32>
    %330 = arith.addf %328, %329 : vector<8x128xf32>
    %331 = math.tanh %330 : vector<8x128xf32>
    %cst_114 = arith.constant 5.000000e-01 : f32
    %332 = vector.broadcast %cst_114 : f32 to vector<8x128xf32>
    %333 = arith.mulf %332, %331 : vector<8x128xf32>
    %cst_115 = arith.constant 5.000000e-01 : f32
    %334 = vector.broadcast %cst_115 : f32 to vector<8x128xf32>
    %335 = arith.addf %333, %334 : vector<8x128xf32>
    %336 = arith.select %145, %331, %335 : vector<8x128xi1>, vector<8x128xf32>
    %337 = vector.extract_strided_slice %336 {offsets = [0, 0], sizes = [8, 32], strides = [1, 1]} : vector<8x128xf32> to vector<8x32xf32>
    %338 = vector.extract_strided_slice %336 {offsets = [0, 32], sizes = [8, 32], strides = [1, 1]} : vector<8x128xf32> to vector<8x32xf32>
    %339 = vector.extract_strided_slice %336 {offsets = [0, 64], sizes = [8, 32], strides = [1, 1]} : vector<8x128xf32> to vector<8x32xf32>
    %340 = vector.extract_strided_slice %336 {offsets = [0, 96], sizes = [8, 32], strides = [1, 1]} : vector<8x128xf32> to vector<8x32xf32>
    %341 = arith.mulf %338, %323 : vector<8x32xf32>
    %342 = arith.mulf %337, %339 : vector<8x32xf32>
    %343 = arith.addf %341, %342 : vector<8x32xf32>
    %344 = math.tanh %343 : vector<8x32xf32>
    %345 = arith.mulf %340, %344 : vector<8x32xf32>
    %c6_i32 = arith.constant 6 : i32
    %346 = vector.broadcast %c6_i32 : i32 to vector<8x1xi32>
    %347 = arith.cmpi sgt, %139, %346 : vector<8x1xi32>
    %348 = vector.shape_cast %347 : vector<8x1xi1> to vector<8x1xi1>
    %349 = vector.broadcast %348 : vector<8x1xi1> to vector<8x32xi1>
    %350 = arith.select %349, %345, %320 : vector<8x32xi1>, vector<8x32xf32>
    %351 = vector.shape_cast %347 : vector<8x1xi1> to vector<8x1xi1>
    %352 = vector.broadcast %351 : vector<8x1xi1> to vector<8x32xi1>
    %353 = arith.select %352, %343, %323 : vector<8x32xi1>, vector<8x32xf32>
    %cst_116 = arith.constant 0.000000e+00 : f32
    %354 = vector.shape_cast %347 : vector<8x1xi1> to vector<8x1xi1>
    %355 = vector.broadcast %354 : vector<8x1xi1> to vector<8x32xi1>
    %356 = vector.broadcast %cst_116 : f32 to vector<8x32xf32>
    %357 = arith.select %355, %345, %356 : vector<8x32xi1>, vector<8x32xf32>
    %358 = vector.extract_strided_slice %137 {offsets = [56, 0], sizes = [8, 128], strides = [1, 1]} : vector<128x128xf32> to vector<8x128xf32>
    %cst_117 = arith.constant dense<0.000000e+00> : vector<8x128xf32>
    %359 = tpu.matmul %350, %138, %cst_117 {dimension_numbers = #tpu.dot_dimension_numbers<[1], [0], [0], [1], [0, 0, 1, 1], [], []>} : vector<8x32xf32>, vector<32x128xf32>, vector<8x128xf32> -> vector<8x128xf32>
    %360 = arith.addf %358, %359 : vector<8x128xf32>
    %361 = math.tanh %360 : vector<8x128xf32>
    %cst_118 = arith.constant 5.000000e-01 : f32
    %362 = vector.broadcast %cst_118 : f32 to vector<8x128xf32>
    %363 = arith.mulf %362, %361 : vector<8x128xf32>
    %cst_119 = arith.constant 5.000000e-01 : f32
    %364 = vector.broadcast %cst_119 : f32 to vector<8x128xf32>
    %365 = arith.addf %363, %364 : vector<8x128xf32>
    %366 = arith.select %145, %361, %365 : vector<8x128xi1>, vector<8x128xf32>
    %367 = vector.extract_strided_slice %366 {offsets = [0, 0], sizes = [8, 32], strides = [1, 1]} : vector<8x128xf32> to vector<8x32xf32>
    %368 = vector.extract_strided_slice %366 {offsets = [0, 32], sizes = [8, 32], strides = [1, 1]} : vector<8x128xf32> to vector<8x32xf32>
    %369 = vector.extract_strided_slice %366 {offsets = [0, 64], sizes = [8, 32], strides = [1, 1]} : vector<8x128xf32> to vector<8x32xf32>
    %370 = vector.extract_strided_slice %366 {offsets = [0, 96], sizes = [8, 32], strides = [1, 1]} : vector<8x128xf32> to vector<8x32xf32>
    %371 = arith.mulf %368, %353 : vector<8x32xf32>
    %372 = arith.mulf %367, %369 : vector<8x32xf32>
    %373 = arith.addf %371, %372 : vector<8x32xf32>
    %374 = math.tanh %373 : vector<8x32xf32>
    %375 = arith.mulf %370, %374 : vector<8x32xf32>
    %c7_i32 = arith.constant 7 : i32
    %376 = vector.broadcast %c7_i32 : i32 to vector<8x1xi32>
    %377 = arith.cmpi sgt, %139, %376 : vector<8x1xi32>
    %378 = vector.shape_cast %377 : vector<8x1xi1> to vector<8x1xi1>
    %379 = vector.broadcast %378 : vector<8x1xi1> to vector<8x32xi1>
    %380 = arith.select %379, %375, %350 : vector<8x32xi1>, vector<8x32xf32>
    %381 = vector.shape_cast %377 : vector<8x1xi1> to vector<8x1xi1>
    %382 = vector.broadcast %381 : vector<8x1xi1> to vector<8x32xi1>
    %383 = arith.select %382, %373, %353 : vector<8x32xi1>, vector<8x32xf32>
    %cst_120 = arith.constant 0.000000e+00 : f32
    %384 = vector.shape_cast %377 : vector<8x1xi1> to vector<8x1xi1>
    %385 = vector.broadcast %384 : vector<8x1xi1> to vector<8x32xi1>
    %386 = vector.broadcast %cst_120 : f32 to vector<8x32xf32>
    %387 = arith.select %385, %375, %386 : vector<8x32xi1>, vector<8x32xf32>
    %388 = vector.extract_strided_slice %137 {offsets = [64, 0], sizes = [8, 128], strides = [1, 1]} : vector<128x128xf32> to vector<8x128xf32>
    %cst_121 = arith.constant dense<0.000000e+00> : vector<8x128xf32>
    %389 = tpu.matmul %380, %138, %cst_121 {dimension_numbers = #tpu.dot_dimension_numbers<[1], [0], [0], [1], [0, 0, 1, 1], [], []>} : vector<8x32xf32>, vector<32x128xf32>, vector<8x128xf32> -> vector<8x128xf32>
    %390 = arith.addf %388, %389 : vector<8x128xf32>
    %391 = math.tanh %390 : vector<8x128xf32>
    %cst_122 = arith.constant 5.000000e-01 : f32
    %392 = vector.broadcast %cst_122 : f32 to vector<8x128xf32>
    %393 = arith.mulf %392, %391 : vector<8x128xf32>
    %cst_123 = arith.constant 5.000000e-01 : f32
    %394 = vector.broadcast %cst_123 : f32 to vector<8x128xf32>
    %395 = arith.addf %393, %394 : vector<8x128xf32>
    %396 = arith.select %145, %391, %395 : vector<8x128xi1>, vector<8x128xf32>
    %397 = vector.extract_strided_slice %396 {offsets = [0, 0], sizes = [8, 32], strides = [1, 1]} : vector<8x128xf32> to vector<8x32xf32>
    %398 = vector.extract_strided_slice %396 {offsets = [0, 32], sizes = [8, 32], strides = [1, 1]} : vector<8x128xf32> to vector<8x32xf32>
    %399 = vector.extract_strided_slice %396 {offsets = [0, 64], sizes = [8, 32], strides = [1, 1]} : vector<8x128xf32> to vector<8x32xf32>
    %400 = vector.extract_strided_slice %396 {offsets = [0, 96], sizes = [8, 32], strides = [1, 1]} : vector<8x128xf32> to vector<8x32xf32>
    %401 = arith.mulf %398, %383 : vector<8x32xf32>
    %402 = arith.mulf %397, %399 : vector<8x32xf32>
    %403 = arith.addf %401, %402 : vector<8x32xf32>
    %404 = math.tanh %403 : vector<8x32xf32>
    %405 = arith.mulf %400, %404 : vector<8x32xf32>
    %c8_i32_124 = arith.constant 8 : i32
    %406 = vector.broadcast %c8_i32_124 : i32 to vector<8x1xi32>
    %407 = arith.cmpi sgt, %139, %406 : vector<8x1xi32>
    %408 = vector.shape_cast %407 : vector<8x1xi1> to vector<8x1xi1>
    %409 = vector.broadcast %408 : vector<8x1xi1> to vector<8x32xi1>
    %410 = arith.select %409, %405, %380 : vector<8x32xi1>, vector<8x32xf32>
    %411 = vector.shape_cast %407 : vector<8x1xi1> to vector<8x1xi1>
    %412 = vector.broadcast %411 : vector<8x1xi1> to vector<8x32xi1>
    %413 = arith.select %412, %403, %383 : vector<8x32xi1>, vector<8x32xf32>
    %cst_125 = arith.constant 0.000000e+00 : f32
    %414 = vector.shape_cast %407 : vector<8x1xi1> to vector<8x1xi1>
    %415 = vector.broadcast %414 : vector<8x1xi1> to vector<8x32xi1>
    %416 = vector.broadcast %cst_125 : f32 to vector<8x32xf32>
    %417 = arith.select %415, %405, %416 : vector<8x32xi1>, vector<8x32xf32>
    %418 = vector.extract_strided_slice %137 {offsets = [72, 0], sizes = [8, 128], strides = [1, 1]} : vector<128x128xf32> to vector<8x128xf32>
    %cst_126 = arith.constant dense<0.000000e+00> : vector<8x128xf32>
    %419 = tpu.matmul %410, %138, %cst_126 {dimension_numbers = #tpu.dot_dimension_numbers<[1], [0], [0], [1], [0, 0, 1, 1], [], []>} : vector<8x32xf32>, vector<32x128xf32>, vector<8x128xf32> -> vector<8x128xf32>
    %420 = arith.addf %418, %419 : vector<8x128xf32>
    %421 = math.tanh %420 : vector<8x128xf32>
    %cst_127 = arith.constant 5.000000e-01 : f32
    %422 = vector.broadcast %cst_127 : f32 to vector<8x128xf32>
    %423 = arith.mulf %422, %421 : vector<8x128xf32>
    %cst_128 = arith.constant 5.000000e-01 : f32
    %424 = vector.broadcast %cst_128 : f32 to vector<8x128xf32>
    %425 = arith.addf %423, %424 : vector<8x128xf32>
    %426 = arith.select %145, %421, %425 : vector<8x128xi1>, vector<8x128xf32>
    %427 = vector.extract_strided_slice %426 {offsets = [0, 0], sizes = [8, 32], strides = [1, 1]} : vector<8x128xf32> to vector<8x32xf32>
    %428 = vector.extract_strided_slice %426 {offsets = [0, 32], sizes = [8, 32], strides = [1, 1]} : vector<8x128xf32> to vector<8x32xf32>
    %429 = vector.extract_strided_slice %426 {offsets = [0, 64], sizes = [8, 32], strides = [1, 1]} : vector<8x128xf32> to vector<8x32xf32>
    %430 = vector.extract_strided_slice %426 {offsets = [0, 96], sizes = [8, 32], strides = [1, 1]} : vector<8x128xf32> to vector<8x32xf32>
    %431 = arith.mulf %428, %413 : vector<8x32xf32>
    %432 = arith.mulf %427, %429 : vector<8x32xf32>
    %433 = arith.addf %431, %432 : vector<8x32xf32>
    %434 = math.tanh %433 : vector<8x32xf32>
    %435 = arith.mulf %430, %434 : vector<8x32xf32>
    %c9_i32 = arith.constant 9 : i32
    %436 = vector.broadcast %c9_i32 : i32 to vector<8x1xi32>
    %437 = arith.cmpi sgt, %139, %436 : vector<8x1xi32>
    %438 = vector.shape_cast %437 : vector<8x1xi1> to vector<8x1xi1>
    %439 = vector.broadcast %438 : vector<8x1xi1> to vector<8x32xi1>
    %440 = arith.select %439, %435, %410 : vector<8x32xi1>, vector<8x32xf32>
    %441 = vector.shape_cast %437 : vector<8x1xi1> to vector<8x1xi1>
    %442 = vector.broadcast %441 : vector<8x1xi1> to vector<8x32xi1>
    %443 = arith.select %442, %433, %413 : vector<8x32xi1>, vector<8x32xf32>
    %cst_129 = arith.constant 0.000000e+00 : f32
    %444 = vector.shape_cast %437 : vector<8x1xi1> to vector<8x1xi1>
    %445 = vector.broadcast %444 : vector<8x1xi1> to vector<8x32xi1>
    %446 = vector.broadcast %cst_129 : f32 to vector<8x32xf32>
    %447 = arith.select %445, %435, %446 : vector<8x32xi1>, vector<8x32xf32>
    %448 = vector.extract_strided_slice %137 {offsets = [80, 0], sizes = [8, 128], strides = [1, 1]} : vector<128x128xf32> to vector<8x128xf32>
    %cst_130 = arith.constant dense<0.000000e+00> : vector<8x128xf32>
    %449 = tpu.matmul %440, %138, %cst_130 {dimension_numbers = #tpu.dot_dimension_numbers<[1], [0], [0], [1], [0, 0, 1, 1], [], []>} : vector<8x32xf32>, vector<32x128xf32>, vector<8x128xf32> -> vector<8x128xf32>
    %450 = arith.addf %448, %449 : vector<8x128xf32>
    %451 = math.tanh %450 : vector<8x128xf32>
    %cst_131 = arith.constant 5.000000e-01 : f32
    %452 = vector.broadcast %cst_131 : f32 to vector<8x128xf32>
    %453 = arith.mulf %452, %451 : vector<8x128xf32>
    %cst_132 = arith.constant 5.000000e-01 : f32
    %454 = vector.broadcast %cst_132 : f32 to vector<8x128xf32>
    %455 = arith.addf %453, %454 : vector<8x128xf32>
    %456 = arith.select %145, %451, %455 : vector<8x128xi1>, vector<8x128xf32>
    %457 = vector.extract_strided_slice %456 {offsets = [0, 0], sizes = [8, 32], strides = [1, 1]} : vector<8x128xf32> to vector<8x32xf32>
    %458 = vector.extract_strided_slice %456 {offsets = [0, 32], sizes = [8, 32], strides = [1, 1]} : vector<8x128xf32> to vector<8x32xf32>
    %459 = vector.extract_strided_slice %456 {offsets = [0, 64], sizes = [8, 32], strides = [1, 1]} : vector<8x128xf32> to vector<8x32xf32>
    %460 = vector.extract_strided_slice %456 {offsets = [0, 96], sizes = [8, 32], strides = [1, 1]} : vector<8x128xf32> to vector<8x32xf32>
    %461 = arith.mulf %458, %443 : vector<8x32xf32>
    %462 = arith.mulf %457, %459 : vector<8x32xf32>
    %463 = arith.addf %461, %462 : vector<8x32xf32>
    %464 = math.tanh %463 : vector<8x32xf32>
    %465 = arith.mulf %460, %464 : vector<8x32xf32>
    %c10_i32 = arith.constant 10 : i32
    %466 = vector.broadcast %c10_i32 : i32 to vector<8x1xi32>
    %467 = arith.cmpi sgt, %139, %466 : vector<8x1xi32>
    %468 = vector.shape_cast %467 : vector<8x1xi1> to vector<8x1xi1>
    %469 = vector.broadcast %468 : vector<8x1xi1> to vector<8x32xi1>
    %470 = arith.select %469, %465, %440 : vector<8x32xi1>, vector<8x32xf32>
    %471 = vector.shape_cast %467 : vector<8x1xi1> to vector<8x1xi1>
    %472 = vector.broadcast %471 : vector<8x1xi1> to vector<8x32xi1>
    %473 = arith.select %472, %463, %443 : vector<8x32xi1>, vector<8x32xf32>
    %cst_133 = arith.constant 0.000000e+00 : f32
    %474 = vector.shape_cast %467 : vector<8x1xi1> to vector<8x1xi1>
    %475 = vector.broadcast %474 : vector<8x1xi1> to vector<8x32xi1>
    %476 = vector.broadcast %cst_133 : f32 to vector<8x32xf32>
    %477 = arith.select %475, %465, %476 : vector<8x32xi1>, vector<8x32xf32>
    %478 = vector.extract_strided_slice %137 {offsets = [88, 0], sizes = [8, 128], strides = [1, 1]} : vector<128x128xf32> to vector<8x128xf32>
    %cst_134 = arith.constant dense<0.000000e+00> : vector<8x128xf32>
    %479 = tpu.matmul %470, %138, %cst_134 {dimension_numbers = #tpu.dot_dimension_numbers<[1], [0], [0], [1], [0, 0, 1, 1], [], []>} : vector<8x32xf32>, vector<32x128xf32>, vector<8x128xf32> -> vector<8x128xf32>
    %480 = arith.addf %478, %479 : vector<8x128xf32>
    %481 = math.tanh %480 : vector<8x128xf32>
    %cst_135 = arith.constant 5.000000e-01 : f32
    %482 = vector.broadcast %cst_135 : f32 to vector<8x128xf32>
    %483 = arith.mulf %482, %481 : vector<8x128xf32>
    %cst_136 = arith.constant 5.000000e-01 : f32
    %484 = vector.broadcast %cst_136 : f32 to vector<8x128xf32>
    %485 = arith.addf %483, %484 : vector<8x128xf32>
    %486 = arith.select %145, %481, %485 : vector<8x128xi1>, vector<8x128xf32>
    %487 = vector.extract_strided_slice %486 {offsets = [0, 0], sizes = [8, 32], strides = [1, 1]} : vector<8x128xf32> to vector<8x32xf32>
    %488 = vector.extract_strided_slice %486 {offsets = [0, 32], sizes = [8, 32], strides = [1, 1]} : vector<8x128xf32> to vector<8x32xf32>
    %489 = vector.extract_strided_slice %486 {offsets = [0, 64], sizes = [8, 32], strides = [1, 1]} : vector<8x128xf32> to vector<8x32xf32>
    %490 = vector.extract_strided_slice %486 {offsets = [0, 96], sizes = [8, 32], strides = [1, 1]} : vector<8x128xf32> to vector<8x32xf32>
    %491 = arith.mulf %488, %473 : vector<8x32xf32>
    %492 = arith.mulf %487, %489 : vector<8x32xf32>
    %493 = arith.addf %491, %492 : vector<8x32xf32>
    %494 = math.tanh %493 : vector<8x32xf32>
    %495 = arith.mulf %490, %494 : vector<8x32xf32>
    %c11_i32 = arith.constant 11 : i32
    %496 = vector.broadcast %c11_i32 : i32 to vector<8x1xi32>
    %497 = arith.cmpi sgt, %139, %496 : vector<8x1xi32>
    %498 = vector.shape_cast %497 : vector<8x1xi1> to vector<8x1xi1>
    %499 = vector.broadcast %498 : vector<8x1xi1> to vector<8x32xi1>
    %500 = arith.select %499, %495, %470 : vector<8x32xi1>, vector<8x32xf32>
    %501 = vector.shape_cast %497 : vector<8x1xi1> to vector<8x1xi1>
    %502 = vector.broadcast %501 : vector<8x1xi1> to vector<8x32xi1>
    %503 = arith.select %502, %493, %473 : vector<8x32xi1>, vector<8x32xf32>
    %cst_137 = arith.constant 0.000000e+00 : f32
    %504 = vector.shape_cast %497 : vector<8x1xi1> to vector<8x1xi1>
    %505 = vector.broadcast %504 : vector<8x1xi1> to vector<8x32xi1>
    %506 = vector.broadcast %cst_137 : f32 to vector<8x32xf32>
    %507 = arith.select %505, %495, %506 : vector<8x32xi1>, vector<8x32xf32>
    %508 = vector.extract_strided_slice %137 {offsets = [96, 0], sizes = [8, 128], strides = [1, 1]} : vector<128x128xf32> to vector<8x128xf32>
    %cst_138 = arith.constant dense<0.000000e+00> : vector<8x128xf32>
    %509 = tpu.matmul %500, %138, %cst_138 {dimension_numbers = #tpu.dot_dimension_numbers<[1], [0], [0], [1], [0, 0, 1, 1], [], []>} : vector<8x32xf32>, vector<32x128xf32>, vector<8x128xf32> -> vector<8x128xf32>
    %510 = arith.addf %508, %509 : vector<8x128xf32>
    %511 = math.tanh %510 : vector<8x128xf32>
    %cst_139 = arith.constant 5.000000e-01 : f32
    %512 = vector.broadcast %cst_139 : f32 to vector<8x128xf32>
    %513 = arith.mulf %512, %511 : vector<8x128xf32>
    %cst_140 = arith.constant 5.000000e-01 : f32
    %514 = vector.broadcast %cst_140 : f32 to vector<8x128xf32>
    %515 = arith.addf %513, %514 : vector<8x128xf32>
    %516 = arith.select %145, %511, %515 : vector<8x128xi1>, vector<8x128xf32>
    %517 = vector.extract_strided_slice %516 {offsets = [0, 0], sizes = [8, 32], strides = [1, 1]} : vector<8x128xf32> to vector<8x32xf32>
    %518 = vector.extract_strided_slice %516 {offsets = [0, 32], sizes = [8, 32], strides = [1, 1]} : vector<8x128xf32> to vector<8x32xf32>
    %519 = vector.extract_strided_slice %516 {offsets = [0, 64], sizes = [8, 32], strides = [1, 1]} : vector<8x128xf32> to vector<8x32xf32>
    %520 = vector.extract_strided_slice %516 {offsets = [0, 96], sizes = [8, 32], strides = [1, 1]} : vector<8x128xf32> to vector<8x32xf32>
    %521 = arith.mulf %518, %503 : vector<8x32xf32>
    %522 = arith.mulf %517, %519 : vector<8x32xf32>
    %523 = arith.addf %521, %522 : vector<8x32xf32>
    %524 = math.tanh %523 : vector<8x32xf32>
    %525 = arith.mulf %520, %524 : vector<8x32xf32>
    %c12_i32 = arith.constant 12 : i32
    %526 = vector.broadcast %c12_i32 : i32 to vector<8x1xi32>
    %527 = arith.cmpi sgt, %139, %526 : vector<8x1xi32>
    %528 = vector.shape_cast %527 : vector<8x1xi1> to vector<8x1xi1>
    %529 = vector.broadcast %528 : vector<8x1xi1> to vector<8x32xi1>
    %530 = arith.select %529, %525, %500 : vector<8x32xi1>, vector<8x32xf32>
    %531 = vector.shape_cast %527 : vector<8x1xi1> to vector<8x1xi1>
    %532 = vector.broadcast %531 : vector<8x1xi1> to vector<8x32xi1>
    %533 = arith.select %532, %523, %503 : vector<8x32xi1>, vector<8x32xf32>
    %cst_141 = arith.constant 0.000000e+00 : f32
    %534 = vector.shape_cast %527 : vector<8x1xi1> to vector<8x1xi1>
    %535 = vector.broadcast %534 : vector<8x1xi1> to vector<8x32xi1>
    %536 = vector.broadcast %cst_141 : f32 to vector<8x32xf32>
    %537 = arith.select %535, %525, %536 : vector<8x32xi1>, vector<8x32xf32>
    %538 = vector.extract_strided_slice %137 {offsets = [104, 0], sizes = [8, 128], strides = [1, 1]} : vector<128x128xf32> to vector<8x128xf32>
    %cst_142 = arith.constant dense<0.000000e+00> : vector<8x128xf32>
    %539 = tpu.matmul %530, %138, %cst_142 {dimension_numbers = #tpu.dot_dimension_numbers<[1], [0], [0], [1], [0, 0, 1, 1], [], []>} : vector<8x32xf32>, vector<32x128xf32>, vector<8x128xf32> -> vector<8x128xf32>
    %540 = arith.addf %538, %539 : vector<8x128xf32>
    %541 = math.tanh %540 : vector<8x128xf32>
    %cst_143 = arith.constant 5.000000e-01 : f32
    %542 = vector.broadcast %cst_143 : f32 to vector<8x128xf32>
    %543 = arith.mulf %542, %541 : vector<8x128xf32>
    %cst_144 = arith.constant 5.000000e-01 : f32
    %544 = vector.broadcast %cst_144 : f32 to vector<8x128xf32>
    %545 = arith.addf %543, %544 : vector<8x128xf32>
    %546 = arith.select %145, %541, %545 : vector<8x128xi1>, vector<8x128xf32>
    %547 = vector.extract_strided_slice %546 {offsets = [0, 0], sizes = [8, 32], strides = [1, 1]} : vector<8x128xf32> to vector<8x32xf32>
    %548 = vector.extract_strided_slice %546 {offsets = [0, 32], sizes = [8, 32], strides = [1, 1]} : vector<8x128xf32> to vector<8x32xf32>
    %549 = vector.extract_strided_slice %546 {offsets = [0, 64], sizes = [8, 32], strides = [1, 1]} : vector<8x128xf32> to vector<8x32xf32>
    %550 = vector.extract_strided_slice %546 {offsets = [0, 96], sizes = [8, 32], strides = [1, 1]} : vector<8x128xf32> to vector<8x32xf32>
    %551 = arith.mulf %548, %533 : vector<8x32xf32>
    %552 = arith.mulf %547, %549 : vector<8x32xf32>
    %553 = arith.addf %551, %552 : vector<8x32xf32>
    %554 = math.tanh %553 : vector<8x32xf32>
    %555 = arith.mulf %550, %554 : vector<8x32xf32>
    %c13_i32 = arith.constant 13 : i32
    %556 = vector.broadcast %c13_i32 : i32 to vector<8x1xi32>
    %557 = arith.cmpi sgt, %139, %556 : vector<8x1xi32>
    %558 = vector.shape_cast %557 : vector<8x1xi1> to vector<8x1xi1>
    %559 = vector.broadcast %558 : vector<8x1xi1> to vector<8x32xi1>
    %560 = arith.select %559, %555, %530 : vector<8x32xi1>, vector<8x32xf32>
    %561 = vector.shape_cast %557 : vector<8x1xi1> to vector<8x1xi1>
    %562 = vector.broadcast %561 : vector<8x1xi1> to vector<8x32xi1>
    %563 = arith.select %562, %553, %533 : vector<8x32xi1>, vector<8x32xf32>
    %cst_145 = arith.constant 0.000000e+00 : f32
    %564 = vector.shape_cast %557 : vector<8x1xi1> to vector<8x1xi1>
    %565 = vector.broadcast %564 : vector<8x1xi1> to vector<8x32xi1>
    %566 = vector.broadcast %cst_145 : f32 to vector<8x32xf32>
    %567 = arith.select %565, %555, %566 : vector<8x32xi1>, vector<8x32xf32>
    %568 = vector.extract_strided_slice %137 {offsets = [112, 0], sizes = [8, 128], strides = [1, 1]} : vector<128x128xf32> to vector<8x128xf32>
    %cst_146 = arith.constant dense<0.000000e+00> : vector<8x128xf32>
    %569 = tpu.matmul %560, %138, %cst_146 {dimension_numbers = #tpu.dot_dimension_numbers<[1], [0], [0], [1], [0, 0, 1, 1], [], []>} : vector<8x32xf32>, vector<32x128xf32>, vector<8x128xf32> -> vector<8x128xf32>
    %570 = arith.addf %568, %569 : vector<8x128xf32>
    %571 = math.tanh %570 : vector<8x128xf32>
    %cst_147 = arith.constant 5.000000e-01 : f32
    %572 = vector.broadcast %cst_147 : f32 to vector<8x128xf32>
    %573 = arith.mulf %572, %571 : vector<8x128xf32>
    %cst_148 = arith.constant 5.000000e-01 : f32
    %574 = vector.broadcast %cst_148 : f32 to vector<8x128xf32>
    %575 = arith.addf %573, %574 : vector<8x128xf32>
    %576 = arith.select %145, %571, %575 : vector<8x128xi1>, vector<8x128xf32>
    %577 = vector.extract_strided_slice %576 {offsets = [0, 0], sizes = [8, 32], strides = [1, 1]} : vector<8x128xf32> to vector<8x32xf32>
    %578 = vector.extract_strided_slice %576 {offsets = [0, 32], sizes = [8, 32], strides = [1, 1]} : vector<8x128xf32> to vector<8x32xf32>
    %579 = vector.extract_strided_slice %576 {offsets = [0, 64], sizes = [8, 32], strides = [1, 1]} : vector<8x128xf32> to vector<8x32xf32>
    %580 = vector.extract_strided_slice %576 {offsets = [0, 96], sizes = [8, 32], strides = [1, 1]} : vector<8x128xf32> to vector<8x32xf32>
    %581 = arith.mulf %578, %563 : vector<8x32xf32>
    %582 = arith.mulf %577, %579 : vector<8x32xf32>
    %583 = arith.addf %581, %582 : vector<8x32xf32>
    %584 = math.tanh %583 : vector<8x32xf32>
    %585 = arith.mulf %580, %584 : vector<8x32xf32>
    %c14_i32 = arith.constant 14 : i32
    %586 = vector.broadcast %c14_i32 : i32 to vector<8x1xi32>
    %587 = arith.cmpi sgt, %139, %586 : vector<8x1xi32>
    %588 = vector.shape_cast %587 : vector<8x1xi1> to vector<8x1xi1>
    %589 = vector.broadcast %588 : vector<8x1xi1> to vector<8x32xi1>
    %590 = arith.select %589, %585, %560 : vector<8x32xi1>, vector<8x32xf32>
    %591 = vector.shape_cast %587 : vector<8x1xi1> to vector<8x1xi1>
    %592 = vector.broadcast %591 : vector<8x1xi1> to vector<8x32xi1>
    %593 = arith.select %592, %583, %563 : vector<8x32xi1>, vector<8x32xf32>
    %cst_149 = arith.constant 0.000000e+00 : f32
    %594 = vector.shape_cast %587 : vector<8x1xi1> to vector<8x1xi1>
    %595 = vector.broadcast %594 : vector<8x1xi1> to vector<8x32xi1>
    %596 = vector.broadcast %cst_149 : f32 to vector<8x32xf32>
    %597 = arith.select %595, %585, %596 : vector<8x32xi1>, vector<8x32xf32>
    %598 = vector.extract_strided_slice %137 {offsets = [120, 0], sizes = [8, 128], strides = [1, 1]} : vector<128x128xf32> to vector<8x128xf32>
    %cst_150 = arith.constant dense<0.000000e+00> : vector<8x128xf32>
    %599 = tpu.matmul %590, %138, %cst_150 {dimension_numbers = #tpu.dot_dimension_numbers<[1], [0], [0], [1], [0, 0, 1, 1], [], []>} : vector<8x32xf32>, vector<32x128xf32>, vector<8x128xf32> -> vector<8x128xf32>
    %600 = arith.addf %598, %599 : vector<8x128xf32>
    %601 = math.tanh %600 : vector<8x128xf32>
    %cst_151 = arith.constant 5.000000e-01 : f32
    %602 = vector.broadcast %cst_151 : f32 to vector<8x128xf32>
    %603 = arith.mulf %602, %601 : vector<8x128xf32>
    %cst_152 = arith.constant 5.000000e-01 : f32
    %604 = vector.broadcast %cst_152 : f32 to vector<8x128xf32>
    %605 = arith.addf %603, %604 : vector<8x128xf32>
    %606 = arith.select %145, %601, %605 : vector<8x128xi1>, vector<8x128xf32>
    %607 = vector.extract_strided_slice %606 {offsets = [0, 0], sizes = [8, 32], strides = [1, 1]} : vector<8x128xf32> to vector<8x32xf32>
    %608 = vector.extract_strided_slice %606 {offsets = [0, 32], sizes = [8, 32], strides = [1, 1]} : vector<8x128xf32> to vector<8x32xf32>
    %609 = vector.extract_strided_slice %606 {offsets = [0, 64], sizes = [8, 32], strides = [1, 1]} : vector<8x128xf32> to vector<8x32xf32>
    %610 = vector.extract_strided_slice %606 {offsets = [0, 96], sizes = [8, 32], strides = [1, 1]} : vector<8x128xf32> to vector<8x32xf32>
    %611 = arith.mulf %608, %593 : vector<8x32xf32>
    %612 = arith.mulf %607, %609 : vector<8x32xf32>
    %613 = arith.addf %611, %612 : vector<8x32xf32>
    %614 = math.tanh %613 : vector<8x32xf32>
    %615 = arith.mulf %610, %614 : vector<8x32xf32>
    %c15_i32 = arith.constant 15 : i32
    %616 = vector.broadcast %c15_i32 : i32 to vector<8x1xi32>
    %617 = arith.cmpi sgt, %139, %616 : vector<8x1xi32>
    %cst_153 = arith.constant 0.000000e+00 : f32
    %618 = vector.shape_cast %617 : vector<8x1xi1> to vector<8x1xi1>
    %619 = vector.broadcast %618 : vector<8x1xi1> to vector<8x32xi1>
    %620 = vector.broadcast %cst_153 : f32 to vector<8x32xf32>
    %621 = arith.select %619, %615, %620 : vector<8x32xi1>, vector<8x32xf32>
    %622 = tpu.concatenate %177, %207, %237, %267, %297, %327, %357, %387, %417, %447, %477, %507, %537, %567, %597, %621 in 0 : vector<8x32xf32>, vector<8x32xf32>, vector<8x32xf32>, vector<8x32xf32>, vector<8x32xf32>, vector<8x32xf32>, vector<8x32xf32>, vector<8x32xf32>, vector<8x32xf32>, vector<8x32xf32>, vector<8x32xf32>, vector<8x32xf32>, vector<8x32xf32>, vector<8x32xf32>, vector<8x32xf32>, vector<8x32xf32> -> vector<128x32xf32>
    %623 = arith.truncf %622 : vector<128x32xf32> to vector<128x32xbf16>
    %c0_154 = arith.constant 0 : index
    %c0_155 = arith.constant 0 : index
    %624 = vector.load %arg14[%c0_154, %c0_155] : memref<32x128xbf16, #tpu.memory_space<vmem>>, vector<32x128xbf16>
    %cst_156 = arith.constant dense<0.000000e+00> : vector<128x128xf32>
    %625 = tpu.matmul %623, %624, %cst_156 {dimension_numbers = #tpu.dot_dimension_numbers<[1], [0], [0], [1], [0, 0, 1, 1], [], []>} : vector<128x32xbf16>, vector<32x128xbf16>, vector<128x128xf32> -> vector<128x128xf32>
    %c0_157 = arith.constant 0 : index
    %c0_158 = arith.constant 0 : index
    %626 = vector.load %arg15[%c0_157, %c0_158] : memref<1x128xf32, #tpu.memory_space<vmem>>, vector<1x128xf32>
    %627 = vector.broadcast %626 : vector<1x128xf32> to vector<128x128xf32>
    %628 = arith.addf %625, %627 : vector<128x128xf32>
    %c0_159 = arith.constant 0 : index
    %c0_160 = arith.constant 0 : index
    %629 = vector.load %arg16[%c0_159, %c0_160] : memref<128x128xf32, #tpu.memory_space<vmem>>, vector<128x128xf32>
    tpu.vector_store %arg16[%c0_159, %c0_160], %628 {strides = array<i32>} : memref<128x128xf32, #tpu.memory_space<vmem>>, vector<128x128xf32>,
    return
  }
  func.func @transform_0(%arg0: i32) -> (i32, i32) {
    %c0_i32 = arith.constant 0 : i32
    %c0_i32_0 = arith.constant 0 : i32
    %c0_i32_1 = arith.constant 0 : i32
    return %c0_i32, %c0_i32_0 : i32, i32
  }
  func.func @transform_1(%arg0: i32) -> (i32, i32) {
    %c0_i32 = arith.constant 0 : i32
    %c0_i32_0 = arith.constant 0 : i32
    %c0_i32_1 = arith.constant 0 : i32
    return %c0_i32, %c0_i32_0 : i32, i32
  }
  func.func @transform_2(%arg0: i32) -> (i32, i32) {
    %c0_i32 = arith.constant 0 : i32
    %c0_i32_0 = arith.constant 0 : i32
    %c0_i32_1 = arith.constant 0 : i32
    return %c0_i32, %c0_i32_0 : i32, i32
  }
  func.func @transform_3(%arg0: i32) -> (i32, i32) {
    %c0_i32 = arith.constant 0 : i32
    %c0_i32_0 = arith.constant 0 : i32
    %c0_i32_1 = arith.constant 0 : i32
    return %c0_i32, %c0_i32_0 : i32, i32
  }
  func.func @transform_4(%arg0: i32) -> (i32, i32) {
    %c0_i32 = arith.constant 0 : i32
    %c0_i32_0 = arith.constant 0 : i32
    %c0_i32_1 = arith.constant 0 : i32
    return %c0_i32, %c0_i32_0 : i32, i32
  }
  func.func @transform_5(%arg0: i32) -> (i32, i32) {
    %c0_i32 = arith.constant 0 : i32
    %c0_i32_0 = arith.constant 0 : i32
    %c0_i32_1 = arith.constant 0 : i32
    return %c0_i32, %c0_i32_0 : i32, i32
  }
  func.func @transform_6(%arg0: i32) -> (i32, i32, i32, i32) {
    %c0_i32 = arith.constant 0 : i32
    %c0_i32_0 = arith.constant 0 : i32
    %c0_i32_1 = arith.constant 0 : i32
    %c0_i32_2 = arith.constant 0 : i32
    %c0_i32_3 = arith.constant 0 : i32
    return %c0_i32, %c0_i32_0, %c0_i32_1, %c0_i32_2 : i32, i32, i32, i32
  }
  func.func @transform_7(%arg0: i32) -> (i32, i32, i32) {
    %c0_i32 = arith.constant 0 : i32
    %c0_i32_0 = arith.constant 0 : i32
    %c0_i32_1 = arith.constant 0 : i32
    %c0_i32_2 = arith.constant 0 : i32
    return %c0_i32, %c0_i32_0, %c0_i32_1 : i32, i32, i32
  }
  func.func @transform_8(%arg0: i32) -> (i32, i32, i32) {
    %c0_i32 = arith.constant 0 : i32
    %c0_i32_0 = arith.constant 0 : i32
    %c0_i32_1 = arith.constant 0 : i32
    %c0_i32_2 = arith.constant 0 : i32
    return %c0_i32, %c0_i32_0, %c0_i32_1 : i32, i32, i32
  }
  func.func @transform_9(%arg0: i32) -> (i32, i32, i32) {
    %c0_i32 = arith.constant 0 : i32
    %c0_i32_0 = arith.constant 0 : i32
    %c0_i32_1 = arith.constant 0 : i32
    %c0_i32_2 = arith.constant 0 : i32
    return %c0_i32, %c0_i32_0, %c0_i32_1 : i32, i32, i32
  }
  func.func @transform_10(%arg0: i32) -> (i32, i32) {
    %c0_i32 = arith.constant 0 : i32
    %c0_i32_0 = arith.constant 0 : i32
    %c0_i32_1 = arith.constant 0 : i32
    return %c0_i32, %c0_i32_0 : i32, i32
  }
  func.func @transform_11(%arg0: i32) -> (i32, i32) {
    %c0_i32 = arith.constant 0 : i32
    %c0_i32_0 = arith.constant 0 : i32
    %c0_i32_1 = arith.constant 0 : i32
    return %c0_i32, %c0_i32_0 : i32, i32
  }
  func.func @transform_12(%arg0: i32) -> (i32, i32) {
    %c0_i32 = arith.constant 0 : i32
    %c0_i32_0 = arith.constant 0 : i32
    %c0_i32_1 = arith.constant 0 : i32
    return %c0_i32, %c0_i32_0 : i32, i32
  }
  func.func @transform_13(%arg0: i32) -> (i32, i32) {
    %c0_i32 = arith.constant 0 : i32
    %c0_i32_0 = arith.constant 0 : i32
    %c0_i32_1 = arith.constant 0 : i32
    return %c0_i32, %c0_i32_0 : i32, i32
  }
  func.func @transform_14(%arg0: i32) -> (i32, i32) {
    %c0_i32 = arith.constant 0 : i32
    %c0_i32_0 = arith.constant 0 : i32
    %c0_i32_1 = arith.constant 0 : i32
    return %c0_i32, %c0_i32_0 : i32, i32
  }
  func.func @transform_15(%arg0: i32) -> (i32, i32) {
    %c0_i32 = arith.constant 0 : i32
    %c0_i32_0 = arith.constant 0 : i32
    %c0_i32_1 = arith.constant 0 : i32
    return %c0_i32, %c0_i32_0 : i32, i32
  }
  func.func @transform_16(%arg0: i32) -> (i32, i32) {
    %c0_i32 = arith.constant 0 : i32
    %c0_i32_0 = arith.constant 0 : i32
    %c0_i32_1 = arith.constant 0 : i32
    return %c0_i32, %c0_i32_0 : i32, i32
  }
}

</mosaic_0001>

<llo_original>
// kernel: tile.8
$region0: #{tile.8}
  #allocation0 [shape = 's32[1]{0}', space=sflag, size = 0x4, scoped, tag = 'scoped memory for tile.8']
  %s0 = inlined_call_operand.vmem [shape: f32[8], index: 0, kind: input, shape index: {}]
  %s1 = inlined_call_operand.vmem [shape: f32[16,8], index: 1, kind: output, shape index: {}]
  // Predicated region
  $region2: #{tile.8} parent=0 // pred_check
    _
  $region3: #{tile.8} parent=0 // pred_check_branch
    %3 = sbr.rel (0) target = $region5
  $region4: #{tile.8} parent=0 // pred_region
    _
  $region5: #{tile.8} parent=0 // pred_fallthru
    _
  %v4 = vld [vmem:[%s0] ss:$0 sm:$0xff]
  %5 = vst [vmem:[%s1] sm:$0xff] %v4
  %s6 = scalar_lea.vmem %s1, 8
  %7 = vst [vmem:[%s6] sm:$0xff] %v4

// kernel: tile.0
$region0: #{tile.0}
  %s0 = inlined_call_operand.vmem [shape: f32[16,8], index: 0, kind: input, shape index: {}]
  %s1 = inlined_call_operand.vmem [shape: f32[128,1], index: 1, kind: output, shape index: {}]
  %v2 = vld [vmem:[%s0] sm:$0xff]
  %vm3 = vcmask 7168
  %4 = vst.msk [vmem:[%s1] ss:$8 sm:$0xf] %vm3, %v2
  %5 = vst.msk [vmem:[%s1] ss:$8 sm:$0xf0] %vm3, %v2
  %s6 = scalar_lea.vmem %s0, 8
  %v7 = vld [vmem:[%s6] sm:$0xff]
  %vm8 = vcmask 7168
  %s9 = scalar_lea.vmem %s1, 64
  %10 = vst.msk [vmem:[%s9] ss:$8 sm:$0xf] %vm8, %v7
  %s11 = scalar_lea.vmem %s1, 64
  %12 = vst.msk [vmem:[%s11] ss:$8 sm:$0xf0] %vm8, %v7
  %v13 = vld [vmem:[%s0] sm:$0xff]
  %14 = vrot.lane.b32.xlu0 %v13, 127
  %v15 = vpop.permute.xlu0 %14
  %vm16 = vcmask 7168
  %s17 = scalar_lea.vmem %s1, 1
  %18 = vst.msk [vmem:[%s17] ss:$8 sm:$0xf] %vm16, %v15
  %s19 = scalar_lea.vmem %s1, 1
  %20 = vst.msk [vmem:[%s19] ss:$8 sm:$0xf0] %vm16, %v15
  %s21 = scalar_lea.vmem %s0, 8
  %v22 = vld [vmem:[%s21] sm:$0xff]
  %23 = vrot.lane.b32.xlu0 %v22, 127
  %v24 = vpop.permute.xlu0 %23
  %vm25 = vcmask 7168
  %s26 = scalar_lea.vmem %s1, 65
  %27 = vst.msk [vmem:[%s26] ss:$8 sm:$0xf] %vm25, %v24
  %s28 = scalar_lea.vmem %s1, 65
  %29 = vst.msk [vmem:[%s28] ss:$8 sm:$0xf0] %vm25, %v24
  %v30 = vld [vmem:[%s0] sm:$0xff]
  %31 = vrot.lane.b32.xlu0 %v30, 126
  %v32 = vpop.permute.xlu0 %31
  %vm33 = vcmask 7168
  %s34 = scalar_lea.vmem %s1, 2
  %35 = vst.msk [vmem:[%s34] ss:$8 sm:$0xf] %vm33, %v32
  %s36 = scalar_lea.vmem %s1, 2
  %37 = vst.msk [vmem:[%s36] ss:$8 sm:$0xf0] %vm33, %v32
  %s38 = scalar_lea.vmem %s0, 8
  %v39 = vld [vmem:[%s38] sm:$0xff]
  %40 = vrot.lane.b32.xlu0 %v39, 126
  %v41 = vpop.permute.xlu0 %40
  %vm42 = vcmask 7168
  %s43 = scalar_lea.vmem %s1, 66
  %44 = vst.msk [vmem:[%s43] ss:$8 sm:$0xf] %vm42, %v41
  %s45 = scalar_lea.vmem %s1, 66
  %46 = vst.msk [vmem:[%s45] ss:$8 sm:$0xf0] %vm42, %v41
  %v47 = vld [vmem:[%s0] sm:$0xff]
  %48 = vrot.lane.b32.xlu0 %v47, 125
  %v49 = vpop.permute.xlu0 %48
  %vm50 = vcmask 7168
  %s51 = scalar_lea.vmem %s1, 3
  %52 = vst.msk [vmem:[%s51] ss:$8 sm:$0xf] %vm50, %v49
  %s53 = scalar_lea.vmem %s1, 3
  %54 = vst.msk [vmem:[%s53] ss:$8 sm:$0xf0] %vm50, %v49
  %s55 = scalar_lea.vmem %s0, 8
  %v56 = vld [vmem:[%s55] sm:$0xff]
  %57 = vrot.lane.b32.xlu0 %v56, 125
  %v58 = vpop.permute.xlu0 %57
  %vm59 = vcmask 7168
  %s60 = scalar_lea.vmem %s1, 67
  %61 = vst.msk [vmem:[%s60] ss:$8 sm:$0xf] %vm59, %v58
  %s62 = scalar_lea.vmem %s1, 67
  %63 = vst.msk [vmem:[%s62] ss:$8 sm:$0xf0] %vm59, %v58
  %v64 = vld [vmem:[%s0] sm:$0xff]
  %65 = vrot.lane.b32.xlu0 %v64, 124
  %v66 = vpop.permute.xlu0 %65
  %vm67 = vcmask 7168
  %s68 = scalar_lea.vmem %s1, 4
  %69 = vst.msk [vmem:[%s68] ss:$8 sm:$0xf] %vm67, %v66
  %s70 = scalar_lea.vmem %s1, 4
  %71 = vst.msk [vmem:[%s70] ss:$8 sm:$0xf0] %vm67, %v66
  %s72 = scalar_lea.vmem %s0, 8
  %v73 = vld [vmem:[%s72] sm:$0xff]
  %74 = vrot.lane.b32.xlu0 %v73, 124
  %v75 = vpop.permute.xlu0 %74
  %vm76 = vcmask 7168
  %s77 = scalar_lea.vmem %s1, 68
  %78 = vst.msk [vmem:[%s77] ss:$8 sm:$0xf] %vm76, %v75
  %s79 = scalar_lea.vmem %s1, 68
  %80 = vst.msk [vmem:[%s79] ss:$8 sm:$0xf0] %vm76, %v75
  %v81 = vld [vmem:[%s0] sm:$0xff]
  %82 = vrot.lane.b32.xlu0 %v81, 123
  %v83 = vpop.permute.xlu0 %82
  %vm84 = vcmask 7168
  %s85 = scalar_lea.vmem %s1, 5
  %86 = vst.msk [vmem:[%s85] ss:$8 sm:$0xf] %vm84, %v83
  %s87 = scalar_lea.vmem %s1, 5
  %88 = vst.msk [vmem:[%s87] ss:$8 sm:$0xf0] %vm84, %v83
  %s89 = scalar_lea.vmem %s0, 8
  %v90 = vld [vmem:[%s89] sm:$0xff]
  %91 = vrot.lane.b32.xlu0 %v90, 123
  %v92 = vpop.permute.xlu0 %91
  %vm93 = vcmask 7168
  %s94 = scalar_lea.vmem %s1, 69
  %95 = vst.msk [vmem:[%s94] ss:$8 sm:$0xf] %vm93, %v92
  %s96 = scalar_lea.vmem %s1, 69
  %97 = vst.msk [vmem:[%s96] ss:$8 sm:$0xf0] %vm93, %v92
  %v98 = vld [vmem:[%s0] sm:$0xff]
  %99 = vrot.lane.b32.xlu0 %v98, 122
  %v100 = vpop.permute.xlu0 %99
  %vm101 = vcmask 7168
  %s102 = scalar_lea.vmem %s1, 6
  %103 = vst.msk [vmem:[%s102] ss:$8 sm:$0xf] %vm101, %v100
  %s104 = scalar_lea.vmem %s1, 6
  %105 = vst.msk [vmem:[%s104] ss:$8 sm:$0xf0] %vm101, %v100
  %s106 = scalar_lea.vmem %s0, 8
  %v107 = vld [vmem:[%s106] sm:$0xff]
  %108 = vrot.lane.b32.xlu0 %v107, 122
  %v109 = vpop.permute.xlu0 %108
  %vm110 = vcmask 7168
  %s111 = scalar_lea.vmem %s1, 70
  %112 = vst.msk [vmem:[%s111] ss:$8 sm:$0xf] %vm110, %v109
  %s113 = scalar_lea.vmem %s1, 70
  %114 = vst.msk [vmem:[%s113] ss:$8 sm:$0xf0] %vm110, %v109
  %v115 = vld [vmem:[%s0] sm:$0xff]
  %116 = vrot.lane.b32.xlu0 %v115, 121
  %v117 = vpop.permute.xlu0 %116
  %vm118 = vcmask 7168
  %s119 = scalar_lea.vmem %s1, 7
  %120 = vst.msk [vmem:[%s119] ss:$8 sm:$0xf] %vm118, %v117
  %s121 = scalar_lea.vmem %s1, 7
  %122 = vst.msk [vmem:[%s121] ss:$8 sm:$0xf0] %vm118, %v117
  %s123 = scalar_lea.vmem %s0, 8
  %v124 = vld [vmem:[%s123] sm:$0xff]
  %125 = vrot.lane.b32.xlu0 %v124, 121
  %v126 = vpop.permute.xlu0 %125
  %vm127 = vcmask 7168
  %s128 = scalar_lea.vmem %s1, 71
  %129 = vst.msk [vmem:[%s128] ss:$8 sm:$0xf] %vm127, %v126
  %s130 = scalar_lea.vmem %s1, 71
  %131 = vst.msk [vmem:[%s130] ss:$8 sm:$0xf0] %vm127, %v126

// kernel: word_sequence_forward.1
$region0: #{word_sequence_forward.1}
  #allocation0 [shape = 'u32[]', space=smem, size = 0x4, offset = 0x4, fixed_abs, tag = 'smem constant byte address 0x4 - core index']
  #allocation1 [shape = 'u32[144,128]{1,0:T(1,128)}', space=vmem, size = 0x12000, scoped, tag = 'internal scratch']
  %s0 = inlined_call_operand.vmem [shape: s32[128,1], index: 0, kind: input, shape index: {}]
  %s1 = inlined_call_operand.vmem [shape: s32[8,1], index: 1, kind: input, shape index: {}]
  %s2 = inlined_call_operand.vmem [shape: f32[128,1], index: 2, kind: input, shape index: {}]
  %s3 = inlined_call_operand.vmem [shape: f32[128,32], index: 3, kind: input, shape index: {}]
  %s4 = inlined_call_operand.vmem [shape: bf16[32,64], index: 4, kind: input, shape index: {}]
  %s5 = inlined_call_operand.vmem [shape: f32[1,64], index: 5, kind: input, shape index: {}]
  %s6 = inlined_call_operand.vmem [shape: bf16[2,3,64,64], index: 6, kind: input, shape index: {}]
  %s7 = inlined_call_operand.vmem [shape: f32[2,1,64], index: 7, kind: input, shape index: {}]
  %s8 = inlined_call_operand.vmem [shape: f32[2,1,64], index: 8, kind: input, shape index: {}]
  %s9 = inlined_call_operand.vmem [shape: f32[2,1,64], index: 9, kind: input, shape index: {}]
  %s10 = inlined_call_operand.vmem [shape: bf16[64,128], index: 10, kind: input, shape index: {}]
  %s11 = inlined_call_operand.vmem [shape: f32[32,128], index: 11, kind: input, shape index: {}]
  %s12 = inlined_call_operand.vmem [shape: f32[1,128], index: 12, kind: input, shape index: {}]
  %s13 = inlined_call_operand.vmem [shape: bf16[32,128], index: 13, kind: input, shape index: {}]
  %s14 = inlined_call_operand.vmem [shape: f32[1,128], index: 14, kind: input, shape index: {}]
  %s15 = inlined_call_operand.vmem [shape: f32[128,128], index: 15, kind: output, shape index: {0}]
  %s16 = inlined_call_operand.vmem [shape: f32[128,64], index: 16, kind: output, shape index: {1}]
  %17 = xla_tuple %s15, %s16
  %s18 = sld [smem:[#allocation0]]
  $region78: #{word_sequence_forward.1} parent=0
    _
  %s20 = ssub.s32 1, %s18
  %s21 = scalar_select 0, %s20, %s18
  // Predicated region
  $region2: #{word_sequence_forward.1} parent=0 // pred_check
    _
  $region3: #{word_sequence_forward.1} parent=0 // pred_check_branch
    %23 = sbr.rel (0) target = $region5
  $region4: #{word_sequence_forward.1} parent=0 // pred_region
    _
  $region5: #{word_sequence_forward.1} parent=0 // pred_fallthru
    _
  // Predicated region
  $region6: #{word_sequence_forward.1} parent=0 // pred_check
    _
  $region7: #{word_sequence_forward.1} parent=0 // pred_check_branch
    %25 = sbr.rel (0) target = $region9
  $region8: #{word_sequence_forward.1} parent=0 // pred_region
    _
  $region9: #{word_sequence_forward.1} parent=0 // pred_fallthru
    _
  // Predicated region
  $region10: #{word_sequence_forward.1} parent=0 // pred_check
    _
  $region11: #{word_sequence_forward.1} parent=0 // pred_check_branch
    %27 = sbr.rel (0) target = $region13
  $region12: #{word_sequence_forward.1} parent=0 // pred_region
    _
  $region13: #{word_sequence_forward.1} parent=0 // pred_fallthru
    _
  // Predicated region
  $region14: #{word_sequence_forward.1} parent=0 // pred_check
    _
  $region15: #{word_sequence_forward.1} parent=0 // pred_check_branch
    %29 = sbr.rel (0) target = $region17
  $region16: #{word_sequence_forward.1} parent=0 // pred_region
    _
  $region17: #{word_sequence_forward.1} parent=0 // pred_fallthru
    _
  // Predicated region
  $region18: #{word_sequence_forward.1} parent=0 // pred_check
    _
  $region19: #{word_sequence_forward.1} parent=0 // pred_check_branch
    %31 = sbr.rel (0) target = $region21
  $region20: #{word_sequence_forward.1} parent=0 // pred_region
    _
  $region21: #{word_sequence_forward.1} parent=0 // pred_fallthru
    _
  // Predicated region
  $region22: #{word_sequence_forward.1} parent=0 // pred_check
    _
  $region23: #{word_sequence_forward.1} parent=0 // pred_check_branch
    %33 = sbr.rel (0) target = $region25
  $region24: #{word_sequence_forward.1} parent=0 // pred_region
    _
  $region25: #{word_sequence_forward.1} parent=0 // pred_fallthru
    _
  // Predicated region
  $region26: #{word_sequence_forward.1} parent=0 // pred_check
    _
  $region27: #{word_sequence_forward.1} parent=0 // pred_check_branch
    %35 = sbr.rel (0) target = $region29
  $region28: #{word_sequence_forward.1} parent=0 // pred_region
    _
  $region29: #{word_sequence_forward.1} parent=0 // pred_fallthru
    _
  // Predicated region
  $region30: #{word_sequence_forward.1} parent=0 // pred_check
    _
  $region31: #{word_sequence_forward.1} parent=0 // pred_check_branch
    %37 = sbr.rel (0) target = $region33
  $region32: #{word_sequence_forward.1} parent=0 // pred_region
    _
  $region33: #{word_sequence_forward.1} parent=0 // pred_fallthru
    _
  // Predicated region
  $region34: #{word_sequence_forward.1} parent=0 // pred_check
    _
  $region35: #{word_sequence_forward.1} parent=0 // pred_check_branch
    %39 = sbr.rel (0) target = $region37
  $region36: #{word_sequence_forward.1} parent=0 // pred_region
    _
  $region37: #{word_sequence_forward.1} parent=0 // pred_fallthru
    _
  // Predicated region
  $region38: #{word_sequence_forward.1} parent=0 // pred_check
    _
  $region39: #{word_sequence_forward.1} parent=0 // pred_check_branch
    %41 = sbr.rel (0) target = $region41
  $region40: #{word_sequence_forward.1} parent=0 // pred_region
    _
  $region41: #{word_sequence_forward.1} parent=0 // pred_fallthru
    _
  // Predicated region
  $region42: #{word_sequence_forward.1} parent=0 // pred_check
    _
  $region43: #{word_sequence_forward.1} parent=0 // pred_check_branch
    %43 = sbr.rel (0) target = $region45
  $region44: #{word_sequence_forward.1} parent=0 // pred_region
    _
  $region45: #{word_sequence_forward.1} parent=0 // pred_fallthru
    _
  // Predicated region
  $region46: #{word_sequence_forward.1} parent=0 // pred_check
    _
  $region47: #{word_sequence_forward.1} parent=0 // pred_check_branch
    %45 = sbr.rel (0) target = $region49
  $region48: #{word_sequence_forward.1} parent=0 // pred_region
    _
  $region49: #{word_sequence_forward.1} parent=0 // pred_fallthru
    _
  // Predicated region
  $region50: #{word_sequence_forward.1} parent=0 // pred_check
    _
  $region51: #{word_sequence_forward.1} parent=0 // pred_check_branch
    %47 = sbr.rel (0) target = $region53
  $region52: #{word_sequence_forward.1} parent=0 // pred_region
    _
  $region53: #{word_sequence_forward.1} parent=0 // pred_fallthru
    _
  // Predicated region
  $region54: #{word_sequence_forward.1} parent=0 // pred_check
    _
  $region55: #{word_sequence_forward.1} parent=0 // pred_check_branch
    %49 = sbr.rel (0) target = $region57
  $region56: #{word_sequence_forward.1} parent=0 // pred_region
    _
  $region57: #{word_sequence_forward.1} parent=0 // pred_fallthru
    _
  // Predicated region
  $region58: #{word_sequence_forward.1} parent=0 // pred_check
    _
  $region59: #{word_sequence_forward.1} parent=0 // pred_check_branch
    %51 = sbr.rel (0) target = $region61
  $region60: #{word_sequence_forward.1} parent=0 // pred_region
    _
  $region61: #{word_sequence_forward.1} parent=0 // pred_fallthru
    _
  %v53 = vld [vmem:[%s0] sm:$0xff]
  %v54 = vld [vmem:[%s0 + $0x8] sm:$0xff]
  %v55 = vld [vmem:[%s0 + $0x10] sm:$0xff]
  %v56 = vld [vmem:[%s0 + $0x18] sm:$0xff]
  %v57 = vld [vmem:[%s0 + $0x20] sm:$0xff]
  %v58 = vld [vmem:[%s0 + $0x28] sm:$0xff]
  %v59 = vld [vmem:[%s0 + $0x30] sm:$0xff]
  %v60 = vld [vmem:[%s0 + $0x38] sm:$0xff]
  %v61 = vld [vmem:[%s0 + $0x40] sm:$0xff]
  %v62 = vld [vmem:[%s0 + $0x48] sm:$0xff]
  %v63 = vld [vmem:[%s0 + $0x50] sm:$0xff]
  %v64 = vld [vmem:[%s0 + $0x58] sm:$0xff]
  %v65 = vld [vmem:[%s0 + $0x60] sm:$0xff]
  %v66 = vld [vmem:[%s0 + $0x68] sm:$0xff]
  %v67 = vld [vmem:[%s0 + $0x70] sm:$0xff]
  %v68 = vld [vmem:[%s0 + $0x78] sm:$0xff]
  %v69 = vlaneseq
  %v70 = vand.u32 %v69, 127
  %71 = vset.pattern.permute.xlu0 0
  %72 = vperm.xlu0 %71, %v53
  %v73 = vpop.permute.xlu0 %72
  %74 = vset.pattern.permute.xlu0 0
  %75 = vperm.xlu0 %74, %v54
  %v76 = vpop.permute.xlu0 %75
  %77 = vset.pattern.permute.xlu0 0
  %78 = vperm.xlu0 %77, %v55
  %v79 = vpop.permute.xlu0 %78
  %80 = vset.pattern.permute.xlu0 0
  %81 = vperm.xlu0 %80, %v56
  %v82 = vpop.permute.xlu0 %81
  %83 = vset.pattern.permute.xlu0 0
  %84 = vperm.xlu0 %83, %v57
  %v85 = vpop.permute.xlu0 %84
  %86 = vset.pattern.permute.xlu0 0
  %87 = vperm.xlu0 %86, %v58
  %v88 = vpop.permute.xlu0 %87
  %89 = vset.pattern.permute.xlu0 0
  %90 = vperm.xlu0 %89, %v59
  %v91 = vpop.permute.xlu0 %90
  %92 = vset.pattern.permute.xlu0 0
  %93 = vperm.xlu0 %92, %v60
  %v94 = vpop.permute.xlu0 %93
  %95 = vset.pattern.permute.xlu0 0
  %96 = vperm.xlu0 %95, %v61
  %v97 = vpop.permute.xlu0 %96
  %98 = vset.pattern.permute.xlu0 0
  %99 = vperm.xlu0 %98, %v62
  %v100 = vpop.permute.xlu0 %99
  %101 = vset.pattern.permute.xlu0 0
  %102 = vperm.xlu0 %101, %v63
  %v103 = vpop.permute.xlu0 %102
  %104 = vset.pattern.permute.xlu0 0
  %105 = vperm.xlu0 %104, %v64
  %v106 = vpop.permute.xlu0 %105
  %107 = vset.pattern.permute.xlu0 0
  %108 = vperm.xlu0 %107, %v65
  %v109 = vpop.permute.xlu0 %108
  %110 = vset.pattern.permute.xlu0 0
  %111 = vperm.xlu0 %110, %v66
  %v112 = vpop.permute.xlu0 %111
  %113 = vset.pattern.permute.xlu0 0
  %114 = vperm.xlu0 %113, %v67
  %v115 = vpop.permute.xlu0 %114
  %116 = vset.pattern.permute.xlu0 0
  %117 = vperm.xlu0 %116, %v68
  %v118 = vpop.permute.xlu0 %117
  %vm119 = vcmp.eq.s32.totalorder %v70, %v73
  %vm120 = vcmp.eq.s32.totalorder %v70, %v76
  %vm121 = vcmp.eq.s32.totalorder %v70, %v79
  %vm122 = vcmp.eq.s32.totalorder %v70, %v82
  %vm123 = vcmp.eq.s32.totalorder %v70, %v85
  %vm124 = vcmp.eq.s32.totalorder %v70, %v88
  %vm125 = vcmp.eq.s32.totalorder %v70, %v91
  %vm126 = vcmp.eq.s32.totalorder %v70, %v94
  %vm127 = vcmp.eq.s32.totalorder %v70, %v97
  %vm128 = vcmp.eq.s32.totalorder %v70, %v100
  %vm129 = vcmp.eq.s32.totalorder %v70, %v103
  %vm130 = vcmp.eq.s32.totalorder %v70, %v106
  %vm131 = vcmp.eq.s32.totalorder %v70, %v109
  %vm132 = vcmp.eq.s32.totalorder %v70, %v112
  %vm133 = vcmp.eq.s32.totalorder %v70, %v115
  %vm134 = vcmp.eq.s32.totalorder %v70, %v118
  %v135 = vsel %vm119, 1, 0
  %v136 = vsel %vm120, 1, 0
  %v137 = vsel %vm121, 1, 0
  %v138 = vsel %vm122, 1, 0
  %v139 = vsel %vm123, 1, 0
  %v140 = vsel %vm124, 1, 0
  %v141 = vsel %vm125, 1, 0
  %v142 = vsel %vm126, 1, 0
  %v143 = vsel %vm127, 1, 0
  %v144 = vsel %vm128, 1, 0
  %v145 = vsel %vm129, 1, 0
  %v146 = vsel %vm130, 1, 0
  %v147 = vsel %vm131, 1, 0
  %v148 = vsel %vm132, 1, 0
  %v149 = vsel %vm133, 1, 0
  %v150 = vsel %vm134, 1, 0
  %v151 = vcvt.s32.f32 %v135
  %v152 = vcvt.s32.f32 %v136
  %v153 = vcvt.s32.f32 %v137
  %v154 = vcvt.s32.f32 %v138
  %v155 = vcvt.s32.f32 %v139
  %v156 = vcvt.s32.f32 %v140
  %v157 = vcvt.s32.f32 %v141
  %v158 = vcvt.s32.f32 %v142
  %v159 = vcvt.s32.f32 %v143
  %v160 = vcvt.s32.f32 %v144
  %v161 = vcvt.s32.f32 %v145
  %v162 = vcvt.s32.f32 %v146
  %v163 = vcvt.s32.f32 %v147
  %v164 = vcvt.s32.f32 %v148
  %v165 = vcvt.s32.f32 %v149
  %v166 = vcvt.s32.f32 %v150
  %v167 = vld [vmem:[%s3] sm:$0xff]
  %v168 = vld [vmem:[%s3 + $0x8] sm:$0xff]
  %v169 = vld [vmem:[%s3 + $0x10] sm:$0xff]
  %v170 = vld [vmem:[%s3 + $0x18] sm:$0xff]
  %v171 = vld [vmem:[%s3 + $0x20] sm:$0xff]
  %v172 = vld [vmem:[%s3 + $0x28] sm:$0xff]
  %v173 = vld [vmem:[%s3 + $0x30] sm:$0xff]
  %v174 = vld [vmem:[%s3 + $0x38] sm:$0xff]
  %v175 = vld [vmem:[%s3 + $0x40] sm:$0xff]
  %v176 = vld [vmem:[%s3 + $0x48] sm:$0xff]
  %v177 = vld [vmem:[%s3 + $0x50] sm:$0xff]
  %v178 = vld [vmem:[%s3 + $0x58] sm:$0xff]
  %v179 = vld [vmem:[%s3 + $0x60] sm:$0xff]
  %v180 = vld [vmem:[%s3 + $0x68] sm:$0xff]
  %v181 = vld [vmem:[%s3 + $0x70] sm:$0xff]
  %v182 = vld [vmem:[%s3 + $0x78] sm:$0xff]
  %183 = vmatprep.subr.mxu0 0.0
  %184 = vmatpush1.msra.mxu0 %v182
  %185 = vmatprep.subr.mxu0 0.0
  %186 = vmatpush1.msra.mxu0 %v181
  %187 = vmatprep.subr.mxu0 0.0
  %188 = vmatpush1.msra.mxu0 %v180
  %189 = vmatprep.subr.mxu0 0.0
  %190 = vmatpush1.msra.mxu0 %v179
  %191 = vmatprep.subr.mxu0 0.0
  %192 = vmatpush1.msra.mxu0 %v178
  %193 = vmatprep.subr.mxu0 0.0
  %194 = vmatpush1.msra.mxu0 %v177
  %195 = vmatprep.subr.mxu0 0.0
  %196 = vmatpush1.msra.mxu0 %v176
  %197 = vmatprep.subr.mxu0 0.0
  %198 = vmatpush1.msra.mxu0 %v175
  %199 = vmatprep.subr.mxu0 0.0
  %200 = vmatpush1.msra.mxu0 %v174
  %201 = vmatprep.subr.mxu0 0.0
  %202 = vmatpush1.msra.mxu0 %v173
  %203 = vmatprep.subr.mxu0 0.0
  %204 = vmatpush1.msra.mxu0 %v172
  %205 = vmatprep.subr.mxu0 0.0
  %206 = vmatpush1.msra.mxu0 %v171
  %207 = vmatprep.subr.mxu0 0.0
  %208 = vmatpush1.msra.mxu0 %v170
  %209 = vmatprep.subr.mxu0 0.0
  %210 = vmatpush1.msra.mxu0 %v169
  %211 = vmatprep.subr.mxu0 0.0
  %212 = vmatpush1.msra.mxu0 %v168
  %213 = vmatprep.subr.mxu0 0.0
  %214 = vmatpush1.msra.mxu0 %v167
  %215 = vmatprep.subr.mxu0 0.0
  %216 = vmatpush2.msra.mxu0 0.0
  %217 = vmatprep.subr.mxu0 0.0
  %218 = vmatpush2.msra.mxu0 0.0
  %219 = vmatprep.subr.mxu0 0.0
  %220 = vmatpush2.msra.mxu0 0.0
  %221 = vmatprep.subr.mxu0 0.0
  %222 = vmatpush2.msra.mxu0 0.0
  %223 = vmatprep.subr.mxu0 0.0
  %224 = vmatpush2.msra.mxu0 0.0
  %225 = vmatprep.subr.mxu0 0.0
  %226 = vmatpush2.msra.mxu0 0.0
  %227 = vmatprep.subr.mxu0 0.0
  %228 = vmatpush2.msra.mxu0 0.0
  %229 = vmatprep.subr.mxu0 0.0
  %230 = vmatpush2.msra.mxu0 0.0
  %231 = vmatprep.subr.mxu0 0.0
  %232 = vmatpush2.msra.mxu0 0.0
  %233 = vmatprep.subr.mxu0 0.0
  %234 = vmatpush2.msra.mxu0 0.0
  %235 = vmatprep.subr.mxu0 0.0
  %236 = vmatpush2.msra.mxu0 0.0
  %237 = vmatprep.subr.mxu0 0.0
  %238 = vmatpush2.msra.mxu0 0.0
  %239 = vmatprep.subr.mxu0 0.0
  %240 = vmatpush2.msra.mxu0 0.0
  %241 = vmatprep.subr.mxu0 0.0
  %242 = vmatpush2.msra.mxu0 0.0
  %243 = vmatprep.subr.mxu0 0.0
  %244 = vmatpush2.msra.mxu0 0.0
  %245 = vmatprep.subr.mxu0 0.0
  %246 = vmatpush2.msra.mxu0 0.0
  %247 = vmatprep.mubr.f32.mxu0 0.0
  %248 = vmatmul.mubr.f32.gmra.mxu0 %v151
  %v249 = vpop.f32.mrf.mxu0
  %v250 = vadd.f32 0.0, %v249
  %v251 = vpop.f32.mrf.mxu0
  %252 = vmatprep.mubr.f32.mxu0 0.0
  %253 = vmatmul.mubr.f32.gmra.mxu0 %v152
  %v254 = vpop.f32.mrf.mxu0
  %v255 = vadd.f32 0.0, %v254
  %v256 = vpop.f32.mrf.mxu0
  %257 = vmatprep.mubr.f32.mxu0 0.0
  %258 = vmatmul.mubr.f32.gmra.mxu0 %v153
  %v259 = vpop.f32.mrf.mxu0
  %v260 = vadd.f32 0.0, %v259
  %v261 = vpop.f32.mrf.mxu0
  %262 = vmatprep.mubr.f32.mxu0 0.0
  %263 = vmatmul.mubr.f32.gmra.mxu0 %v154
  %v264 = vpop.f32.mrf.mxu0
  %v265 = vadd.f32 0.0, %v264
  %v266 = vpop.f32.mrf.mxu0
  %267 = vmatprep.mubr.f32.mxu0 0.0
  %268 = vmatmul.mubr.f32.gmra.mxu0 %v155
  %v269 = vpop.f32.mrf.mxu0
  %v270 = vadd.f32 0.0, %v269
  %v271 = vpop.f32.mrf.mxu0
  %272 = vmatprep.mubr.f32.mxu0 0.0
  %273 = vmatmul.mubr.f32.gmra.mxu0 %v156
  %v274 = vpop.f32.mrf.mxu0
  %v275 = vadd.f32 0.0, %v274
  %v276 = vpop.f32.mrf.mxu0
  %277 = vmatprep.mubr.f32.mxu0 0.0
  %278 = vmatmul.mubr.f32.gmra.mxu0 %v157
  %v279 = vpop.f32.mrf.mxu0
  %v280 = vadd.f32 0.0, %v279
  %v281 = vpop.f32.mrf.mxu0
  %282 = vmatprep.mubr.f32.mxu0 0.0
  %283 = vmatmul.mubr.f32.gmra.mxu0 %v158
  %v284 = vpop.f32.mrf.mxu0
  %v285 = vadd.f32 0.0, %v284
  %v286 = vpop.f32.mrf.mxu0
  %287 = vmatprep.mubr.f32.mxu0 0.0
  %288 = vmatmul.mubr.f32.gmra.mxu0 %v159
  %v289 = vpop.f32.mrf.mxu0
  %v290 = vadd.f32 0.0, %v289
  %v291 = vpop.f32.mrf.mxu0
  %292 = vmatprep.mubr.f32.mxu0 0.0
  %293 = vmatmul.mubr.f32.gmra.mxu0 %v160
  %v294 = vpop.f32.mrf.mxu0
  %v295 = vadd.f32 0.0, %v294
  %v296 = vpop.f32.mrf.mxu0
  %297 = vmatprep.mubr.f32.mxu0 0.0
  %298 = vmatmul.mubr.f32.gmra.mxu0 %v161
  %v299 = vpop.f32.mrf.mxu0
  %v300 = vadd.f32 0.0, %v299
  %v301 = vpop.f32.mrf.mxu0
  %302 = vmatprep.mubr.f32.mxu0 0.0
  %303 = vmatmul.mubr.f32.gmra.mxu0 %v162
  %v304 = vpop.f32.mrf.mxu0
  %v305 = vadd.f32 0.0, %v304
  %v306 = vpop.f32.mrf.mxu0
  %307 = vmatprep.mubr.f32.mxu0 0.0
  %308 = vmatmul.mubr.f32.gmra.mxu0 %v163
  %v309 = vpop.f32.mrf.mxu0
  %v310 = vadd.f32 0.0, %v309
  %v311 = vpop.f32.mrf.mxu0
  %312 = vmatprep.mubr.f32.mxu0 0.0
  %313 = vmatmul.mubr.f32.gmra.mxu0 %v164
  %v314 = vpop.f32.mrf.mxu0
  %v315 = vadd.f32 0.0, %v314
  %v316 = vpop.f32.mrf.mxu0
  %317 = vmatprep.mubr.f32.mxu0 0.0
  %318 = vmatmul.mubr.f32.gmra.mxu0 %v165
  %v319 = vpop.f32.mrf.mxu0
  %v320 = vadd.f32 0.0, %v319
  %v321 = vpop.f32.mrf.mxu0
  %322 = vmatprep.mubr.f32.mxu0 0.0
  %323 = vmatmul.mubr.f32.gmra.mxu0 %v166
  %v324 = vpop.f32.mrf.mxu0
  %v325 = vadd.f32 0.0, %v324
  %v326 = vpop.f32.mrf.mxu0
  %327 = vdwg.mxu0
  %v328 = vpack.c.bf16 %v255, %v250
  %v329 = vpack.c.bf16 %v265, %v260
  %v330 = vpack.c.bf16 %v275, %v270
  %v331 = vpack.c.bf16 %v285, %v280
  %v332 = vpack.c.bf16 %v295, %v290
  %v333 = vpack.c.bf16 %v305, %v300
  %v334 = vpack.c.bf16 %v315, %v310
  %v335 = vpack.c.bf16 %v325, %v320
  %v336 = vld [vmem:[%s4] sm:$0xf]
  %v337 = vld [vmem:[%s4 + $0x4] sm:$0xf]
  %v338 = vld [vmem:[%s4 + $0x8] sm:$0xf]
  %v339 = vld [vmem:[%s4 + $0xc] sm:$0xf]
  %v340 = vld [vmem:[%s5] sm:$0x1]
  %v342 = vlaneseq
  %v343 = vshrl.u32 %v342, 7
  %v344 = vsub.s32 0, %v343
  %v345 = vrot.slane %v340, %v344
  %v351 = vunpack.c.l.b16 %v336
  %v352 = vunpack.c.l.b16 %v337
  %v353 = vunpack.c.l.b16 %v338
  %v354 = vunpack.c.l.b16 %v339
  %v355 = vpack.c.b16 %v352, %v351
  %v356 = vpack.c.b16 %v354, %v353
  %vm359 = vcmask 261120
  %v361 = vsel %vm359, %v328, 0
  %v364 = vsel %vm359, %v329, 0
  %v367 = vsel %vm359, %v330, 0
  %v370 = vsel %vm359, %v331, 0
  %v373 = vsel %vm359, %v332, 0
  %v376 = vsel %vm359, %v333, 0
  %v379 = vsel %vm359, %v334, 0
  %v382 = vsel %vm359, %v335, 0
  %384 = vmatprep.subr.bf16.mxu0 0
  %385 = vmatpush1.bf16.msra.mxu0 0
  %386 = vmatprep.subr.bf16.mxu0 0
  %387 = vmatpush1.bf16.msra.mxu0 0
  %388 = vmatprep.subr.bf16.mxu0 0
  %389 = vmatpush1.bf16.msra.mxu0 0
  %390 = vmatprep.subr.bf16.mxu0 0
  %391 = vmatpush1.bf16.msra.mxu0 0
  %392 = vmatprep.subr.bf16.mxu0 0
  %393 = vmatpush1.bf16.msra.mxu0 0
  %394 = vmatprep.subr.bf16.mxu0 0
  %395 = vmatpush1.bf16.msra.mxu0 0
  %396 = vmatprep.subr.bf16.mxu0 0
  %397 = vmatpush1.bf16.msra.mxu0 %v356
  %398 = vmatprep.subr.bf16.mxu0 0
  %399 = vmatpush1.bf16.msra.mxu0 %v355
  %400 = vmatprep.subr.bf16.mxu0 0
  %401 = vmatpush2.bf16.msra.mxu0 0
  %402 = vmatprep.subr.bf16.mxu0 0
  %403 = vmatpush2.bf16.msra.mxu0 0
  %404 = vmatprep.subr.bf16.mxu0 0
  %405 = vmatpush2.bf16.msra.mxu0 0
  %406 = vmatprep.subr.bf16.mxu0 0
  %407 = vmatpush2.bf16.msra.mxu0 0
  %408 = vmatprep.subr.bf16.mxu0 0
  %409 = vmatpush2.bf16.msra.mxu0 0
  %410 = vmatprep.subr.bf16.mxu0 0
  %411 = vmatpush2.bf16.msra.mxu0 0
  %412 = vmatprep.subr.bf16.mxu0 0
  %413 = vmatpush2.bf16.msra.mxu0 0
  %414 = vmatprep.subr.bf16.mxu0 0
  %415 = vmatpush2.bf16.msra.mxu0 0
  %416 = vmatprep.mubr.bf16.mxu0 0
  %417 = vmatmul.mubr.bf16.gmra.mxu0 %v361
  %v418 = vpop.f32.mrf.mxu0
  %v419 = vadd.f32 %v345, %v418
  %v420 = vpop.f32.mrf.mxu0
  %v421 = vpop.f32.mrf.mxu0
  %v422 = vadd.f32 %v345, %v421
  %v423 = vpop.f32.mrf.mxu0
  %424 = vmatprep.mubr.bf16.mxu0 0
  %425 = vmatmul.mubr.bf16.gmra.mxu0 %v364
  %v426 = vpop.f32.mrf.mxu0
  %v427 = vadd.f32 %v345, %v426
  %v428 = vpop.f32.mrf.mxu0
  %v429 = vpop.f32.mrf.mxu0
  %v430 = vadd.f32 %v345, %v429
  %v431 = vpop.f32.mrf.mxu0
  %432 = vmatprep.mubr.bf16.mxu0 0
  %433 = vmatmul.mubr.bf16.gmra.mxu0 %v367
  %v434 = vpop.f32.mrf.mxu0
  %v435 = vadd.f32 %v345, %v434
  %v436 = vpop.f32.mrf.mxu0
  %v437 = vpop.f32.mrf.mxu0
  %v438 = vadd.f32 %v345, %v437
  %v439 = vpop.f32.mrf.mxu0
  %440 = vmatprep.mubr.bf16.mxu0 0
  %441 = vmatmul.mubr.bf16.gmra.mxu0 %v370
  %v442 = vpop.f32.mrf.mxu0
  %v443 = vadd.f32 %v345, %v442
  %v444 = vpop.f32.mrf.mxu0
  %v445 = vpop.f32.mrf.mxu0
  %v446 = vadd.f32 %v345, %v445
  %v447 = vpop.f32.mrf.mxu0
  %448 = vmatprep.mubr.bf16.mxu0 0
  %449 = vmatmul.mubr.bf16.gmra.mxu0 %v373
  %v450 = vpop.f32.mrf.mxu0
  %v451 = vadd.f32 %v345, %v450
  %v452 = vpop.f32.mrf.mxu0
  %v453 = vpop.f32.mrf.mxu0
  %v454 = vadd.f32 %v345, %v453
  %v455 = vpop.f32.mrf.mxu0
  %456 = vmatprep.mubr.bf16.mxu0 0
  %457 = vmatmul.mubr.bf16.gmra.mxu0 %v376
  %v458 = vpop.f32.mrf.mxu0
  %v459 = vadd.f32 %v345, %v458
  %v460 = vpop.f32.mrf.mxu0
  %v461 = vpop.f32.mrf.mxu0
  %v462 = vadd.f32 %v345, %v461
  %v463 = vpop.f32.mrf.mxu0
  %464 = vmatprep.mubr.bf16.mxu0 0
  %465 = vmatmul.mubr.bf16.gmra.mxu0 %v379
  %v466 = vpop.f32.mrf.mxu0
  %v467 = vadd.f32 %v345, %v466
  %v468 = vpop.f32.mrf.mxu0
  %v469 = vpop.f32.mrf.mxu0
  %v470 = vadd.f32 %v345, %v469
  %v471 = vpop.f32.mrf.mxu0
  %472 = vmatprep.mubr.bf16.mxu0 0
  %473 = vmatmul.mubr.bf16.gmra.mxu0 %v382
  %v474 = vpop.f32.mrf.mxu0
  %v475 = vadd.f32 %v345, %v474
  %v476 = vpop.f32.mrf.mxu0
  %v477 = vpop.f32.mrf.mxu0
  %v478 = vadd.f32 %v345, %v477
  %v479 = vpop.f32.mrf.mxu0
  %480 = vdwg.mxu0
  %v481 = vtanh.pop %v419
  %v482 = vtanh.pop %v422
  %v483 = vtanh.pop %v427
  %v484 = vtanh.pop %v430
  %v485 = vtanh.pop %v435
  %v486 = vtanh.pop %v438
  %v487 = vtanh.pop %v443
  %v488 = vtanh.pop %v446
  %v489 = vtanh.pop %v451
  %v490 = vtanh.pop %v454
  %v491 = vtanh.pop %v459
  %v492 = vtanh.pop %v462
  %v493 = vtanh.pop %v467
  %v494 = vtanh.pop %v470
  %v495 = vtanh.pop %v475
  %v496 = vtanh.pop %v478
  %v497 = vlaneseq
  %v498 = vshrl.u32 %v497, 7
  %v499 = vadd.s32 %v498, 8
  %v500 = vadd.s32 %v498, 16
  %v501 = vadd.s32 %v498, 24
  %v502 = vadd.s32 %v498, 32
  %v503 = vadd.s32 %v498, 40
  %v504 = vadd.s32 %v498, 48
  %v505 = vadd.s32 %v498, 56
  %v506 = vadd.s32 %v498, 64
  %v507 = vadd.s32 %v498, 72
  %v508 = vadd.s32 %v498, 80
  %v509 = vadd.s32 %v498, 88
  %v510 = vadd.s32 %v498, 96
  %v511 = vadd.s32 %v498, 104
  %v512 = vadd.s32 %v498, 112
  %v513 = vadd.s32 %v498, 120
  %vm514 = vcmp.lt.s32.totalorder %v498, 8
  %vm515 = vcmp.lt.s32.totalorder %v499, 8
  %vm516 = vcmp.lt.s32.totalorder %v500, 8
  %vm517 = vcmp.lt.s32.totalorder %v501, 8
  %vm518 = vcmp.lt.s32.totalorder %v502, 8
  %vm519 = vcmp.lt.s32.totalorder %v503, 8
  %vm520 = vcmp.lt.s32.totalorder %v504, 8
  %vm521 = vcmp.lt.s32.totalorder %v505, 8
  %vm522 = vcmp.lt.s32.totalorder %v506, 8
  %vm523 = vcmp.lt.s32.totalorder %v507, 8
  %vm524 = vcmp.lt.s32.totalorder %v508, 8
  %vm525 = vcmp.lt.s32.totalorder %v509, 8
  %vm526 = vcmp.lt.s32.totalorder %v510, 8
  %vm527 = vcmp.lt.s32.totalorder %v511, 8
  %vm528 = vcmp.lt.s32.totalorder %v512, 8
  %vm529 = vcmp.lt.s32.totalorder %v513, 8
  %vm530 = vcmp.ge.s32.totalorder %v498, 120
  %vm531 = vcmp.ge.s32.totalorder %v499, 120
  %vm532 = vcmp.ge.s32.totalorder %v500, 120
  %vm533 = vcmp.ge.s32.totalorder %v501, 120
  %vm534 = vcmp.ge.s32.totalorder %v502, 120
  %vm535 = vcmp.ge.s32.totalorder %v503, 120
  %vm536 = vcmp.ge.s32.totalorder %v504, 120
  %vm537 = vcmp.ge.s32.totalorder %v505, 120
  %vm538 = vcmp.ge.s32.totalorder %v506, 120
  %vm539 = vcmp.ge.s32.totalorder %v507, 120
  %vm540 = vcmp.ge.s32.totalorder %v508, 120
  %vm541 = vcmp.ge.s32.totalorder %v509, 120
  %vm542 = vcmp.ge.s32.totalorder %v510, 120
  %vm543 = vcmp.ge.s32.totalorder %v511, 120
  %vm544 = vcmp.ge.s32.totalorder %v512, 120
  %vm545 = vcmp.ge.s32.totalorder %v513, 120
  %v546 = vld [vmem:[%s2] sm:$0xff]
  %v547 = vld [vmem:[%s2 + $0x8] sm:$0xff]
  %v548 = vld [vmem:[%s2 + $0x10] sm:$0xff]
  %v549 = vld [vmem:[%s2 + $0x18] sm:$0xff]
  %v550 = vld [vmem:[%s2 + $0x20] sm:$0xff]
  %v551 = vld [vmem:[%s2 + $0x28] sm:$0xff]
  %v552 = vld [vmem:[%s2 + $0x30] sm:$0xff]
  %v553 = vld [vmem:[%s2 + $0x38] sm:$0xff]
  %v554 = vld [vmem:[%s2 + $0x40] sm:$0xff]
  %v555 = vld [vmem:[%s2 + $0x48] sm:$0xff]
  %v556 = vld [vmem:[%s2 + $0x50] sm:$0xff]
  %v557 = vld [vmem:[%s2 + $0x58] sm:$0xff]
  %v558 = vld [vmem:[%s2 + $0x60] sm:$0xff]
  %v559 = vld [vmem:[%s2 + $0x68] sm:$0xff]
  %v560 = vld [vmem:[%s2 + $0x70] sm:$0xff]
  %v561 = vld [vmem:[%s2 + $0x78] sm:$0xff]
  %v562 = vpack.c.bf16 %v482, %v481
  %v563 = vpack.c.bf16 %v484, %v483
  %v564 = vpack.c.bf16 %v486, %v485
  %v565 = vpack.c.bf16 %v488, %v487
  %v566 = vpack.c.bf16 %v490, %v489
  %v567 = vpack.c.bf16 %v492, %v491
  %v568 = vpack.c.bf16 %v494, %v493
  %v569 = vpack.c.bf16 %v496, %v495
  %v570 = vld [vmem:[%s6] sm:$0xf]
  %v571 = vld [vmem:[%s6 + $0x4] sm:$0xf]
  %v572 = vld [vmem:[%s6 + $0x8] sm:$0xf]
  %v573 = vld [vmem:[%s6 + $0xc] sm:$0xf]
  %v574 = vld [vmem:[%s6 + $0x10] sm:$0xf]
  %v575 = vld [vmem:[%s6 + $0x14] sm:$0xf]
  %v576 = vld [vmem:[%s6 + $0x18] sm:$0xf]
  %v577 = vld [vmem:[%s6 + $0x1c] sm:$0xf]
  %v586 = vunpack.c.l.b16 %v570
  %v587 = vunpack.c.l.b16 %v571
  %v588 = vunpack.c.l.b16 %v572
  %v589 = vunpack.c.l.b16 %v573
  %v590 = vunpack.c.l.b16 %v574
  %v591 = vunpack.c.l.b16 %v575
  %v592 = vunpack.c.l.b16 %v576
  %v593 = vunpack.c.l.b16 %v577
  %v594 = vpack.c.b16 %v587, %v586
  %v595 = vpack.c.b16 %v589, %v588
  %v596 = vpack.c.b16 %v591, %v590
  %v597 = vpack.c.b16 %v593, %v592
  %vm602 = vcmask 523264
  %v604 = vsel %vm602, %v562, 0
  %v607 = vsel %vm602, %v563, 0
  %v610 = vsel %vm602, %v564, 0
  %v613 = vsel %vm602, %v565, 0
  %v616 = vsel %vm602, %v566, 0
  %v619 = vsel %vm602, %v567, 0
  %v622 = vsel %vm602, %v568, 0
  %v625 = vsel %vm602, %v569, 0
  %627 = vmatprep.subr.bf16.mxu0 0
  %628 = vmatpush1.bf16.msra.mxu0 0
  %629 = vmatprep.subr.bf16.mxu0 0
  %630 = vmatpush1.bf16.msra.mxu0 0
  %631 = vmatprep.subr.bf16.mxu0 0
  %632 = vmatpush1.bf16.msra.mxu0 0
  %633 = vmatprep.subr.bf16.mxu0 0
  %634 = vmatpush1.bf16.msra.mxu0 0
  %635 = vmatprep.subr.bf16.mxu0 0
  %636 = vmatpush1.bf16.msra.mxu0 %v597
  %637 = vmatprep.subr.bf16.mxu0 0
  %638 = vmatpush1.bf16.msra.mxu0 %v596
  %639 = vmatprep.subr.bf16.mxu0 0
  %640 = vmatpush1.bf16.msra.mxu0 %v595
  %641 = vmatprep.subr.bf16.mxu0 0
  %642 = vmatpush1.bf16.msra.mxu0 %v594
  %643 = vmatprep.subr.bf16.mxu0 0
  %644 = vmatpush2.bf16.msra.mxu0 0
  %645 = vmatprep.subr.bf16.mxu0 0
  %646 = vmatpush2.bf16.msra.mxu0 0
  %647 = vmatprep.subr.bf16.mxu0 0
  %648 = vmatpush2.bf16.msra.mxu0 0
  %649 = vmatprep.subr.bf16.mxu0 0
  %650 = vmatpush2.bf16.msra.mxu0 0
  %651 = vmatprep.subr.bf16.mxu0 0
  %652 = vmatpush2.bf16.msra.mxu0 0
  %653 = vmatprep.subr.bf16.mxu0 0
  %654 = vmatpush2.bf16.msra.mxu0 0
  %655 = vmatprep.subr.bf16.mxu0 0
  %656 = vmatpush2.bf16.msra.mxu0 0
  %657 = vmatprep.subr.bf16.mxu0 0
  %658 = vmatpush2.bf16.msra.mxu0 0
  %659 = vmatprep.mubr.bf16.mxu0 0
  %660 = vmatmul.mubr.bf16.gmra.mxu0 %v604
  %v661 = vpop.f32.mrf.mxu0
  %v662 = vadd.f32 0.0, %v661
  %v663 = vpop.f32.mrf.mxu0
  %v664 = vpop.f32.mrf.mxu0
  %v665 = vadd.f32 0.0, %v664
  %v666 = vpop.f32.mrf.mxu0
  %667 = vmatprep.mubr.bf16.mxu0 0
  %668 = vmatmul.mubr.bf16.gmra.mxu0 %v607
  %v669 = vpop.f32.mrf.mxu0
  %v670 = vadd.f32 0.0, %v669
  %v671 = vpop.f32.mrf.mxu0
  %v672 = vpop.f32.mrf.mxu0
  %v673 = vadd.f32 0.0, %v672
  %v674 = vpop.f32.mrf.mxu0
  %675 = vmatprep.mubr.bf16.mxu0 0
  %676 = vmatmul.mubr.bf16.gmra.mxu0 %v610
  %v677 = vpop.f32.mrf.mxu0
  %v678 = vadd.f32 0.0, %v677
  %v679 = vpop.f32.mrf.mxu0
  %v680 = vpop.f32.mrf.mxu0
  %v681 = vadd.f32 0.0, %v680
  %v682 = vpop.f32.mrf.mxu0
  %683 = vmatprep.mubr.bf16.mxu0 0
  %684 = vmatmul.mubr.bf16.gmra.mxu0 %v613
  %v685 = vpop.f32.mrf.mxu0
  %v686 = vadd.f32 0.0, %v685
  %v687 = vpop.f32.mrf.mxu0
  %v688 = vpop.f32.mrf.mxu0
  %v689 = vadd.f32 0.0, %v688
  %v690 = vpop.f32.mrf.mxu0
  %691 = vmatprep.mubr.bf16.mxu0 0
  %692 = vmatmul.mubr.bf16.gmra.mxu0 %v616
  %v693 = vpop.f32.mrf.mxu0
  %v694 = vadd.f32 0.0, %v693
  %v695 = vpop.f32.mrf.mxu0
  %v696 = vpop.f32.mrf.mxu0
  %v697 = vadd.f32 0.0, %v696
  %v698 = vpop.f32.mrf.mxu0
  %699 = vmatprep.mubr.bf16.mxu0 0
  %700 = vmatmul.mubr.bf16.gmra.mxu0 %v619
  %v701 = vpop.f32.mrf.mxu0
  %v702 = vadd.f32 0.0, %v701
  %v703 = vpop.f32.mrf.mxu0
  %v704 = vpop.f32.mrf.mxu0
  %v705 = vadd.f32 0.0, %v704
  %v706 = vpop.f32.mrf.mxu0
  %707 = vmatprep.mubr.bf16.mxu0 0
  %708 = vmatmul.mubr.bf16.gmra.mxu0 %v622
  %v709 = vpop.f32.mrf.mxu0
  %v710 = vadd.f32 0.0, %v709
  %v711 = vpop.f32.mrf.mxu0
  %v712 = vpop.f32.mrf.mxu0
  %v713 = vadd.f32 0.0, %v712
  %v714 = vpop.f32.mrf.mxu0
  %715 = vmatprep.mubr.bf16.mxu0 0
  %716 = vmatmul.mubr.bf16.gmra.mxu0 %v625
  %v717 = vpop.f32.mrf.mxu0
  %v718 = vadd.f32 0.0, %v717
  %v719 = vpop.f32.mrf.mxu0
  %v720 = vpop.f32.mrf.mxu0
  %v721 = vadd.f32 0.0, %v720
  %v722 = vpop.f32.mrf.mxu0
  %723 = vdwg.mxu0
  %s724 = scalar_lea.vmem %s6, 32
  %v725 = vld [vmem:[%s724] sm:$0xf]
  %v726 = vld [vmem:[%s724 + $0x4] sm:$0xf]
  %v727 = vld [vmem:[%s724 + $0x8] sm:$0xf]
  %v728 = vld [vmem:[%s724 + $0xc] sm:$0xf]
  %v729 = vld [vmem:[%s724 + $0x10] sm:$0xf]
  %v730 = vld [vmem:[%s724 + $0x14] sm:$0xf]
  %v731 = vld [vmem:[%s724 + $0x18] sm:$0xf]
  %v732 = vld [vmem:[%s724 + $0x1c] sm:$0xf]
  %s733 = scalar_lea.vmem %s6, 64
  %v734 = vld [vmem:[%s733] sm:$0xf]
  %v735 = vld [vmem:[%s733 + $0x4] sm:$0xf]
  %v736 = vld [vmem:[%s733 + $0x8] sm:$0xf]
  %v737 = vld [vmem:[%s733 + $0xc] sm:$0xf]
  %v738 = vld [vmem:[%s733 + $0x10] sm:$0xf]
  %v739 = vld [vmem:[%s733 + $0x14] sm:$0xf]
  %v740 = vld [vmem:[%s733 + $0x18] sm:$0xf]
  %v741 = vld [vmem:[%s733 + $0x1c] sm:$0xf]
  %v750 = vunpack.c.l.b16 %v734
  %v751 = vunpack.c.l.b16 %v735
  %v752 = vunpack.c.l.b16 %v736
  %v753 = vunpack.c.l.b16 %v737
  %v754 = vunpack.c.l.b16 %v738
  %v755 = vunpack.c.l.b16 %v739
  %v756 = vunpack.c.l.b16 %v740
  %v757 = vunpack.c.l.b16 %v741
  %v758 = vpack.c.b16 %v751, %v750
  %v759 = vpack.c.b16 %v753, %v752
  %v760 = vpack.c.b16 %v755, %v754
  %v761 = vpack.c.b16 %v757, %v756
  %766 = vmatprep.subr.bf16.mxu0 0
  %767 = vmatpush1.bf16.msra.mxu0 0
  %768 = vmatprep.subr.bf16.mxu0 0
  %769 = vmatpush1.bf16.msra.mxu0 0
  %770 = vmatprep.subr.bf16.mxu0 0
  %771 = vmatpush1.bf16.msra.mxu0 0
  %772 = vmatprep.subr.bf16.mxu0 0
  %773 = vmatpush1.bf16.msra.mxu0 0
  %774 = vmatprep.subr.bf16.mxu0 0
  %775 = vmatpush1.bf16.msra.mxu0 %v761
  %776 = vmatprep.subr.bf16.mxu0 0
  %777 = vmatpush1.bf16.msra.mxu0 %v760
  %778 = vmatprep.subr.bf16.mxu0 0
  %779 = vmatpush1.bf16.msra.mxu0 %v759
  %780 = vmatprep.subr.bf16.mxu0 0
  %781 = vmatpush1.bf16.msra.mxu0 %v758
  %782 = vmatprep.subr.bf16.mxu0 0
  %783 = vmatpush2.bf16.msra.mxu0 0
  %784 = vmatprep.subr.bf16.mxu0 0
  %785 = vmatpush2.bf16.msra.mxu0 0
  %786 = vmatprep.subr.bf16.mxu0 0
  %787 = vmatpush2.bf16.msra.mxu0 0
  %788 = vmatprep.subr.bf16.mxu0 0
  %789 = vmatpush2.bf16.msra.mxu0 0
  %790 = vmatprep.subr.bf16.mxu0 0
  %791 = vmatpush2.bf16.msra.mxu0 0
  %792 = vmatprep.subr.bf16.mxu0 0
  %793 = vmatpush2.bf16.msra.mxu0 0
  %794 = vmatprep.subr.bf16.mxu0 0
  %795 = vmatpush2.bf16.msra.mxu0 0
  %796 = vmatprep.subr.bf16.mxu0 0
  %797 = vmatpush2.bf16.msra.mxu0 0
  %798 = vmatprep.mubr.bf16.mxu0 0
  %799 = vmatmul.mubr.bf16.gmra.mxu0 %v604
  %v800 = vpop.f32.mrf.mxu0
  %v801 = vadd.f32 0.0, %v800
  %v802 = vpop.f32.mrf.mxu0
  %v803 = vpop.f32.mrf.mxu0
  %v804 = vadd.f32 0.0, %v803
  %v805 = vpop.f32.mrf.mxu0
  %806 = vmatprep.mubr.bf16.mxu0 0
  %807 = vmatmul.mubr.bf16.gmra.mxu0 %v607
  %v808 = vpop.f32.mrf.mxu0
  %v809 = vadd.f32 0.0, %v808
  %v810 = vpop.f32.mrf.mxu0
  %v811 = vpop.f32.mrf.mxu0
  %v812 = vadd.f32 0.0, %v811
  %v813 = vpop.f32.mrf.mxu0
  %814 = vmatprep.mubr.bf16.mxu0 0
  %815 = vmatmul.mubr.bf16.gmra.mxu0 %v610
  %v816 = vpop.f32.mrf.mxu0
  %v817 = vadd.f32 0.0, %v816
  %v818 = vpop.f32.mrf.mxu0
  %v819 = vpop.f32.mrf.mxu0
  %v820 = vadd.f32 0.0, %v819
  %v821 = vpop.f32.mrf.mxu0
  %822 = vmatprep.mubr.bf16.mxu0 0
  %823 = vmatmul.mubr.bf16.gmra.mxu0 %v613
  %v824 = vpop.f32.mrf.mxu0
  %v825 = vadd.f32 0.0, %v824
  %v826 = vpop.f32.mrf.mxu0
  %v827 = vpop.f32.mrf.mxu0
  %v828 = vadd.f32 0.0, %v827
  %v829 = vpop.f32.mrf.mxu0
  %830 = vmatprep.mubr.bf16.mxu0 0
  %831 = vmatmul.mubr.bf16.gmra.mxu0 %v616
  %v832 = vpop.f32.mrf.mxu0
  %v833 = vadd.f32 0.0, %v832
  %v834 = vpop.f32.mrf.mxu0
  %v835 = vpop.f32.mrf.mxu0
  %v836 = vadd.f32 0.0, %v835
  %v837 = vpop.f32.mrf.mxu0
  %838 = vmatprep.mubr.bf16.mxu0 0
  %839 = vmatmul.mubr.bf16.gmra.mxu0 %v619
  %v840 = vpop.f32.mrf.mxu0
  %v841 = vadd.f32 0.0, %v840
  %v842 = vpop.f32.mrf.mxu0
  %v843 = vpop.f32.mrf.mxu0
  %v844 = vadd.f32 0.0, %v843
  %v845 = vpop.f32.mrf.mxu0
  %846 = vmatprep.mubr.bf16.mxu0 0
  %847 = vmatmul.mubr.bf16.gmra.mxu0 %v622
  %v848 = vpop.f32.mrf.mxu0
  %v849 = vadd.f32 0.0, %v848
  %v850 = vpop.f32.mrf.mxu0
  %v851 = vpop.f32.mrf.mxu0
  %v852 = vadd.f32 0.0, %v851
  %v853 = vpop.f32.mrf.mxu0
  %854 = vmatprep.mubr.bf16.mxu0 0
  %855 = vmatmul.mubr.bf16.gmra.mxu0 %v625
  %v856 = vpop.f32.mrf.mxu0
  %v857 = vadd.f32 0.0, %v856
  %v858 = vpop.f32.mrf.mxu0
  %v859 = vpop.f32.mrf.mxu0
  %v860 = vadd.f32 0.0, %v859
  %v861 = vpop.f32.mrf.mxu0
  %862 = vdwg.mxu0
  %v863 = vsel %vm514, 1, 0
  %v864 = vsel %vm515, 1, 0
  %v865 = vsel %vm516, 1, 0
  %v866 = vsel %vm517, 1, 0
  %v867 = vsel %vm518, 1, 0
  %v868 = vsel %vm519, 1, 0
  %v869 = vsel %vm520, 1, 0
  %v870 = vsel %vm521, 1, 0
  %v871 = vsel %vm522, 1, 0
  %v872 = vsel %vm523, 1, 0
  %v873 = vsel %vm524, 1, 0
  %v874 = vsel %vm525, 1, 0
  %v875 = vsel %vm526, 1, 0
  %v876 = vsel %vm527, 1, 0
  %v877 = vsel %vm528, 1, 0
  %v878 = vsel %vm529, 1, 0
  %vm879 = vcmp.eq.s32.totalorder %v863, 1
  %vm880 = vcmp.eq.s32.totalorder %v864, 1
  %vm881 = vcmp.eq.s32.totalorder %v865, 1
  %vm882 = vcmp.eq.s32.totalorder %v866, 1
  %vm883 = vcmp.eq.s32.totalorder %v867, 1
  %vm884 = vcmp.eq.s32.totalorder %v868, 1
  %vm885 = vcmp.eq.s32.totalorder %v869, 1
  %vm886 = vcmp.eq.s32.totalorder %v870, 1
  %vm887 = vcmp.eq.s32.totalorder %v871, 1
  %vm888 = vcmp.eq.s32.totalorder %v872, 1
  %vm889 = vcmp.eq.s32.totalorder %v873, 1
  %vm890 = vcmp.eq.s32.totalorder %v874, 1
  %vm891 = vcmp.eq.s32.totalorder %v875, 1
  %vm892 = vcmp.eq.s32.totalorder %v876, 1
  %vm893 = vcmp.eq.s32.totalorder %v877, 1
  %vm894 = vcmp.eq.s32.totalorder %v878, 1
  %v895 = vsel %vm879, 0.0, %v721
  %v896 = vsel %vm880, 0.0, %v662
  %v897 = vsel %vm881, 0.0, %v665
  %v898 = vsel %vm882, 0.0, %v670
  %v899 = vsel %vm883, 0.0, %v673
  %v900 = vsel %vm884, 0.0, %v678
  %v901 = vsel %vm885, 0.0, %v681
  %v902 = vsel %vm886, 0.0, %v686
  %v903 = vsel %vm887, 0.0, %v689
  %v904 = vsel %vm888, 0.0, %v694
  %v905 = vsel %vm889, 0.0, %v697
  %v906 = vsel %vm890, 0.0, %v702
  %v907 = vsel %vm891, 0.0, %v705
  %v908 = vsel %vm892, 0.0, %v710
  %v909 = vsel %vm893, 0.0, %v713
  %v910 = vsel %vm894, 0.0, %v718
  %v919 = vunpack.c.l.b16 %v725
  %v920 = vunpack.c.l.b16 %v726
  %v921 = vunpack.c.l.b16 %v727
  %v922 = vunpack.c.l.b16 %v728
  %v923 = vunpack.c.l.b16 %v729
  %v924 = vunpack.c.l.b16 %v730
  %v925 = vunpack.c.l.b16 %v731
  %v926 = vunpack.c.l.b16 %v732
  %v927 = vpack.c.b16 %v920, %v919
  %v928 = vpack.c.b16 %v922, %v921
  %v929 = vpack.c.b16 %v924, %v923
  %v930 = vpack.c.b16 %v926, %v925
  %935 = vmatprep.subr.bf16.mxu0 0
  %936 = vmatpush1.bf16.msra.mxu0 0
  %937 = vmatprep.subr.bf16.mxu0 0
  %938 = vmatpush1.bf16.msra.mxu0 0
  %939 = vmatprep.subr.bf16.mxu0 0
  %940 = vmatpush1.bf16.msra.mxu0 0
  %941 = vmatprep.subr.bf16.mxu0 0
  %942 = vmatpush1.bf16.msra.mxu0 0
  %943 = vmatprep.subr.bf16.mxu0 0
  %944 = vmatpush1.bf16.msra.mxu0 %v930
  %945 = vmatprep.subr.bf16.mxu0 0
  %946 = vmatpush1.bf16.msra.mxu0 %v929
  %947 = vmatprep.subr.bf16.mxu0 0
  %948 = vmatpush1.bf16.msra.mxu0 %v928
  %949 = vmatprep.subr.bf16.mxu0 0
  %950 = vmatpush1.bf16.msra.mxu0 %v927
  %951 = vmatprep.subr.bf16.mxu0 0
  %952 = vmatpush2.bf16.msra.mxu0 0
  %953 = vmatprep.subr.bf16.mxu0 0
  %954 = vmatpush2.bf16.msra.mxu0 0
  %955 = vmatprep.subr.bf16.mxu0 0
  %956 = vmatpush2.bf16.msra.mxu0 0
  %957 = vmatprep.subr.bf16.mxu0 0
  %958 = vmatpush2.bf16.msra.mxu0 0
  %959 = vmatprep.subr.bf16.mxu0 0
  %960 = vmatpush2.bf16.msra.mxu0 0
  %961 = vmatprep.subr.bf16.mxu0 0
  %962 = vmatpush2.bf16.msra.mxu0 0
  %963 = vmatprep.subr.bf16.mxu0 0
  %964 = vmatpush2.bf16.msra.mxu0 0
  %965 = vmatprep.subr.bf16.mxu0 0
  %966 = vmatpush2.bf16.msra.mxu0 0
  %967 = vmatprep.mubr.bf16.mxu0 0
  %968 = vmatmul.mubr.bf16.gmra.mxu0 %v604
  %v969 = vpop.f32.mrf.mxu0
  %v970 = vadd.f32 %v895, %v969
  %v971 = vpop.f32.mrf.mxu0
  %v972 = vpop.f32.mrf.mxu0
  %v973 = vadd.f32 %v896, %v972
  %v974 = vpop.f32.mrf.mxu0
  %975 = vmatprep.mubr.bf16.mxu0 0
  %976 = vmatmul.mubr.bf16.gmra.mxu0 %v607
  %v977 = vpop.f32.mrf.mxu0
  %v978 = vadd.f32 %v897, %v977
  %v979 = vpop.f32.mrf.mxu0
  %v980 = vpop.f32.mrf.mxu0
  %v981 = vadd.f32 %v898, %v980
  %v982 = vpop.f32.mrf.mxu0
  %983 = vmatprep.mubr.bf16.mxu0 0
  %984 = vmatmul.mubr.bf16.gmra.mxu0 %v610
  %v985 = vpop.f32.mrf.mxu0
  %v986 = vadd.f32 %v899, %v985
  %v987 = vpop.f32.mrf.mxu0
  %v988 = vpop.f32.mrf.mxu0
  %v989 = vadd.f32 %v900, %v988
  %v990 = vpop.f32.mrf.mxu0
  %991 = vmatprep.mubr.bf16.mxu0 0
  %992 = vmatmul.mubr.bf16.gmra.mxu0 %v613
  %v993 = vpop.f32.mrf.mxu0
  %v994 = vadd.f32 %v901, %v993
  %v995 = vpop.f32.mrf.mxu0
  %v996 = vpop.f32.mrf.mxu0
  %v997 = vadd.f32 %v902, %v996
  %v998 = vpop.f32.mrf.mxu0
  %999 = vmatprep.mubr.bf16.mxu0 0
  %1000 = vmatmul.mubr.bf16.gmra.mxu0 %v616
  %v1001 = vpop.f32.mrf.mxu0
  %v1002 = vadd.f32 %v903, %v1001
  %v1003 = vpop.f32.mrf.mxu0
  %v1004 = vpop.f32.mrf.mxu0
  %v1005 = vadd.f32 %v904, %v1004
  %v1006 = vpop.f32.mrf.mxu0
  %1007 = vmatprep.mubr.bf16.mxu0 0
  %1008 = vmatmul.mubr.bf16.gmra.mxu0 %v619
  %v1009 = vpop.f32.mrf.mxu0
  %v1010 = vadd.f32 %v905, %v1009
  %v1011 = vpop.f32.mrf.mxu0
  %v1012 = vpop.f32.mrf.mxu0
  %v1013 = vadd.f32 %v906, %v1012
  %v1014 = vpop.f32.mrf.mxu0
  %1015 = vmatprep.mubr.bf16.mxu0 0
  %1016 = vmatmul.mubr.bf16.gmra.mxu0 %v622
  %v1017 = vpop.f32.mrf.mxu0
  %v1018 = vadd.f32 %v907, %v1017
  %v1019 = vpop.f32.mrf.mxu0
  %v1020 = vpop.f32.mrf.mxu0
  %v1021 = vadd.f32 %v908, %v1020
  %v1022 = vpop.f32.mrf.mxu0
  %1023 = vmatprep.mubr.bf16.mxu0 0
  %1024 = vmatmul.mubr.bf16.gmra.mxu0 %v625
  %v1025 = vpop.f32.mrf.mxu0
  %v1026 = vadd.f32 %v909, %v1025
  %v1027 = vpop.f32.mrf.mxu0
  %v1028 = vpop.f32.mrf.mxu0
  %v1029 = vadd.f32 %v910, %v1028
  %v1030 = vpop.f32.mrf.mxu0
  %1031 = vdwg.mxu0
  %v1032 = vsel %vm530, 1, 0
  %v1033 = vsel %vm531, 1, 0
  %v1034 = vsel %vm532, 1, 0
  %v1035 = vsel %vm533, 1, 0
  %v1036 = vsel %vm534, 1, 0
  %v1037 = vsel %vm535, 1, 0
  %v1038 = vsel %vm536, 1, 0
  %v1039 = vsel %vm537, 1, 0
  %v1040 = vsel %vm538, 1, 0
  %v1041 = vsel %vm539, 1, 0
  %v1042 = vsel %vm540, 1, 0
  %v1043 = vsel %vm541, 1, 0
  %v1044 = vsel %vm542, 1, 0
  %v1045 = vsel %vm543, 1, 0
  %v1046 = vsel %vm544, 1, 0
  %v1047 = vsel %vm545, 1, 0
  %vm1048 = vcmp.eq.s32.totalorder %v1032, 1
  %vm1049 = vcmp.eq.s32.totalorder %v1033, 1
  %vm1050 = vcmp.eq.s32.totalorder %v1034, 1
  %vm1051 = vcmp.eq.s32.totalorder %v1035, 1
  %vm1052 = vcmp.eq.s32.totalorder %v1036, 1
  %vm1053 = vcmp.eq.s32.totalorder %v1037, 1
  %vm1054 = vcmp.eq.s32.totalorder %v1038, 1
  %vm1055 = vcmp.eq.s32.totalorder %v1039, 1
  %vm1056 = vcmp.eq.s32.totalorder %v1040, 1
  %vm1057 = vcmp.eq.s32.totalorder %v1041, 1
  %vm1058 = vcmp.eq.s32.totalorder %v1042, 1
  %vm1059 = vcmp.eq.s32.totalorder %v1043, 1
  %vm1060 = vcmp.eq.s32.totalorder %v1044, 1
  %vm1061 = vcmp.eq.s32.totalorder %v1045, 1
  %vm1062 = vcmp.eq.s32.totalorder %v1046, 1
  %vm1063 = vcmp.eq.s32.totalorder %v1047, 1
  %v1064 = vsel %vm1048, 0.0, %v804
  %v1065 = vsel %vm1049, 0.0, %v809
  %v1066 = vsel %vm1050, 0.0, %v812
  %v1067 = vsel %vm1051, 0.0, %v817
  %v1068 = vsel %vm1052, 0.0, %v820
  %v1069 = vsel %vm1053, 0.0, %v825
  %v1070 = vsel %vm1054, 0.0, %v828
  %v1071 = vsel %vm1055, 0.0, %v833
  %v1072 = vsel %vm1056, 0.0, %v836
  %v1073 = vsel %vm1057, 0.0, %v841
  %v1074 = vsel %vm1058, 0.0, %v844
  %v1075 = vsel %vm1059, 0.0, %v849
  %v1076 = vsel %vm1060, 0.0, %v852
  %v1077 = vsel %vm1061, 0.0, %v857
  %v1078 = vsel %vm1062, 0.0, %v860
  %v1079 = vsel %vm1063, 0.0, %v801
  %v1080 = vadd.f32 %v970, %v1064
  %v1081 = vadd.f32 %v973, %v1065
  %v1082 = vadd.f32 %v978, %v1066
  %v1083 = vadd.f32 %v981, %v1067
  %v1084 = vadd.f32 %v986, %v1068
  %v1085 = vadd.f32 %v989, %v1069
  %v1086 = vadd.f32 %v994, %v1070
  %v1087 = vadd.f32 %v997, %v1071
  %v1088 = vadd.f32 %v1002, %v1072
  %v1089 = vadd.f32 %v1005, %v1073
  %v1090 = vadd.f32 %v1010, %v1074
  %v1091 = vadd.f32 %v1013, %v1075
  %v1092 = vadd.f32 %v1018, %v1076
  %v1093 = vadd.f32 %v1021, %v1077
  %v1094 = vadd.f32 %v1026, %v1078
  %v1095 = vadd.f32 %v1029, %v1079
  %v1096 = vld [vmem:[%s7] sm:$0x1]
  %v1098 = vlaneseq
  %v1099 = vshrl.u32 %v1098, 7
  %v1100 = vsub.s32 0, %v1099
  %v1101 = vrot.slane %v1096, %v1100
  %v1103 = vadd.f32 %v1080, %v1101
  %v1104 = vadd.f32 %v1081, %v1101
  %v1105 = vadd.f32 %v1082, %v1101
  %v1106 = vadd.f32 %v1083, %v1101
  %v1107 = vadd.f32 %v1084, %v1101
  %v1108 = vadd.f32 %v1085, %v1101
  %v1109 = vadd.f32 %v1086, %v1101
  %v1110 = vadd.f32 %v1087, %v1101
  %v1111 = vadd.f32 %v1088, %v1101
  %v1112 = vadd.f32 %v1089, %v1101
  %v1113 = vadd.f32 %v1090, %v1101
  %v1114 = vadd.f32 %v1091, %v1101
  %v1115 = vadd.f32 %v1092, %v1101
  %v1116 = vadd.f32 %v1093, %v1101
  %v1117 = vadd.f32 %v1094, %v1101
  %v1118 = vadd.f32 %v1095, %v1101
  %v1119 = vmax.f32 %v1103, 0.0
  %v1120 = vmax.f32 %v1104, 0.0
  %v1121 = vmax.f32 %v1105, 0.0
  %v1122 = vmax.f32 %v1106, 0.0
  %v1123 = vmax.f32 %v1107, 0.0
  %v1124 = vmax.f32 %v1108, 0.0
  %v1125 = vmax.f32 %v1109, 0.0
  %v1126 = vmax.f32 %v1110, 0.0
  %v1127 = vmax.f32 %v1111, 0.0
  %v1128 = vmax.f32 %v1112, 0.0
  %v1129 = vmax.f32 %v1113, 0.0
  %v1130 = vmax.f32 %v1114, 0.0
  %v1131 = vmax.f32 %v1115, 0.0
  %v1132 = vmax.f32 %v1116, 0.0
  %v1133 = vmax.f32 %v1117, 0.0
  %v1134 = vmax.f32 %v1118, 0.0
  %1136 = vset.pattern.permute.xlu0 0
  %1137 = vperm.xlu0 %1136, %v546
  %v1138 = vpop.permute.xlu0 %1137
  %1141 = vset.pattern.permute.xlu0 0
  %1142 = vperm.xlu0 %1141, %v547
  %v1143 = vpop.permute.xlu0 %1142
  %1146 = vset.pattern.permute.xlu0 0
  %1147 = vperm.xlu0 %1146, %v548
  %v1148 = vpop.permute.xlu0 %1147
  %1151 = vset.pattern.permute.xlu0 0
  %1152 = vperm.xlu0 %1151, %v549
  %v1153 = vpop.permute.xlu0 %1152
  %1156 = vset.pattern.permute.xlu0 0
  %1157 = vperm.xlu0 %1156, %v550
  %v1158 = vpop.permute.xlu0 %1157
  %1161 = vset.pattern.permute.xlu0 0
  %1162 = vperm.xlu0 %1161, %v551
  %v1163 = vpop.permute.xlu0 %1162
  %1166 = vset.pattern.permute.xlu0 0
  %1167 = vperm.xlu0 %1166, %v552
  %v1168 = vpop.permute.xlu0 %1167
  %1171 = vset.pattern.permute.xlu0 0
  %1172 = vperm.xlu0 %1171, %v553
  %v1173 = vpop.permute.xlu0 %1172
  %1176 = vset.pattern.permute.xlu0 0
  %1177 = vperm.xlu0 %1176, %v554
  %v1178 = vpop.permute.xlu0 %1177
  %1181 = vset.pattern.permute.xlu0 0
  %1182 = vperm.xlu0 %1181, %v555
  %v1183 = vpop.permute.xlu0 %1182
  %1186 = vset.pattern.permute.xlu0 0
  %1187 = vperm.xlu0 %1186, %v556
  %v1188 = vpop.permute.xlu0 %1187
  %1191 = vset.pattern.permute.xlu0 0
  %1192 = vperm.xlu0 %1191, %v557
  %v1193 = vpop.permute.xlu0 %1192
  %1196 = vset.pattern.permute.xlu0 0
  %1197 = vperm.xlu0 %1196, %v558
  %v1198 = vpop.permute.xlu0 %1197
  %1201 = vset.pattern.permute.xlu0 0
  %1202 = vperm.xlu0 %1201, %v559
  %v1203 = vpop.permute.xlu0 %1202
  %1206 = vset.pattern.permute.xlu0 0
  %1207 = vperm.xlu0 %1206, %v560
  %v1208 = vpop.permute.xlu0 %1207
  %1211 = vset.pattern.permute.xlu0 0
  %1212 = vperm.xlu0 %1211, %v561
  %v1213 = vpop.permute.xlu0 %1212
  %v1215 = vmul.f32 %v1119, %v1138
  %v1216 = vmul.f32 %v1120, %v1143
  %v1217 = vmul.f32 %v1121, %v1148
  %v1218 = vmul.f32 %v1122, %v1153
  %v1219 = vmul.f32 %v1123, %v1158
  %v1220 = vmul.f32 %v1124, %v1163
  %v1221 = vmul.f32 %v1125, %v1168
  %v1222 = vmul.f32 %v1126, %v1173
  %v1223 = vmul.f32 %v1127, %v1178
  %v1224 = vmul.f32 %v1128, %v1183
  %v1225 = vmul.f32 %v1129, %v1188
  %v1226 = vmul.f32 %v1130, %v1193
  %v1227 = vmul.f32 %v1131, %v1198
  %v1228 = vmul.f32 %v1132, %v1203
  %v1229 = vmul.f32 %v1133, %v1208
  %v1230 = vmul.f32 %v1134, %v1213
  %v1231 = vsel %vm602, %v1215, 0.0
  %v1232 = vsel %vm602, %v1216, 0.0
  %v1233 = vadd.f32 %v1231, %v1232
  %v1234 = vsel %vm602, %v1217, 0.0
  %v1235 = vadd.f32 %v1233, %v1234
  %v1236 = vsel %vm602, %v1218, 0.0
  %v1237 = vadd.f32 %v1235, %v1236
  %v1238 = vsel %vm602, %v1219, 0.0
  %v1239 = vadd.f32 %v1237, %v1238
  %v1240 = vsel %vm602, %v1220, 0.0
  %v1241 = vadd.f32 %v1239, %v1240
  %v1242 = vsel %vm602, %v1221, 0.0
  %v1243 = vadd.f32 %v1241, %v1242
  %v1244 = vsel %vm602, %v1222, 0.0
  %v1245 = vadd.f32 %v1243, %v1244
  %v1246 = vsel %vm602, %v1223, 0.0
  %v1247 = vadd.f32 %v1245, %v1246
  %v1248 = vsel %vm602, %v1224, 0.0
  %v1249 = vadd.f32 %v1247, %v1248
  %v1250 = vsel %vm602, %v1225, 0.0
  %v1251 = vadd.f32 %v1249, %v1250
  %v1252 = vsel %vm602, %v1226, 0.0
  %v1253 = vadd.f32 %v1251, %v1252
  %v1254 = vsel %vm602, %v1227, 0.0
  %v1255 = vadd.f32 %v1253, %v1254
  %v1256 = vsel %vm602, %v1228, 0.0
  %v1257 = vadd.f32 %v1255, %v1256
  %v1258 = vsel %vm602, %v1229, 0.0
  %v1259 = vadd.f32 %v1257, %v1258
  %v1260 = vsel %vm602, %v1230, 0.0
  %v1261 = vadd.f32 %v1259, %v1260
  %v1262 = vrot.slane %v1261, 4
  %v1263 = vadd.f32 %v1261, %v1262
  %v1264 = vrot.slane %v1263, 2
  %v1265 = vadd.f32 %v1263, %v1264
  %v1266 = vrot.slane %v1265, 1
  %v1267 = vadd.f32 %v1265, %v1266
  %v1268 = vmul.f32 %v1267, 0.03125
  %v1269 = vmul.f32 %v1215, %v1119
  %v1270 = vmul.f32 %v1216, %v1120
  %v1271 = vmul.f32 %v1217, %v1121
  %v1272 = vmul.f32 %v1218, %v1122
  %v1273 = vmul.f32 %v1219, %v1123
  %v1274 = vmul.f32 %v1220, %v1124
  %v1275 = vmul.f32 %v1221, %v1125
  %v1276 = vmul.f32 %v1222, %v1126
  %v1277 = vmul.f32 %v1223, %v1127
  %v1278 = vmul.f32 %v1224, %v1128
  %v1279 = vmul.f32 %v1225, %v1129
  %v1280 = vmul.f32 %v1226, %v1130
  %v1281 = vmul.f32 %v1227, %v1131
  %v1282 = vmul.f32 %v1228, %v1132
  %v1283 = vmul.f32 %v1229, %v1133
  %v1284 = vmul.f32 %v1230, %v1134
  %v1285 = vsel %vm602, %v1269, 0.0
  %v1286 = vsel %vm602, %v1270, 0.0
  %v1287 = vadd.f32 %v1285, %v1286
  %v1288 = vsel %vm602, %v1271, 0.0
  %v1289 = vadd.f32 %v1287, %v1288
  %v1290 = vsel %vm602, %v1272, 0.0
  %v1291 = vadd.f32 %v1289, %v1290
  %v1292 = vsel %vm602, %v1273, 0.0
  %v1293 = vadd.f32 %v1291, %v1292
  %v1294 = vsel %vm602, %v1274, 0.0
  %v1295 = vadd.f32 %v1293, %v1294
  %v1296 = vsel %vm602, %v1275, 0.0
  %v1297 = vadd.f32 %v1295, %v1296
  %v1298 = vsel %vm602, %v1276, 0.0
  %v1299 = vadd.f32 %v1297, %v1298
  %v1300 = vsel %vm602, %v1277, 0.0
  %v1301 = vadd.f32 %v1299, %v1300
  %v1302 = vsel %vm602, %v1278, 0.0
  %v1303 = vadd.f32 %v1301, %v1302
  %v1304 = vsel %vm602, %v1279, 0.0
  %v1305 = vadd.f32 %v1303, %v1304
  %v1306 = vsel %vm602, %v1280, 0.0
  %v1307 = vadd.f32 %v1305, %v1306
  %v1308 = vsel %vm602, %v1281, 0.0
  %v1309 = vadd.f32 %v1307, %v1308
  %v1310 = vsel %vm602, %v1282, 0.0
  %v1311 = vadd.f32 %v1309, %v1310
  %v1312 = vsel %vm602, %v1283, 0.0
  %v1313 = vadd.f32 %v1311, %v1312
  %v1314 = vsel %vm602, %v1284, 0.0
  %v1315 = vadd.f32 %v1313, %v1314
  %v1316 = vrot.slane %v1315, 4
  %v1317 = vadd.f32 %v1315, %v1316
  %v1318 = vrot.slane %v1317, 2
  %v1319 = vadd.f32 %v1317, %v1318
  %v1320 = vrot.slane %v1319, 1
  %v1321 = vadd.f32 %v1319, %v1320
  %v1322 = vmul.f32 %v1321, 0.03125
  %v1323 = vmul.f32 %v1268, %v1268
  %v1324 = vsub.f32 %v1322, %v1323
  %v1325 = vld [vmem:[%s8] sm:$0x1]
  %v1326 = vadd.f32 %v1324, 1e-05
  %v1327 = vrsqrt.pop %v1326
  %v1328 = vmul.f32 %v1325, %v1327
  %v1329 = vld [vmem:[%s9] sm:$0x1]
  %v1330 = vmul.f32 %v1268, %v1328
  %v1331 = vsub.f32 %v1329, %v1330
  %v1333 = vlaneseq
  %v1334 = vshrl.u32 %v1333, 7
  %v1335 = vsub.s32 0, %v1334
  %v1336 = vrot.slane %v1328, %v1335
  %v1338 = vmul.f32 %v1119, %v1336
  %v1339 = vmul.f32 %v1120, %v1336
  %v1340 = vmul.f32 %v1121, %v1336
  %v1341 = vmul.f32 %v1122, %v1336
  %v1342 = vmul.f32 %v1123, %v1336
  %v1343 = vmul.f32 %v1124, %v1336
  %v1344 = vmul.f32 %v1125, %v1336
  %v1345 = vmul.f32 %v1126, %v1336
  %v1346 = vmul.f32 %v1127, %v1336
  %v1347 = vmul.f32 %v1128, %v1336
  %v1348 = vmul.f32 %v1129, %v1336
  %v1349 = vmul.f32 %v1130, %v1336
  %v1350 = vmul.f32 %v1131, %v1336
  %v1351 = vmul.f32 %v1132, %v1336
  %v1352 = vmul.f32 %v1133, %v1336
  %v1353 = vmul.f32 %v1134, %v1336
  %v1355 = vlaneseq
  %v1356 = vshrl.u32 %v1355, 7
  %v1357 = vsub.s32 0, %v1356
  %v1358 = vrot.slane %v1331, %v1357
  %v1360 = vadd.f32 %v1338, %v1358
  %v1361 = vadd.f32 %v1339, %v1358
  %v1362 = vadd.f32 %v1340, %v1358
  %v1363 = vadd.f32 %v1341, %v1358
  %v1364 = vadd.f32 %v1342, %v1358
  %v1365 = vadd.f32 %v1343, %v1358
  %v1366 = vadd.f32 %v1344, %v1358
  %v1367 = vadd.f32 %v1345, %v1358
  %v1368 = vadd.f32 %v1346, %v1358
  %v1369 = vadd.f32 %v1347, %v1358
  %v1370 = vadd.f32 %v1348, %v1358
  %v1371 = vadd.f32 %v1349, %v1358
  %v1372 = vadd.f32 %v1350, %v1358
  %v1373 = vadd.f32 %v1351, %v1358
  %v1374 = vadd.f32 %v1352, %v1358
  %v1375 = vadd.f32 %v1353, %v1358
  %v1376 = vpack.c.bf16 %v1361, %v1360
  %v1377 = vpack.c.bf16 %v1363, %v1362
  %v1378 = vpack.c.bf16 %v1365, %v1364
  %v1379 = vpack.c.bf16 %v1367, %v1366
  %v1380 = vpack.c.bf16 %v1369, %v1368
  %v1381 = vpack.c.bf16 %v1371, %v1370
  %v1382 = vpack.c.bf16 %v1373, %v1372
  %v1383 = vpack.c.bf16 %v1375, %v1374
  %s1384 = scalar_lea.vmem %s6, 96
  %v1385 = vld [vmem:[%s1384] sm:$0xf]
  %v1386 = vld [vmem:[%s1384 + $0x4] sm:$0xf]
  %v1387 = vld [vmem:[%s1384 + $0x8] sm:$0xf]
  %v1388 = vld [vmem:[%s1384 + $0xc] sm:$0xf]
  %v1389 = vld [vmem:[%s1384 + $0x10] sm:$0xf]
  %v1390 = vld [vmem:[%s1384 + $0x14] sm:$0xf]
  %v1391 = vld [vmem:[%s1384 + $0x18] sm:$0xf]
  %v1392 = vld [vmem:[%s1384 + $0x1c] sm:$0xf]
  %v1401 = vunpack.c.l.b16 %v1385
  %v1402 = vunpack.c.l.b16 %v1386
  %v1403 = vunpack.c.l.b16 %v1387
  %v1404 = vunpack.c.l.b16 %v1388
  %v1405 = vunpack.c.l.b16 %v1389
  %v1406 = vunpack.c.l.b16 %v1390
  %v1407 = vunpack.c.l.b16 %v1391
  %v1408 = vunpack.c.l.b16 %v1392
  %v1409 = vpack.c.b16 %v1402, %v1401
  %v1410 = vpack.c.b16 %v1404, %v1403
  %v1411 = vpack.c.b16 %v1406, %v1405
  %v1412 = vpack.c.b16 %v1408, %v1407
  %v1418 = vsel %vm602, %v1376, 0
  %v1421 = vsel %vm602, %v1377, 0
  %v1424 = vsel %vm602, %v1378, 0
  %v1427 = vsel %vm602, %v1379, 0
  %v1430 = vsel %vm602, %v1380, 0
  %v1433 = vsel %vm602, %v1381, 0
  %v1436 = vsel %vm602, %v1382, 0
  %v1439 = vsel %vm602, %v1383, 0
  %1441 = vmatprep.subr.bf16.mxu0 0
  %1442 = vmatpush1.bf16.msra.mxu0 0
  %1443 = vmatprep.subr.bf16.mxu0 0
  %1444 = vmatpush1.bf16.msra.mxu0 0
  %1445 = vmatprep.subr.bf16.mxu0 0
  %1446 = vmatpush1.bf16.msra.mxu0 0
  %1447 = vmatprep.subr.bf16.mxu0 0
  %1448 = vmatpush1.bf16.msra.mxu0 0
  %1449 = vmatprep.subr.bf16.mxu0 0
  %1450 = vmatpush1.bf16.msra.mxu0 %v1412
  %1451 = vmatprep.subr.bf16.mxu0 0
  %1452 = vmatpush1.bf16.msra.mxu0 %v1411
  %1453 = vmatprep.subr.bf16.mxu0 0
  %1454 = vmatpush1.bf16.msra.mxu0 %v1410
  %1455 = vmatprep.subr.bf16.mxu0 0
  %1456 = vmatpush1.bf16.msra.mxu0 %v1409
  %1457 = vmatprep.subr.bf16.mxu0 0
  %1458 = vmatpush2.bf16.msra.mxu0 0
  %1459 = vmatprep.subr.bf16.mxu0 0
  %1460 = vmatpush2.bf16.msra.mxu0 0
  %1461 = vmatprep.subr.bf16.mxu0 0
  %1462 = vmatpush2.bf16.msra.mxu0 0
  %1463 = vmatprep.subr.bf16.mxu0 0
  %1464 = vmatpush2.bf16.msra.mxu0 0
  %1465 = vmatprep.subr.bf16.mxu0 0
  %1466 = vmatpush2.bf16.msra.mxu0 0
  %1467 = vmatprep.subr.bf16.mxu0 0
  %1468 = vmatpush2.bf16.msra.mxu0 0
  %1469 = vmatprep.subr.bf16.mxu0 0
  %1470 = vmatpush2.bf16.msra.mxu0 0
  %1471 = vmatprep.subr.bf16.mxu0 0
  %1472 = vmatpush2.bf16.msra.mxu0 0
  %1473 = vmatprep.mubr.bf16.mxu0 0
  %1474 = vmatmul.mubr.bf16.gmra.mxu0 %v1418
  %v1475 = vpop.f32.mrf.mxu0
  %v1476 = vadd.f32 0.0, %v1475
  %v1477 = vpop.f32.mrf.mxu0
  %v1478 = vpop.f32.mrf.mxu0
  %v1479 = vadd.f32 0.0, %v1478
  %v1480 = vpop.f32.mrf.mxu0
  %1481 = vmatprep.mubr.bf16.mxu0 0
  %1482 = vmatmul.mubr.bf16.gmra.mxu0 %v1421
  %v1483 = vpop.f32.mrf.mxu0
  %v1484 = vadd.f32 0.0, %v1483
  %v1485 = vpop.f32.mrf.mxu0
  %v1486 = vpop.f32.mrf.mxu0
  %v1487 = vadd.f32 0.0, %v1486
  %v1488 = vpop.f32.mrf.mxu0
  %1489 = vmatprep.mubr.bf16.mxu0 0
  %1490 = vmatmul.mubr.bf16.gmra.mxu0 %v1424
  %v1491 = vpop.f32.mrf.mxu0
  %v1492 = vadd.f32 0.0, %v1491
  %v1493 = vpop.f32.mrf.mxu0
  %v1494 = vpop.f32.mrf.mxu0
  %v1495 = vadd.f32 0.0, %v1494
  %v1496 = vpop.f32.mrf.mxu0
  %1497 = vmatprep.mubr.bf16.mxu0 0
  %1498 = vmatmul.mubr.bf16.gmra.mxu0 %v1427
  %v1499 = vpop.f32.mrf.mxu0
  %v1500 = vadd.f32 0.0, %v1499
  %v1501 = vpop.f32.mrf.mxu0
  %v1502 = vpop.f32.mrf.mxu0
  %v1503 = vadd.f32 0.0, %v1502
  %v1504 = vpop.f32.mrf.mxu0
  %1505 = vmatprep.mubr.bf16.mxu0 0
  %1506 = vmatmul.mubr.bf16.gmra.mxu0 %v1430
  %v1507 = vpop.f32.mrf.mxu0
  %v1508 = vadd.f32 0.0, %v1507
  %v1509 = vpop.f32.mrf.mxu0
  %v1510 = vpop.f32.mrf.mxu0
  %v1511 = vadd.f32 0.0, %v1510
  %v1512 = vpop.f32.mrf.mxu0
  %1513 = vmatprep.mubr.bf16.mxu0 0
  %1514 = vmatmul.mubr.bf16.gmra.mxu0 %v1433
  %v1515 = vpop.f32.mrf.mxu0
  %v1516 = vadd.f32 0.0, %v1515
  %v1517 = vpop.f32.mrf.mxu0
  %v1518 = vpop.f32.mrf.mxu0
  %v1519 = vadd.f32 0.0, %v1518
  %v1520 = vpop.f32.mrf.mxu0
  %1521 = vmatprep.mubr.bf16.mxu0 0
  %1522 = vmatmul.mubr.bf16.gmra.mxu0 %v1436
  %v1523 = vpop.f32.mrf.mxu0
  %v1524 = vadd.f32 0.0, %v1523
  %v1525 = vpop.f32.mrf.mxu0
  %v1526 = vpop.f32.mrf.mxu0
  %v1527 = vadd.f32 0.0, %v1526
  %v1528 = vpop.f32.mrf.mxu0
  %1529 = vmatprep.mubr.bf16.mxu0 0
  %1530 = vmatmul.mubr.bf16.gmra.mxu0 %v1439
  %v1531 = vpop.f32.mrf.mxu0
  %v1532 = vadd.f32 0.0, %v1531
  %v1533 = vpop.f32.mrf.mxu0
  %v1534 = vpop.f32.mrf.mxu0
  %v1535 = vadd.f32 0.0, %v1534
  %v1536 = vpop.f32.mrf.mxu0
  %1537 = vdwg.mxu0
  %s1538 = scalar_lea.vmem %s6, 128
  %v1539 = vld [vmem:[%s1538] sm:$0xf]
  %v1540 = vld [vmem:[%s1538 + $0x4] sm:$0xf]
  %v1541 = vld [vmem:[%s1538 + $0x8] sm:$0xf]
  %v1542 = vld [vmem:[%s1538 + $0xc] sm:$0xf]
  %v1543 = vld [vmem:[%s1538 + $0x10] sm:$0xf]
  %v1544 = vld [vmem:[%s1538 + $0x14] sm:$0xf]
  %v1545 = vld [vmem:[%s1538 + $0x18] sm:$0xf]
  %v1546 = vld [vmem:[%s1538 + $0x1c] sm:$0xf]
  %s1547 = scalar_lea.vmem %s6, 160
  %v1548 = vld [vmem:[%s1547] sm:$0xf]
  %v1549 = vld [vmem:[%s1547 + $0x4] sm:$0xf]
  %v1550 = vld [vmem:[%s1547 + $0x8] sm:$0xf]
  %v1551 = vld [vmem:[%s1547 + $0xc] sm:$0xf]
  %v1552 = vld [vmem:[%s1547 + $0x10] sm:$0xf]
  %v1553 = vld [vmem:[%s1547 + $0x14] sm:$0xf]
  %v1554 = vld [vmem:[%s1547 + $0x18] sm:$0xf]
  %v1555 = vld [vmem:[%s1547 + $0x1c] sm:$0xf]
  %v1564 = vunpack.c.l.b16 %v1548
  %v1565 = vunpack.c.l.b16 %v1549
  %v1566 = vunpack.c.l.b16 %v1550
  %v1567 = vunpack.c.l.b16 %v1551
  %v1568 = vunpack.c.l.b16 %v1552
  %v1569 = vunpack.c.l.b16 %v1553
  %v1570 = vunpack.c.l.b16 %v1554
  %v1571 = vunpack.c.l.b16 %v1555
  %v1572 = vpack.c.b16 %v1565, %v1564
  %v1573 = vpack.c.b16 %v1567, %v1566
  %v1574 = vpack.c.b16 %v1569, %v1568
  %v1575 = vpack.c.b16 %v1571, %v1570
  %1580 = vmatprep.subr.bf16.mxu0 0
  %1581 = vmatpush1.bf16.msra.mxu0 0
  %1582 = vmatprep.subr.bf16.mxu0 0
  %1583 = vmatpush1.bf16.msra.mxu0 0
  %1584 = vmatprep.subr.bf16.mxu0 0
  %1585 = vmatpush1.bf16.msra.mxu0 0
  %1586 = vmatprep.subr.bf16.mxu0 0
  %1587 = vmatpush1.bf16.msra.mxu0 0
  %1588 = vmatprep.subr.bf16.mxu0 0
  %1589 = vmatpush1.bf16.msra.mxu0 %v1575
  %1590 = vmatprep.subr.bf16.mxu0 0
  %1591 = vmatpush1.bf16.msra.mxu0 %v1574
  %1592 = vmatprep.subr.bf16.mxu0 0
  %1593 = vmatpush1.bf16.msra.mxu0 %v1573
  %1594 = vmatprep.subr.bf16.mxu0 0
  %1595 = vmatpush1.bf16.msra.mxu0 %v1572
  %1596 = vmatprep.subr.bf16.mxu0 0
  %1597 = vmatpush2.bf16.msra.mxu0 0
  %1598 = vmatprep.subr.bf16.mxu0 0
  %1599 = vmatpush2.bf16.msra.mxu0 0
  %1600 = vmatprep.subr.bf16.mxu0 0
  %1601 = vmatpush2.bf16.msra.mxu0 0
  %1602 = vmatprep.subr.bf16.mxu0 0
  %1603 = vmatpush2.bf16.msra.mxu0 0
  %1604 = vmatprep.subr.bf16.mxu0 0
  %1605 = vmatpush2.bf16.msra.mxu0 0
  %1606 = vmatprep.subr.bf16.mxu0 0
  %1607 = vmatpush2.bf16.msra.mxu0 0
  %1608 = vmatprep.subr.bf16.mxu0 0
  %1609 = vmatpush2.bf16.msra.mxu0 0
  %1610 = vmatprep.subr.bf16.mxu0 0
  %1611 = vmatpush2.bf16.msra.mxu0 0
  %1612 = vmatprep.mubr.bf16.mxu0 0
  %1613 = vmatmul.mubr.bf16.gmra.mxu0 %v1418
  %v1614 = vpop.f32.mrf.mxu0
  %v1615 = vadd.f32 0.0, %v1614
  %v1616 = vpop.f32.mrf.mxu0
  %v1617 = vpop.f32.mrf.mxu0
  %v1618 = vadd.f32 0.0, %v1617
  %v1619 = vpop.f32.mrf.mxu0
  %1620 = vmatprep.mubr.bf16.mxu0 0
  %1621 = vmatmul.mubr.bf16.gmra.mxu0 %v1421
  %v1622 = vpop.f32.mrf.mxu0
  %v1623 = vadd.f32 0.0, %v1622
  %v1624 = vpop.f32.mrf.mxu0
  %v1625 = vpop.f32.mrf.mxu0
  %v1626 = vadd.f32 0.0, %v1625
  %v1627 = vpop.f32.mrf.mxu0
  %1628 = vmatprep.mubr.bf16.mxu0 0
  %1629 = vmatmul.mubr.bf16.gmra.mxu0 %v1424
  %v1630 = vpop.f32.mrf.mxu0
  %v1631 = vadd.f32 0.0, %v1630
  %v1632 = vpop.f32.mrf.mxu0
  %v1633 = vpop.f32.mrf.mxu0
  %v1634 = vadd.f32 0.0, %v1633
  %v1635 = vpop.f32.mrf.mxu0
  %1636 = vmatprep.mubr.bf16.mxu0 0
  %1637 = vmatmul.mubr.bf16.gmra.mxu0 %v1427
  %v1638 = vpop.f32.mrf.mxu0
  %v1639 = vadd.f32 0.0, %v1638
  %v1640 = vpop.f32.mrf.mxu0
  %v1641 = vpop.f32.mrf.mxu0
  %v1642 = vadd.f32 0.0, %v1641
  %v1643 = vpop.f32.mrf.mxu0
  %1644 = vmatprep.mubr.bf16.mxu0 0
  %1645 = vmatmul.mubr.bf16.gmra.mxu0 %v1430
  %v1646 = vpop.f32.mrf.mxu0
  %v1647 = vadd.f32 0.0, %v1646
  %v1648 = vpop.f32.mrf.mxu0
  %v1649 = vpop.f32.mrf.mxu0
  %v1650 = vadd.f32 0.0, %v1649
  %v1651 = vpop.f32.mrf.mxu0
  %1652 = vmatprep.mubr.bf16.mxu0 0
  %1653 = vmatmul.mubr.bf16.gmra.mxu0 %v1433
  %v1654 = vpop.f32.mrf.mxu0
  %v1655 = vadd.f32 0.0, %v1654
  %v1656 = vpop.f32.mrf.mxu0
  %v1657 = vpop.f32.mrf.mxu0
  %v1658 = vadd.f32 0.0, %v1657
  %v1659 = vpop.f32.mrf.mxu0
  %1660 = vmatprep.mubr.bf16.mxu0 0
  %1661 = vmatmul.mubr.bf16.gmra.mxu0 %v1436
  %v1662 = vpop.f32.mrf.mxu0
  %v1663 = vadd.f32 0.0, %v1662
  %v1664 = vpop.f32.mrf.mxu0
  %v1665 = vpop.f32.mrf.mxu0
  %v1666 = vadd.f32 0.0, %v1665
  %v1667 = vpop.f32.mrf.mxu0
  %1668 = vmatprep.mubr.bf16.mxu0 0
  %1669 = vmatmul.mubr.bf16.gmra.mxu0 %v1439
  %v1670 = vpop.f32.mrf.mxu0
  %v1671 = vadd.f32 0.0, %v1670
  %v1672 = vpop.f32.mrf.mxu0
  %v1673 = vpop.f32.mrf.mxu0
  %v1674 = vadd.f32 0.0, %v1673
  %v1675 = vpop.f32.mrf.mxu0
  %1676 = vdwg.mxu0
  %v1677 = vsel %vm879, 0.0, %v1535
  %v1678 = vsel %vm880, 0.0, %v1476
  %v1679 = vsel %vm881, 0.0, %v1479
  %v1680 = vsel %vm882, 0.0, %v1484
  %v1681 = vsel %vm883, 0.0, %v1487
  %v1682 = vsel %vm884, 0.0, %v1492
  %v1683 = vsel %vm885, 0.0, %v1495
  %v1684 = vsel %vm886, 0.0, %v1500
  %v1685 = vsel %vm887, 0.0, %v1503
  %v1686 = vsel %vm888, 0.0, %v1508
  %v1687 = vsel %vm889, 0.0, %v1511
  %v1688 = vsel %vm890, 0.0, %v1516
  %v1689 = vsel %vm891, 0.0, %v1519
  %v1690 = vsel %vm892, 0.0, %v1524
  %v1691 = vsel %vm893, 0.0, %v1527
  %v1692 = vsel %vm894, 0.0, %v1532
  %v1701 = vunpack.c.l.b16 %v1539
  %v1702 = vunpack.c.l.b16 %v1540
  %v1703 = vunpack.c.l.b16 %v1541
  %v1704 = vunpack.c.l.b16 %v1542
  %v1705 = vunpack.c.l.b16 %v1543
  %v1706 = vunpack.c.l.b16 %v1544
  %v1707 = vunpack.c.l.b16 %v1545
  %v1708 = vunpack.c.l.b16 %v1546
  %v1709 = vpack.c.b16 %v1702, %v1701
  %v1710 = vpack.c.b16 %v1704, %v1703
  %v1711 = vpack.c.b16 %v1706, %v1705
  %v1712 = vpack.c.b16 %v1708, %v1707
  %1717 = vmatprep.subr.bf16.mxu0 0
  %1718 = vmatpush1.bf16.msra.mxu0 0
  %1719 = vmatprep.subr.bf16.mxu0 0
  %1720 = vmatpush1.bf16.msra.mxu0 0
  %1721 = vmatprep.subr.bf16.mxu0 0
  %1722 = vmatpush1.bf16.msra.mxu0 0
  %1723 = vmatprep.subr.bf16.mxu0 0
  %1724 = vmatpush1.bf16.msra.mxu0 0
  %1725 = vmatprep.subr.bf16.mxu0 0
  %1726 = vmatpush1.bf16.msra.mxu0 %v1712
  %1727 = vmatprep.subr.bf16.mxu0 0
  %1728 = vmatpush1.bf16.msra.mxu0 %v1711
  %1729 = vmatprep.subr.bf16.mxu0 0
  %1730 = vmatpush1.bf16.msra.mxu0 %v1710
  %1731 = vmatprep.subr.bf16.mxu0 0
  %1732 = vmatpush1.bf16.msra.mxu0 %v1709
  %1733 = vmatprep.subr.bf16.mxu0 0
  %1734 = vmatpush2.bf16.msra.mxu0 0
  %1735 = vmatprep.subr.bf16.mxu0 0
  %1736 = vmatpush2.bf16.msra.mxu0 0
  %1737 = vmatprep.subr.bf16.mxu0 0
  %1738 = vmatpush2.bf16.msra.mxu0 0
  %1739 = vmatprep.subr.bf16.mxu0 0
  %1740 = vmatpush2.bf16.msra.mxu0 0
  %1741 = vmatprep.subr.bf16.mxu0 0
  %1742 = vmatpush2.bf16.msra.mxu0 0
  %1743 = vmatprep.subr.bf16.mxu0 0
  %1744 = vmatpush2.bf16.msra.mxu0 0
  %1745 = vmatprep.subr.bf16.mxu0 0
  %1746 = vmatpush2.bf16.msra.mxu0 0
  %1747 = vmatprep.subr.bf16.mxu0 0
  %1748 = vmatpush2.bf16.msra.mxu0 0
  %1749 = vmatprep.mubr.bf16.mxu0 0
  %1750 = vmatmul.mubr.bf16.gmra.mxu0 %v1418
  %v1751 = vpop.f32.mrf.mxu0
  %v1752 = vadd.f32 %v1677, %v1751
  %v1753 = vpop.f32.mrf.mxu0
  %v1754 = vpop.f32.mrf.mxu0
  %v1755 = vadd.f32 %v1678, %v1754
  %v1756 = vpop.f32.mrf.mxu0
  %1757 = vmatprep.mubr.bf16.mxu0 0
  %1758 = vmatmul.mubr.bf16.gmra.mxu0 %v1421
  %v1759 = vpop.f32.mrf.mxu0
  %v1760 = vadd.f32 %v1679, %v1759
  %v1761 = vpop.f32.mrf.mxu0
  %v1762 = vpop.f32.mrf.mxu0
  %v1763 = vadd.f32 %v1680, %v1762
  %v1764 = vpop.f32.mrf.mxu0
  %1765 = vmatprep.mubr.bf16.mxu0 0
  %1766 = vmatmul.mubr.bf16.gmra.mxu0 %v1424
  %v1767 = vpop.f32.mrf.mxu0
  %v1768 = vadd.f32 %v1681, %v1767
  %v1769 = vpop.f32.mrf.mxu0
  %v1770 = vpop.f32.mrf.mxu0
  %v1771 = vadd.f32 %v1682, %v1770
  %v1772 = vpop.f32.mrf.mxu0
  %1773 = vmatprep.mubr.bf16.mxu0 0
  %1774 = vmatmul.mubr.bf16.gmra.mxu0 %v1427
  %v1775 = vpop.f32.mrf.mxu0
  %v1776 = vadd.f32 %v1683, %v1775
  %v1777 = vpop.f32.mrf.mxu0
  %v1778 = vpop.f32.mrf.mxu0
  %v1779 = vadd.f32 %v1684, %v1778
  %v1780 = vpop.f32.mrf.mxu0
  %1781 = vmatprep.mubr.bf16.mxu0 0
  %1782 = vmatmul.mubr.bf16.gmra.mxu0 %v1430
  %v1783 = vpop.f32.mrf.mxu0
  %v1784 = vadd.f32 %v1685, %v1783
  %v1785 = vpop.f32.mrf.mxu0
  %v1786 = vpop.f32.mrf.mxu0
  %v1787 = vadd.f32 %v1686, %v1786
  %v1788 = vpop.f32.mrf.mxu0
  %1789 = vmatprep.mubr.bf16.mxu0 0
  %1790 = vmatmul.mubr.bf16.gmra.mxu0 %v1433
  %v1791 = vpop.f32.mrf.mxu0
  %v1792 = vadd.f32 %v1687, %v1791
  %v1793 = vpop.f32.mrf.mxu0
  %v1794 = vpop.f32.mrf.mxu0
  %v1795 = vadd.f32 %v1688, %v1794
  %v1796 = vpop.f32.mrf.mxu0
  %1797 = vmatprep.mubr.bf16.mxu0 0
  %1798 = vmatmul.mubr.bf16.gmra.mxu0 %v1436
  %v1799 = vpop.f32.mrf.mxu0
  %v1800 = vadd.f32 %v1689, %v1799
  %v1801 = vpop.f32.mrf.mxu0
  %v1802 = vpop.f32.mrf.mxu0
  %v1803 = vadd.f32 %v1690, %v1802
  %v1804 = vpop.f32.mrf.mxu0
  %1805 = vmatprep.mubr.bf16.mxu0 0
  %1806 = vmatmul.mubr.bf16.gmra.mxu0 %v1439
  %v1807 = vpop.f32.mrf.mxu0
  %v1808 = vadd.f32 %v1691, %v1807
  %v1809 = vpop.f32.mrf.mxu0
  %v1810 = vpop.f32.mrf.mxu0
  %v1811 = vadd.f32 %v1692, %v1810
  %v1812 = vpop.f32.mrf.mxu0
  %1813 = vdwg.mxu0
  %v1814 = vsel %vm1048, 0.0, %v1618
  %v1815 = vsel %vm1049, 0.0, %v1623
  %v1816 = vsel %vm1050, 0.0, %v1626
  %v1817 = vsel %vm1051, 0.0, %v1631
  %v1818 = vsel %vm1052, 0.0, %v1634
  %v1819 = vsel %vm1053, 0.0, %v1639
  %v1820 = vsel %vm1054, 0.0, %v1642
  %v1821 = vsel %vm1055, 0.0, %v1647
  %v1822 = vsel %vm1056, 0.0, %v1650
  %v1823 = vsel %vm1057, 0.0, %v1655
  %v1824 = vsel %vm1058, 0.0, %v1658
  %v1825 = vsel %vm1059, 0.0, %v1663
  %v1826 = vsel %vm1060, 0.0, %v1666
  %v1827 = vsel %vm1061, 0.0, %v1671
  %v1828 = vsel %vm1062, 0.0, %v1674
  %v1829 = vsel %vm1063, 0.0, %v1615
  %v1830 = vadd.f32 %v1752, %v1814
  %v1831 = vadd.f32 %v1755, %v1815
  %v1832 = vadd.f32 %v1760, %v1816
  %v1833 = vadd.f32 %v1763, %v1817
  %v1834 = vadd.f32 %v1768, %v1818
  %v1835 = vadd.f32 %v1771, %v1819
  %v1836 = vadd.f32 %v1776, %v1820
  %v1837 = vadd.f32 %v1779, %v1821
  %v1838 = vadd.f32 %v1784, %v1822
  %v1839 = vadd.f32 %v1787, %v1823
  %v1840 = vadd.f32 %v1792, %v1824
  %v1841 = vadd.f32 %v1795, %v1825
  %v1842 = vadd.f32 %v1800, %v1826
  %v1843 = vadd.f32 %v1803, %v1827
  %v1844 = vadd.f32 %v1808, %v1828
  %v1845 = vadd.f32 %v1811, %v1829
  %s1846 = scalar_lea.vmem %s7, 1
  %v1847 = vld [vmem:[%s1846] sm:$0x1]
  %v1849 = vlaneseq
  %v1850 = vshrl.u32 %v1849, 7
  %v1851 = vsub.s32 0, %v1850
  %v1852 = vrot.slane %v1847, %v1851
  %v1854 = vadd.f32 %v1830, %v1852
  %v1855 = vadd.f32 %v1831, %v1852
  %v1856 = vadd.f32 %v1832, %v1852
  %v1857 = vadd.f32 %v1833, %v1852
  %v1858 = vadd.f32 %v1834, %v1852
  %v1859 = vadd.f32 %v1835, %v1852
  %v1860 = vadd.f32 %v1836, %v1852
  %v1861 = vadd.f32 %v1837, %v1852
  %v1862 = vadd.f32 %v1838, %v1852
  %v1863 = vadd.f32 %v1839, %v1852
  %v1864 = vadd.f32 %v1840, %v1852
  %v1865 = vadd.f32 %v1841, %v1852
  %v1866 = vadd.f32 %v1842, %v1852
  %v1867 = vadd.f32 %v1843, %v1852
  %v1868 = vadd.f32 %v1844, %v1852
  %v1869 = vadd.f32 %v1845, %v1852
  %v1870 = vmax.f32 %v1854, 0.0
  %v1871 = vmax.f32 %v1855, 0.0
  %v1872 = vmax.f32 %v1856, 0.0
  %v1873 = vmax.f32 %v1857, 0.0
  %v1874 = vmax.f32 %v1858, 0.0
  %v1875 = vmax.f32 %v1859, 0.0
  %v1876 = vmax.f32 %v1860, 0.0
  %v1877 = vmax.f32 %v1861, 0.0
  %v1878 = vmax.f32 %v1862, 0.0
  %v1879 = vmax.f32 %v1863, 0.0
  %v1880 = vmax.f32 %v1864, 0.0
  %v1881 = vmax.f32 %v1865, 0.0
  %v1882 = vmax.f32 %v1866, 0.0
  %v1883 = vmax.f32 %v1867, 0.0
  %v1884 = vmax.f32 %v1868, 0.0
  %v1885 = vmax.f32 %v1869, 0.0
  %v1886 = vmul.f32 %v1870, %v1138
  %v1887 = vmul.f32 %v1871, %v1143
  %v1888 = vmul.f32 %v1872, %v1148
  %v1889 = vmul.f32 %v1873, %v1153
  %v1890 = vmul.f32 %v1874, %v1158
  %v1891 = vmul.f32 %v1875, %v1163
  %v1892 = vmul.f32 %v1876, %v1168
  %v1893 = vmul.f32 %v1877, %v1173
  %v1894 = vmul.f32 %v1878, %v1178
  %v1895 = vmul.f32 %v1879, %v1183
  %v1896 = vmul.f32 %v1880, %v1188
  %v1897 = vmul.f32 %v1881, %v1193
  %v1898 = vmul.f32 %v1882, %v1198
  %v1899 = vmul.f32 %v1883, %v1203
  %v1900 = vmul.f32 %v1884, %v1208
  %v1901 = vmul.f32 %v1885, %v1213
  %v1902 = vsel %vm602, %v1886, 0.0
  %v1903 = vsel %vm602, %v1887, 0.0
  %v1904 = vadd.f32 %v1902, %v1903
  %v1905 = vsel %vm602, %v1888, 0.0
  %v1906 = vadd.f32 %v1904, %v1905
  %v1907 = vsel %vm602, %v1889, 0.0
  %v1908 = vadd.f32 %v1906, %v1907
  %v1909 = vsel %vm602, %v1890, 0.0
  %v1910 = vadd.f32 %v1908, %v1909
  %v1911 = vsel %vm602, %v1891, 0.0
  %v1912 = vadd.f32 %v1910, %v1911
  %v1913 = vsel %vm602, %v1892, 0.0
  %v1914 = vadd.f32 %v1912, %v1913
  %v1915 = vsel %vm602, %v1893, 0.0
  %v1916 = vadd.f32 %v1914, %v1915
  %v1917 = vsel %vm602, %v1894, 0.0
  %v1918 = vadd.f32 %v1916, %v1917
  %v1919 = vsel %vm602, %v1895, 0.0
  %v1920 = vadd.f32 %v1918, %v1919
  %v1921 = vsel %vm602, %v1896, 0.0
  %v1922 = vadd.f32 %v1920, %v1921
  %v1923 = vsel %vm602, %v1897, 0.0
  %v1924 = vadd.f32 %v1922, %v1923
  %v1925 = vsel %vm602, %v1898, 0.0
  %v1926 = vadd.f32 %v1924, %v1925
  %v1927 = vsel %vm602, %v1899, 0.0
  %v1928 = vadd.f32 %v1926, %v1927
  %v1929 = vsel %vm602, %v1900, 0.0
  %v1930 = vadd.f32 %v1928, %v1929
  %v1931 = vsel %vm602, %v1901, 0.0
  %v1932 = vadd.f32 %v1930, %v1931
  %v1933 = vrot.slane %v1932, 4
  %v1934 = vadd.f32 %v1932, %v1933
  %v1935 = vrot.slane %v1934, 2
  %v1936 = vadd.f32 %v1934, %v1935
  %v1937 = vrot.slane %v1936, 1
  %v1938 = vadd.f32 %v1936, %v1937
  %v1939 = vmul.f32 %v1938, 0.03125
  %v1940 = vmul.f32 %v1886, %v1870
  %v1941 = vmul.f32 %v1887, %v1871
  %v1942 = vmul.f32 %v1888, %v1872
  %v1943 = vmul.f32 %v1889, %v1873
  %v1944 = vmul.f32 %v1890, %v1874
  %v1945 = vmul.f32 %v1891, %v1875
  %v1946 = vmul.f32 %v1892, %v1876
  %v1947 = vmul.f32 %v1893, %v1877
  %v1948 = vmul.f32 %v1894, %v1878
  %v1949 = vmul.f32 %v1895, %v1879
  %v1950 = vmul.f32 %v1896, %v1880
  %v1951 = vmul.f32 %v1897, %v1881
  %v1952 = vmul.f32 %v1898, %v1882
  %v1953 = vmul.f32 %v1899, %v1883
  %v1954 = vmul.f32 %v1900, %v1884
  %v1955 = vmul.f32 %v1901, %v1885
  %v1956 = vsel %vm602, %v1940, 0.0
  %v1957 = vsel %vm602, %v1941, 0.0
  %v1958 = vadd.f32 %v1956, %v1957
  %v1959 = vsel %vm602, %v1942, 0.0
  %v1960 = vadd.f32 %v1958, %v1959
  %v1961 = vsel %vm602, %v1943, 0.0
  %v1962 = vadd.f32 %v1960, %v1961
  %v1963 = vsel %vm602, %v1944, 0.0
  %v1964 = vadd.f32 %v1962, %v1963
  %v1965 = vsel %vm602, %v1945, 0.0
  %v1966 = vadd.f32 %v1964, %v1965
  %v1967 = vsel %vm602, %v1946, 0.0
  %v1968 = vadd.f32 %v1966, %v1967
  %v1969 = vsel %vm602, %v1947, 0.0
  %v1970 = vadd.f32 %v1968, %v1969
  %v1971 = vsel %vm602, %v1948, 0.0
  %v1972 = vadd.f32 %v1970, %v1971
  %v1973 = vsel %vm602, %v1949, 0.0
  %v1974 = vadd.f32 %v1972, %v1973
  %v1975 = vsel %vm602, %v1950, 0.0
  %v1976 = vadd.f32 %v1974, %v1975
  %v1977 = vsel %vm602, %v1951, 0.0
  %v1978 = vadd.f32 %v1976, %v1977
  %v1979 = vsel %vm602, %v1952, 0.0
  %v1980 = vadd.f32 %v1978, %v1979
  %v1981 = vsel %vm602, %v1953, 0.0
  %v1982 = vadd.f32 %v1980, %v1981
  %v1983 = vsel %vm602, %v1954, 0.0
  %v1984 = vadd.f32 %v1982, %v1983
  %v1985 = vsel %vm602, %v1955, 0.0
  %v1986 = vadd.f32 %v1984, %v1985
  %v1987 = vrot.slane %v1986, 4
  %v1988 = vadd.f32 %v1986, %v1987
  %v1989 = vrot.slane %v1988, 2
  %v1990 = vadd.f32 %v1988, %v1989
  %v1991 = vrot.slane %v1990, 1
  %v1992 = vadd.f32 %v1990, %v1991
  %v1993 = vmul.f32 %v1992, 0.03125
  %v1994 = vmul.f32 %v1939, %v1939
  %v1995 = vsub.f32 %v1993, %v1994
  %s1996 = scalar_lea.vmem %s8, 1
  %v1997 = vld [vmem:[%s1996] sm:$0x1]
  %v1998 = vadd.f32 %v1995, 1e-05
  %v1999 = vrsqrt.pop %v1998
  %v2000 = vmul.f32 %v1997, %v1999
  %s2001 = scalar_lea.vmem %s9, 1
  %v2002 = vld [vmem:[%s2001] sm:$0x1]
  %v2003 = vmul.f32 %v1939, %v2000
  %v2004 = vsub.f32 %v2002, %v2003
  %v2006 = vlaneseq
  %v2007 = vshrl.u32 %v2006, 7
  %v2008 = vsub.s32 0, %v2007
  %v2009 = vrot.slane %v2000, %v2008
  %v2011 = vmul.f32 %v1870, %v2009
  %v2012 = vmul.f32 %v1871, %v2009
  %v2013 = vmul.f32 %v1872, %v2009
  %v2014 = vmul.f32 %v1873, %v2009
  %v2015 = vmul.f32 %v1874, %v2009
  %v2016 = vmul.f32 %v1875, %v2009
  %v2017 = vmul.f32 %v1876, %v2009
  %v2018 = vmul.f32 %v1877, %v2009
  %v2019 = vmul.f32 %v1878, %v2009
  %v2020 = vmul.f32 %v1879, %v2009
  %v2021 = vmul.f32 %v1880, %v2009
  %v2022 = vmul.f32 %v1881, %v2009
  %v2023 = vmul.f32 %v1882, %v2009
  %v2024 = vmul.f32 %v1883, %v2009
  %v2025 = vmul.f32 %v1884, %v2009
  %v2026 = vmul.f32 %v1885, %v2009
  %v2028 = vlaneseq
  %v2029 = vshrl.u32 %v2028, 7
  %v2030 = vsub.s32 0, %v2029
  %v2031 = vrot.slane %v2004, %v2030
  %v2033 = vadd.f32 %v2011, %v2031
  %v2034 = vadd.f32 %v2012, %v2031
  %v2035 = vadd.f32 %v2013, %v2031
  %v2036 = vadd.f32 %v2014, %v2031
  %v2037 = vadd.f32 %v2015, %v2031
  %v2038 = vadd.f32 %v2016, %v2031
  %v2039 = vadd.f32 %v2017, %v2031
  %v2040 = vadd.f32 %v2018, %v2031
  %v2041 = vadd.f32 %v2019, %v2031
  %v2042 = vadd.f32 %v2020, %v2031
  %v2043 = vadd.f32 %v2021, %v2031
  %v2044 = vadd.f32 %v2022, %v2031
  %v2045 = vadd.f32 %v2023, %v2031
  %v2046 = vadd.f32 %v2024, %v2031
  %v2047 = vadd.f32 %v2025, %v2031
  %v2048 = vadd.f32 %v2026, %v2031
  %2049 = vst.msk [vmem:[%s16] sm:$0xff] %vm602, %v2033
  %2050 = vst.msk [vmem:[%s16 + $0x8] sm:$0xff] %vm602, %v2034
  %2051 = vst.msk [vmem:[%s16 + $0x10] sm:$0xff] %vm602, %v2035
  %2052 = vst.msk [vmem:[%s16 + $0x18] sm:$0xff] %vm602, %v2036
  %2053 = vst.msk [vmem:[%s16 + $0x20] sm:$0xff] %vm602, %v2037
  %2054 = vst.msk [vmem:[%s16 + $0x28] sm:$0xff] %vm602, %v2038
  %2055 = vst.msk [vmem:[%s16 + $0x30] sm:$0xff] %vm602, %v2039
  %2056 = vst.msk [vmem:[%s16 + $0x38] sm:$0xff] %vm602, %v2040
  %2057 = vst.msk [vmem:[%s16 + $0x40] sm:$0xff] %vm602, %v2041
  %2058 = vst.msk [vmem:[%s16 + $0x48] sm:$0xff] %vm602, %v2042
  %2059 = vst.msk [vmem:[%s16 + $0x50] sm:$0xff] %vm602, %v2043
  %2060 = vst.msk [vmem:[%s16 + $0x58] sm:$0xff] %vm602, %v2044
  %2061 = vst.msk [vmem:[%s16 + $0x60] sm:$0xff] %vm602, %v2045
  %2062 = vst.msk [vmem:[%s16 + $0x68] sm:$0xff] %vm602, %v2046
  %2063 = vst.msk [vmem:[%s16 + $0x70] sm:$0xff] %vm602, %v2047
  %2064 = vst.msk [vmem:[%s16 + $0x78] sm:$0xff] %vm602, %v2048
  %v2065 = vpack.c.bf16 %v2034, %v2033
  %v2066 = vpack.c.bf16 %v2036, %v2035
  %v2067 = vpack.c.bf16 %v2038, %v2037
  %v2068 = vpack.c.bf16 %v2040, %v2039
  %v2069 = vpack.c.bf16 %v2042, %v2041
  %v2070 = vpack.c.bf16 %v2044, %v2043
  %v2071 = vpack.c.bf16 %v2046, %v2045
  %v2072 = vpack.c.bf16 %v2048, %v2047
  %v2073 = vld [vmem:[%s10] sm:$0xf]
  %v2074 = vld [vmem:[%s10 + $0x4] sm:$0xf]
  %v2075 = vld [vmem:[%s10 + $0x8] sm:$0xf]
  %v2076 = vld [vmem:[%s10 + $0xc] sm:$0xf]
  %v2077 = vld [vmem:[%s10 + $0x10] sm:$0xf]
  %v2078 = vld [vmem:[%s10 + $0x14] sm:$0xf]
  %v2079 = vld [vmem:[%s10 + $0x18] sm:$0xf]
  %v2080 = vld [vmem:[%s10 + $0x1c] sm:$0xf]
  %v2081 = vld [vmem:[%s12] sm:$0x1]
  %v2083 = vlaneseq
  %v2084 = vshrl.u32 %v2083, 7
  %v2085 = vsub.s32 0, %v2084
  %v2086 = vrot.slane %v2081, %v2085
  %v2096 = vunpack.c.l.b16 %v2073
  %v2097 = vunpack.c.l.b16 %v2074
  %v2098 = vunpack.c.l.b16 %v2075
  %v2099 = vunpack.c.l.b16 %v2076
  %v2100 = vunpack.c.l.b16 %v2077
  %v2101 = vunpack.c.l.b16 %v2078
  %v2102 = vunpack.c.l.b16 %v2079
  %v2103 = vunpack.c.l.b16 %v2080
  %v2104 = vpack.c.b16 %v2097, %v2096
  %v2105 = vpack.c.b16 %v2099, %v2098
  %v2106 = vpack.c.b16 %v2101, %v2100
  %v2107 = vpack.c.b16 %v2103, %v2102
  %v2113 = vsel %vm602, %v2065, 0
  %v2116 = vsel %vm602, %v2066, 0
  %v2119 = vsel %vm602, %v2067, 0
  %v2122 = vsel %vm602, %v2068, 0
  %v2125 = vsel %vm602, %v2069, 0
  %v2128 = vsel %vm602, %v2070, 0
  %v2131 = vsel %vm602, %v2071, 0
  %v2134 = vsel %vm602, %v2072, 0
  %2136 = vmatprep.subr.bf16.mxu0 0
  %2137 = vmatpush1.bf16.msra.mxu0 0
  %2138 = vmatprep.subr.bf16.mxu0 0
  %2139 = vmatpush1.bf16.msra.mxu0 0
  %2140 = vmatprep.subr.bf16.mxu0 0
  %2141 = vmatpush1.bf16.msra.mxu0 0
  %2142 = vmatprep.subr.bf16.mxu0 0
  %2143 = vmatpush1.bf16.msra.mxu0 0
  %2144 = vmatprep.subr.bf16.mxu0 0
  %2145 = vmatpush1.bf16.msra.mxu0 %v2107
  %2146 = vmatprep.subr.bf16.mxu0 0
  %2147 = vmatpush1.bf16.msra.mxu0 %v2106
  %2148 = vmatprep.subr.bf16.mxu0 0
  %2149 = vmatpush1.bf16.msra.mxu0 %v2105
  %2150 = vmatprep.subr.bf16.mxu0 0
  %2151 = vmatpush1.bf16.msra.mxu0 %v2104
  %2152 = vmatprep.subr.bf16.mxu0 0
  %2153 = vmatpush2.bf16.msra.mxu0 0
  %2154 = vmatprep.subr.bf16.mxu0 0
  %2155 = vmatpush2.bf16.msra.mxu0 0
  %2156 = vmatprep.subr.bf16.mxu0 0
  %2157 = vmatpush2.bf16.msra.mxu0 0
  %2158 = vmatprep.subr.bf16.mxu0 0
  %2159 = vmatpush2.bf16.msra.mxu0 0
  %2160 = vmatprep.subr.bf16.mxu0 0
  %2161 = vmatpush2.bf16.msra.mxu0 0
  %2162 = vmatprep.subr.bf16.mxu0 0
  %2163 = vmatpush2.bf16.msra.mxu0 0
  %2164 = vmatprep.subr.bf16.mxu0 0
  %2165 = vmatpush2.bf16.msra.mxu0 0
  %2166 = vmatprep.subr.bf16.mxu0 0
  %2167 = vmatpush2.bf16.msra.mxu0 0
  %2168 = vmatprep.mubr.bf16.mxu0 0
  %2169 = vmatmul.mubr.bf16.gmra.mxu0 %v2113
  %v2170 = vpop.f32.mrf.mxu0
  %v2171 = vadd.f32 %v2086, %v2170
  %v2172 = vpop.f32.mrf.mxu0
  %v2173 = vpop.f32.mrf.mxu0
  %v2174 = vadd.f32 %v2086, %v2173
  %v2175 = vpop.f32.mrf.mxu0
  %2176 = vmatprep.mubr.bf16.mxu0 0
  %2177 = vmatmul.mubr.bf16.gmra.mxu0 %v2116
  %v2178 = vpop.f32.mrf.mxu0
  %v2179 = vadd.f32 %v2086, %v2178
  %v2180 = vpop.f32.mrf.mxu0
  %v2181 = vpop.f32.mrf.mxu0
  %v2182 = vadd.f32 %v2086, %v2181
  %v2183 = vpop.f32.mrf.mxu0
  %2184 = vmatprep.mubr.bf16.mxu0 0
  %2185 = vmatmul.mubr.bf16.gmra.mxu0 %v2119
  %v2186 = vpop.f32.mrf.mxu0
  %v2187 = vadd.f32 %v2086, %v2186
  %v2188 = vpop.f32.mrf.mxu0
  %v2189 = vpop.f32.mrf.mxu0
  %v2190 = vadd.f32 %v2086, %v2189
  %v2191 = vpop.f32.mrf.mxu0
  %2192 = vmatprep.mubr.bf16.mxu0 0
  %2193 = vmatmul.mubr.bf16.gmra.mxu0 %v2122
  %v2194 = vpop.f32.mrf.mxu0
  %v2195 = vadd.f32 %v2086, %v2194
  %v2196 = vpop.f32.mrf.mxu0
  %v2197 = vpop.f32.mrf.mxu0
  %v2198 = vadd.f32 %v2086, %v2197
  %v2199 = vpop.f32.mrf.mxu0
  %2200 = vmatprep.mubr.bf16.mxu0 0
  %2201 = vmatmul.mubr.bf16.gmra.mxu0 %v2125
  %v2202 = vpop.f32.mrf.mxu0
  %v2203 = vadd.f32 %v2086, %v2202
  %v2204 = vpop.f32.mrf.mxu0
  %v2205 = vpop.f32.mrf.mxu0
  %v2206 = vadd.f32 %v2086, %v2205
  %v2207 = vpop.f32.mrf.mxu0
  %2208 = vmatprep.mubr.bf16.mxu0 0
  %2209 = vmatmul.mubr.bf16.gmra.mxu0 %v2128
  %v2210 = vpop.f32.mrf.mxu0
  %v2211 = vadd.f32 %v2086, %v2210
  %v2212 = vpop.f32.mrf.mxu0
  %v2213 = vpop.f32.mrf.mxu0
  %v2214 = vadd.f32 %v2086, %v2213
  %v2215 = vpop.f32.mrf.mxu0
  %2216 = vmatprep.mubr.bf16.mxu0 0
  %2217 = vmatmul.mubr.bf16.gmra.mxu0 %v2131
  %v2218 = vpop.f32.mrf.mxu0
  %v2219 = vadd.f32 %v2086, %v2218
  %v2220 = vpop.f32.mrf.mxu0
  %v2221 = vpop.f32.mrf.mxu0
  %v2222 = vadd.f32 %v2086, %v2221
  %v2223 = vpop.f32.mrf.mxu0
  %2224 = vmatprep.mubr.bf16.mxu0 0
  %2225 = vmatmul.mubr.bf16.gmra.mxu0 %v2134
  %v2226 = vpop.f32.mrf.mxu0
  %v2227 = vadd.f32 %v2086, %v2226
  %v2228 = vpop.f32.mrf.mxu0
  %v2229 = vpop.f32.mrf.mxu0
  %v2230 = vadd.f32 %v2086, %v2229
  %v2231 = vpop.f32.mrf.mxu0
  %2232 = vdwg.mxu0
  %v2233 = vld [vmem:[%s11] sm:$0xff]
  %v2234 = vld [vmem:[%s11 + $0x8] sm:$0xff]
  %v2235 = vld [vmem:[%s11 + $0x10] sm:$0xff]
  %v2236 = vld [vmem:[%s11 + $0x18] sm:$0xff]
  %v2237 = vld [vmem:[%s1] sm:$0xff]
  %vm2238 = vcmp.ge.s32.totalorder %v70, 64
  %vm2239 = vcmp.lt.s32.totalorder %v70, 96
  %vm2240 = vmand %vm2238, %vm2239
  %v2242 = vsel %vm359, 0.0, 0
  %2244 = vmatprep.subr.mxu0 0.0
  %2245 = vmatpush1.msra.mxu0 0.0
  %2246 = vmatprep.subr.mxu0 0.0
  %2247 = vmatpush1.msra.mxu0 0.0
  %2248 = vmatprep.subr.mxu0 0.0
  %2249 = vmatpush1.msra.mxu0 0.0
  %2250 = vmatprep.subr.mxu0 0.0
  %2251 = vmatpush1.msra.mxu0 0.0
  %2252 = vmatprep.subr.mxu0 0.0
  %2253 = vmatpush1.msra.mxu0 0.0
  %2254 = vmatprep.subr.mxu0 0.0
  %2255 = vmatpush1.msra.mxu0 0.0
  %2256 = vmatprep.subr.mxu0 0.0
  %2257 = vmatpush1.msra.mxu0 0.0
  %2258 = vmatprep.subr.mxu0 0.0
  %2259 = vmatpush1.msra.mxu0 0.0
  %2260 = vmatprep.subr.mxu0 0.0
  %2261 = vmatpush1.msra.mxu0 0.0
  %2262 = vmatprep.subr.mxu0 0.0
  %2263 = vmatpush1.msra.mxu0 0.0
  %2264 = vmatprep.subr.mxu0 0.0
  %2265 = vmatpush1.msra.mxu0 0.0
  %2266 = vmatprep.subr.mxu0 0.0
  %2267 = vmatpush1.msra.mxu0 0.0
  %2268 = vmatprep.subr.mxu0 0.0
  %2269 = vmatpush1.msra.mxu0 %v2236
  %2270 = vmatprep.subr.mxu0 0.0
  %2271 = vmatpush1.msra.mxu0 %v2235
  %2272 = vmatprep.subr.mxu0 0.0
  %2273 = vmatpush1.msra.mxu0 %v2234
  %2274 = vmatprep.subr.mxu0 0.0
  %2275 = vmatpush1.msra.mxu0 %v2233
  %2276 = vmatprep.subr.mxu0 0.0
  %2277 = vmatpush2.msra.mxu0 0.0
  %2278 = vmatprep.subr.mxu0 0.0
  %2279 = vmatpush2.msra.mxu0 0.0
  %2280 = vmatprep.subr.mxu0 0.0
  %2281 = vmatpush2.msra.mxu0 0.0
  %2282 = vmatprep.subr.mxu0 0.0
  %2283 = vmatpush2.msra.mxu0 0.0
  %2284 = vmatprep.subr.mxu0 0.0
  %2285 = vmatpush2.msra.mxu0 0.0
  %2286 = vmatprep.subr.mxu0 0.0
  %2287 = vmatpush2.msra.mxu0 0.0
  %2288 = vmatprep.subr.mxu0 0.0
  %2289 = vmatpush2.msra.mxu0 0.0
  %2290 = vmatprep.subr.mxu0 0.0
  %2291 = vmatpush2.msra.mxu0 0.0
  %2292 = vmatprep.subr.mxu0 0.0
  %2293 = vmatpush2.msra.mxu0 0.0
  %2294 = vmatprep.subr.mxu0 0.0
  %2295 = vmatpush2.msra.mxu0 0.0
  %2296 = vmatprep.subr.mxu0 0.0
  %2297 = vmatpush2.msra.mxu0 0.0
  %2298 = vmatprep.subr.mxu0 0.0
  %2299 = vmatpush2.msra.mxu0 0.0
  %2300 = vmatprep.subr.mxu0 0.0
  %2301 = vmatpush2.msra.mxu0 0.0
  %2302 = vmatprep.subr.mxu0 0.0
  %2303 = vmatpush2.msra.mxu0 0.0
  %2304 = vmatprep.subr.mxu0 0.0
  %2305 = vmatpush2.msra.mxu0 0.0
  %2306 = vmatprep.subr.mxu0 0.0
  %2307 = vmatpush2.msra.mxu0 0.0
  %2308 = vmatprep.mubr.f32.mxu0 0.0
  %2309 = vmatmul.mubr.f32.gmra.mxu0 %v2242
  %v2310 = vpop.f32.mrf.mxu0
  %v2311 = vadd.f32 0.0, %v2310
  %v2312 = vpop.f32.mrf.mxu0
  %2313 = vdwg.mxu0
  %v2314 = vadd.f32 %v2171, %v2311
  %v2315 = vtanh.pop %v2314
  %v2316 = vmul.f32 %v2315, 0.5
  %v2317 = vadd.f32 %v2316, 0.5
  %v2318 = vsel %vm2240, %v2315, %v2317
  %v2319 = vmul.f32 %v2318, 0.0
  %2321 = vrot.lane.b32.xlu0 %v2318, 64
  %v2322 = vpop.permute.xlu0 %2321
  %v2324 = vmul.f32 %v2318, %v2322
  %2326 = vrot.lane.b32.xlu0 %v2324, 32
  %v2327 = vpop.permute.xlu0 %2326
  %v2329 = vadd.f32 %v2319, %v2327
  %v2330 = vtanh.pop %v2329
  %2332 = vrot.lane.b32.xlu0 %v2330, 64
  %v2333 = vpop.permute.xlu0 %2332
  %v2335 = vmul.f32 %v2318, %v2333
  %vm2336 = vcmp.gt.s32.totalorder %v2237, 0
  %v2337 = vsel %vm2336, 1, 0
  %2338 = vset.pattern.permute.xlu0 0
  %2339 = vperm.xlu0 %2338, %v2337
  %v2340 = vpop.permute.xlu0 %2339
  %vm2341 = vcmp.eq.s32.totalorder %v2340, 1
  %v2342 = vsel %vm2341, %v2335, 0.0
  %v2343 = vsel %vm2341, %v2329, 0.0
  %2345 = vrot.lane.b32.xlu0 %v2342, 32
  %v2346 = vpop.permute.xlu0 %2345
  %v2347 = vsel %vm359, %v2346, 0
  %2349 = vmatprep.subr.mxu0 0.0
  %2350 = vmatpush1.msra.mxu0 0.0
  %2351 = vmatprep.subr.mxu0 0.0
  %2352 = vmatpush1.msra.mxu0 0.0
  %2353 = vmatprep.subr.mxu0 0.0
  %2354 = vmatpush1.msra.mxu0 0.0
  %2355 = vmatprep.subr.mxu0 0.0
  %2356 = vmatpush1.msra.mxu0 0.0
  %2357 = vmatprep.subr.mxu0 0.0
  %2358 = vmatpush1.msra.mxu0 0.0
  %2359 = vmatprep.subr.mxu0 0.0
  %2360 = vmatpush1.msra.mxu0 0.0
  %2361 = vmatprep.subr.mxu0 0.0
  %2362 = vmatpush1.msra.mxu0 0.0
  %2363 = vmatprep.subr.mxu0 0.0
  %2364 = vmatpush1.msra.mxu0 0.0
  %2365 = vmatprep.subr.mxu0 0.0
  %2366 = vmatpush1.msra.mxu0 0.0
  %2367 = vmatprep.subr.mxu0 0.0
  %2368 = vmatpush1.msra.mxu0 0.0
  %2369 = vmatprep.subr.mxu0 0.0
  %2370 = vmatpush1.msra.mxu0 0.0
  %2371 = vmatprep.subr.mxu0 0.0
  %2372 = vmatpush1.msra.mxu0 0.0
  %2373 = vmatprep.subr.mxu0 0.0
  %2374 = vmatpush1.msra.mxu0 %v2236
  %2375 = vmatprep.subr.mxu0 0.0
  %2376 = vmatpush1.msra.mxu0 %v2235
  %2377 = vmatprep.subr.mxu0 0.0
  %2378 = vmatpush1.msra.mxu0 %v2234
  %2379 = vmatprep.subr.mxu0 0.0
  %2380 = vmatpush1.msra.mxu0 %v2233
  %2381 = vmatprep.subr.mxu0 0.0
  %2382 = vmatpush2.msra.mxu0 0.0
  %2383 = vmatprep.subr.mxu0 0.0
  %2384 = vmatpush2.msra.mxu0 0.0
  %2385 = vmatprep.subr.mxu0 0.0
  %2386 = vmatpush2.msra.mxu0 0.0
  %2387 = vmatprep.subr.mxu0 0.0
  %2388 = vmatpush2.msra.mxu0 0.0
  %2389 = vmatprep.subr.mxu0 0.0
  %2390 = vmatpush2.msra.mxu0 0.0
  %2391 = vmatprep.subr.mxu0 0.0
  %2392 = vmatpush2.msra.mxu0 0.0
  %2393 = vmatprep.subr.mxu0 0.0
  %2394 = vmatpush2.msra.mxu0 0.0
  %2395 = vmatprep.subr.mxu0 0.0
  %2396 = vmatpush2.msra.mxu0 0.0
  %2397 = vmatprep.subr.mxu0 0.0
  %2398 = vmatpush2.msra.mxu0 0.0
  %2399 = vmatprep.subr.mxu0 0.0
  %2400 = vmatpush2.msra.mxu0 0.0
  %2401 = vmatprep.subr.mxu0 0.0
  %2402 = vmatpush2.msra.mxu0 0.0
  %2403 = vmatprep.subr.mxu0 0.0
  %2404 = vmatpush2.msra.mxu0 0.0
  %2405 = vmatprep.subr.mxu0 0.0
  %2406 = vmatpush2.msra.mxu0 0.0
  %2407 = vmatprep.subr.mxu0 0.0
  %2408 = vmatpush2.msra.mxu0 0.0
  %2409 = vmatprep.subr.mxu0 0.0
  %2410 = vmatpush2.msra.mxu0 0.0
  %2411 = vmatprep.subr.mxu0 0.0
  %2412 = vmatpush2.msra.mxu0 0.0
  %2413 = vmatprep.mubr.f32.mxu0 0.0
  %2414 = vmatmul.mubr.f32.gmra.mxu0 %v2347
  %v2415 = vpop.f32.mrf.mxu0
  %v2416 = vadd.f32 0.0, %v2415
  %v2417 = vpop.f32.mrf.mxu0
  %2418 = vdwg.mxu0
  %v2419 = vadd.f32 %v2174, %v2416
  %v2420 = vtanh.pop %v2419
  %v2421 = vmul.f32 %v2420, 0.5
  %v2422 = vadd.f32 %v2421, 0.5
  %v2423 = vsel %vm2240, %v2420, %v2422
  %v2424 = vmul.f32 %v2423, %v2343
  %2426 = vrot.lane.b32.xlu0 %v2423, 64
  %v2427 = vpop.permute.xlu0 %2426
  %v2429 = vmul.f32 %v2423, %v2427
  %2431 = vrot.lane.b32.xlu0 %v2429, 32
  %v2432 = vpop.permute.xlu0 %2431
  %v2434 = vadd.f32 %v2424, %v2432
  %v2435 = vtanh.pop %v2434
  %2437 = vrot.lane.b32.xlu0 %v2435, 64
  %v2438 = vpop.permute.xlu0 %2437
  %v2440 = vmul.f32 %v2423, %v2438
  %vm2441 = vcmp.gt.s32.totalorder %v2237, 1
  %v2442 = vsel %vm2441, 1, 0
  %2443 = vset.pattern.permute.xlu0 0
  %2444 = vperm.xlu0 %2443, %v2442
  %v2445 = vpop.permute.xlu0 %2444
  %vm2446 = vcmp.eq.s32.totalorder %v2445, 1
  %v2447 = vsel %vm2446, %v2440, %v2342
  %v2448 = vsel %vm2446, %v2434, %v2343
  %v2449 = vsel %vm2446, %v2440, 0.0
  %2451 = vrot.lane.b32.xlu0 %v2447, 32
  %v2452 = vpop.permute.xlu0 %2451
  %v2453 = vsel %vm359, %v2452, 0
  %2455 = vmatprep.subr.mxu0 0.0
  %2456 = vmatpush1.msra.mxu0 0.0
  %2457 = vmatprep.subr.mxu0 0.0
  %2458 = vmatpush1.msra.mxu0 0.0
  %2459 = vmatprep.subr.mxu0 0.0
  %2460 = vmatpush1.msra.mxu0 0.0
  %2461 = vmatprep.subr.mxu0 0.0
  %2462 = vmatpush1.msra.mxu0 0.0
  %2463 = vmatprep.subr.mxu0 0.0
  %2464 = vmatpush1.msra.mxu0 0.0
  %2465 = vmatprep.subr.mxu0 0.0
  %2466 = vmatpush1.msra.mxu0 0.0
  %2467 = vmatprep.subr.mxu0 0.0
  %2468 = vmatpush1.msra.mxu0 0.0
  %2469 = vmatprep.subr.mxu0 0.0
  %2470 = vmatpush1.msra.mxu0 0.0
  %2471 = vmatprep.subr.mxu0 0.0
  %2472 = vmatpush1.msra.mxu0 0.0
  %2473 = vmatprep.subr.mxu0 0.0
  %2474 = vmatpush1.msra.mxu0 0.0
  %2475 = vmatprep.subr.mxu0 0.0
  %2476 = vmatpush1.msra.mxu0 0.0
  %2477 = vmatprep.subr.mxu0 0.0
  %2478 = vmatpush1.msra.mxu0 0.0
  %2479 = vmatprep.subr.mxu0 0.0
  %2480 = vmatpush1.msra.mxu0 %v2236
  %2481 = vmatprep.subr.mxu0 0.0
  %2482 = vmatpush1.msra.mxu0 %v2235
  %2483 = vmatprep.subr.mxu0 0.0
  %2484 = vmatpush1.msra.mxu0 %v2234
  %2485 = vmatprep.subr.mxu0 0.0
  %2486 = vmatpush1.msra.mxu0 %v2233
  %2487 = vmatprep.subr.mxu0 0.0
  %2488 = vmatpush2.msra.mxu0 0.0
  %2489 = vmatprep.subr.mxu0 0.0
  %2490 = vmatpush2.msra.mxu0 0.0
  %2491 = vmatprep.subr.mxu0 0.0
  %2492 = vmatpush2.msra.mxu0 0.0
  %2493 = vmatprep.subr.mxu0 0.0
  %2494 = vmatpush2.msra.mxu0 0.0
  %2495 = vmatprep.subr.mxu0 0.0
  %2496 = vmatpush2.msra.mxu0 0.0
  %2497 = vmatprep.subr.mxu0 0.0
  %2498 = vmatpush2.msra.mxu0 0.0
  %2499 = vmatprep.subr.mxu0 0.0
  %2500 = vmatpush2.msra.mxu0 0.0
  %2501 = vmatprep.subr.mxu0 0.0
  %2502 = vmatpush2.msra.mxu0 0.0
  %2503 = vmatprep.subr.mxu0 0.0
  %2504 = vmatpush2.msra.mxu0 0.0
  %2505 = vmatprep.subr.mxu0 0.0
  %2506 = vmatpush2.msra.mxu0 0.0
  %2507 = vmatprep.subr.mxu0 0.0
  %2508 = vmatpush2.msra.mxu0 0.0
  %2509 = vmatprep.subr.mxu0 0.0
  %2510 = vmatpush2.msra.mxu0 0.0
  %2511 = vmatprep.subr.mxu0 0.0
  %2512 = vmatpush2.msra.mxu0 0.0
  %2513 = vmatprep.subr.mxu0 0.0
  %2514 = vmatpush2.msra.mxu0 0.0
  %2515 = vmatprep.subr.mxu0 0.0
  %2516 = vmatpush2.msra.mxu0 0.0
  %2517 = vmatprep.subr.mxu0 0.0
  %2518 = vmatpush2.msra.mxu0 0.0
  %2519 = vmatprep.mubr.f32.mxu0 0.0
  %2520 = vmatmul.mubr.f32.gmra.mxu0 %v2453
  %v2521 = vpop.f32.mrf.mxu0
  %v2522 = vadd.f32 0.0, %v2521
  %v2523 = vpop.f32.mrf.mxu0
  %2524 = vdwg.mxu0
  %v2525 = vadd.f32 %v2179, %v2522
  %v2526 = vtanh.pop %v2525
  %v2527 = vmul.f32 %v2526, 0.5
  %v2528 = vadd.f32 %v2527, 0.5
  %v2529 = vsel %vm2240, %v2526, %v2528
  %v2530 = vmul.f32 %v2529, %v2448
  %2532 = vrot.lane.b32.xlu0 %v2529, 64
  %v2533 = vpop.permute.xlu0 %2532
  %v2535 = vmul.f32 %v2529, %v2533
  %2537 = vrot.lane.b32.xlu0 %v2535, 32
  %v2538 = vpop.permute.xlu0 %2537
  %v2540 = vadd.f32 %v2530, %v2538
  %v2541 = vtanh.pop %v2540
  %2543 = vrot.lane.b32.xlu0 %v2541, 64
  %v2544 = vpop.permute.xlu0 %2543
  %v2546 = vmul.f32 %v2529, %v2544
  %vm2547 = vcmp.gt.s32.totalorder %v2237, 2
  %v2548 = vsel %vm2547, 1, 0
  %2549 = vset.pattern.permute.xlu0 0
  %2550 = vperm.xlu0 %2549, %v2548
  %v2551 = vpop.permute.xlu0 %2550
  %vm2552 = vcmp.eq.s32.totalorder %v2551, 1
  %v2553 = vsel %vm2552, %v2546, %v2447
  %v2554 = vsel %vm2552, %v2540, %v2448
  %v2555 = vsel %vm2552, %v2546, 0.0
  %2557 = vrot.lane.b32.xlu0 %v2553, 32
  %v2558 = vpop.permute.xlu0 %2557
  %v2559 = vsel %vm359, %v2558, 0
  %2561 = vmatprep.subr.mxu0 0.0
  %2562 = vmatpush1.msra.mxu0 0.0
  %2563 = vmatprep.subr.mxu0 0.0
  %2564 = vmatpush1.msra.mxu0 0.0
  %2565 = vmatprep.subr.mxu0 0.0
  %2566 = vmatpush1.msra.mxu0 0.0
  %2567 = vmatprep.subr.mxu0 0.0
  %2568 = vmatpush1.msra.mxu0 0.0
  %2569 = vmatprep.subr.mxu0 0.0
  %2570 = vmatpush1.msra.mxu0 0.0
  %2571 = vmatprep.subr.mxu0 0.0
  %2572 = vmatpush1.msra.mxu0 0.0
  %2573 = vmatprep.subr.mxu0 0.0
  %2574 = vmatpush1.msra.mxu0 0.0
  %2575 = vmatprep.subr.mxu0 0.0
  %2576 = vmatpush1.msra.mxu0 0.0
  %2577 = vmatprep.subr.mxu0 0.0
  %2578 = vmatpush1.msra.mxu0 0.0
  %2579 = vmatprep.subr.mxu0 0.0
  %2580 = vmatpush1.msra.mxu0 0.0
  %2581 = vmatprep.subr.mxu0 0.0
  %2582 = vmatpush1.msra.mxu0 0.0
  %2583 = vmatprep.subr.mxu0 0.0
  %2584 = vmatpush1.msra.mxu0 0.0
  %2585 = vmatprep.subr.mxu0 0.0
  %2586 = vmatpush1.msra.mxu0 %v2236
  %2587 = vmatprep.subr.mxu0 0.0
  %2588 = vmatpush1.msra.mxu0 %v2235
  %2589 = vmatprep.subr.mxu0 0.0
  %2590 = vmatpush1.msra.mxu0 %v2234
  %2591 = vmatprep.subr.mxu0 0.0
  %2592 = vmatpush1.msra.mxu0 %v2233
  %2593 = vmatprep.subr.mxu0 0.0
  %2594 = vmatpush2.msra.mxu0 0.0
  %2595 = vmatprep.subr.mxu0 0.0
  %2596 = vmatpush2.msra.mxu0 0.0
  %2597 = vmatprep.subr.mxu0 0.0
  %2598 = vmatpush2.msra.mxu0 0.0
  %2599 = vmatprep.subr.mxu0 0.0
  %2600 = vmatpush2.msra.mxu0 0.0
  %2601 = vmatprep.subr.mxu0 0.0
  %2602 = vmatpush2.msra.mxu0 0.0
  %2603 = vmatprep.subr.mxu0 0.0
  %2604 = vmatpush2.msra.mxu0 0.0
  %2605 = vmatprep.subr.mxu0 0.0
  %2606 = vmatpush2.msra.mxu0 0.0
  %2607 = vmatprep.subr.mxu0 0.0
  %2608 = vmatpush2.msra.mxu0 0.0
  %2609 = vmatprep.subr.mxu0 0.0
  %2610 = vmatpush2.msra.mxu0 0.0
  %2611 = vmatprep.subr.mxu0 0.0
  %2612 = vmatpush2.msra.mxu0 0.0
  %2613 = vmatprep.subr.mxu0 0.0
  %2614 = vmatpush2.msra.mxu0 0.0
  %2615 = vmatprep.subr.mxu0 0.0
  %2616 = vmatpush2.msra.mxu0 0.0
  %2617 = vmatprep.subr.mxu0 0.0
  %2618 = vmatpush2.msra.mxu0 0.0
  %2619 = vmatprep.subr.mxu0 0.0
  %2620 = vmatpush2.msra.mxu0 0.0
  %2621 = vmatprep.subr.mxu0 0.0
  %2622 = vmatpush2.msra.mxu0 0.0
  %2623 = vmatprep.subr.mxu0 0.0
  %2624 = vmatpush2.msra.mxu0 0.0
  %2625 = vmatprep.mubr.f32.mxu0 0.0
  %2626 = vmatmul.mubr.f32.gmra.mxu0 %v2559
  %v2627 = vpop.f32.mrf.mxu0
  %v2628 = vadd.f32 0.0, %v2627
  %v2629 = vpop.f32.mrf.mxu0
  %2630 = vdwg.mxu0
  %v2631 = vadd.f32 %v2182, %v2628
  %v2632 = vtanh.pop %v2631
  %v2633 = vmul.f32 %v2632, 0.5
  %v2634 = vadd.f32 %v2633, 0.5
  %v2635 = vsel %vm2240, %v2632, %v2634
  %v2636 = vmul.f32 %v2635, %v2554
  %2638 = vrot.lane.b32.xlu0 %v2635, 64
  %v2639 = vpop.permute.xlu0 %2638
  %v2641 = vmul.f32 %v2635, %v2639
  %2643 = vrot.lane.b32.xlu0 %v2641, 32
  %v2644 = vpop.permute.xlu0 %2643
  %v2646 = vadd.f32 %v2636, %v2644
  %v2647 = vtanh.pop %v2646
  %2649 = vrot.lane.b32.xlu0 %v2647, 64
  %v2650 = vpop.permute.xlu0 %2649
  %v2652 = vmul.f32 %v2635, %v2650
  %vm2653 = vcmp.gt.s32.totalorder %v2237, 3
  %v2654 = vsel %vm2653, 1, 0
  %2655 = vset.pattern.permute.xlu0 0
  %2656 = vperm.xlu0 %2655, %v2654
  %v2657 = vpop.permute.xlu0 %2656
  %vm2658 = vcmp.eq.s32.totalorder %v2657, 1
  %v2659 = vsel %vm2658, %v2652, %v2553
  %v2660 = vsel %vm2658, %v2646, %v2554
  %v2661 = vsel %vm2658, %v2652, 0.0
  %2663 = vrot.lane.b32.xlu0 %v2659, 32
  %v2664 = vpop.permute.xlu0 %2663
  %v2665 = vsel %vm359, %v2664, 0
  %2667 = vmatprep.subr.mxu0 0.0
  %2668 = vmatpush1.msra.mxu0 0.0
  %2669 = vmatprep.subr.mxu0 0.0
  %2670 = vmatpush1.msra.mxu0 0.0
  %2671 = vmatprep.subr.mxu0 0.0
  %2672 = vmatpush1.msra.mxu0 0.0
  %2673 = vmatprep.subr.mxu0 0.0
  %2674 = vmatpush1.msra.mxu0 0.0
  %2675 = vmatprep.subr.mxu0 0.0
  %2676 = vmatpush1.msra.mxu0 0.0
  %2677 = vmatprep.subr.mxu0 0.0
  %2678 = vmatpush1.msra.mxu0 0.0
  %2679 = vmatprep.subr.mxu0 0.0
  %2680 = vmatpush1.msra.mxu0 0.0
  %2681 = vmatprep.subr.mxu0 0.0
  %2682 = vmatpush1.msra.mxu0 0.0
  %2683 = vmatprep.subr.mxu0 0.0
  %2684 = vmatpush1.msra.mxu0 0.0
  %2685 = vmatprep.subr.mxu0 0.0
  %2686 = vmatpush1.msra.mxu0 0.0
  %2687 = vmatprep.subr.mxu0 0.0
  %2688 = vmatpush1.msra.mxu0 0.0
  %2689 = vmatprep.subr.mxu0 0.0
  %2690 = vmatpush1.msra.mxu0 0.0
  %2691 = vmatprep.subr.mxu0 0.0
  %2692 = vmatpush1.msra.mxu0 %v2236
  %2693 = vmatprep.subr.mxu0 0.0
  %2694 = vmatpush1.msra.mxu0 %v2235
  %2695 = vmatprep.subr.mxu0 0.0
  %2696 = vmatpush1.msra.mxu0 %v2234
  %2697 = vmatprep.subr.mxu0 0.0
  %2698 = vmatpush1.msra.mxu0 %v2233
  %2699 = vmatprep.subr.mxu0 0.0
  %2700 = vmatpush2.msra.mxu0 0.0
  %2701 = vmatprep.subr.mxu0 0.0
  %2702 = vmatpush2.msra.mxu0 0.0
  %2703 = vmatprep.subr.mxu0 0.0
  %2704 = vmatpush2.msra.mxu0 0.0
  %2705 = vmatprep.subr.mxu0 0.0
  %2706 = vmatpush2.msra.mxu0 0.0
  %2707 = vmatprep.subr.mxu0 0.0
  %2708 = vmatpush2.msra.mxu0 0.0
  %2709 = vmatprep.subr.mxu0 0.0
  %2710 = vmatpush2.msra.mxu0 0.0
  %2711 = vmatprep.subr.mxu0 0.0
  %2712 = vmatpush2.msra.mxu0 0.0
  %2713 = vmatprep.subr.mxu0 0.0
  %2714 = vmatpush2.msra.mxu0 0.0
  %2715 = vmatprep.subr.mxu0 0.0
  %2716 = vmatpush2.msra.mxu0 0.0
  %2717 = vmatprep.subr.mxu0 0.0
  %2718 = vmatpush2.msra.mxu0 0.0
  %2719 = vmatprep.subr.mxu0 0.0
  %2720 = vmatpush2.msra.mxu0 0.0
  %2721 = vmatprep.subr.mxu0 0.0
  %2722 = vmatpush2.msra.mxu0 0.0
  %2723 = vmatprep.subr.mxu0 0.0
  %2724 = vmatpush2.msra.mxu0 0.0
  %2725 = vmatprep.subr.mxu0 0.0
  %2726 = vmatpush2.msra.mxu0 0.0
  %2727 = vmatprep.subr.mxu0 0.0
  %2728 = vmatpush2.msra.mxu0 0.0
  %2729 = vmatprep.subr.mxu0 0.0
  %2730 = vmatpush2.msra.mxu0 0.0
  %2731 = vmatprep.mubr.f32.mxu0 0.0
  %2732 = vmatmul.mubr.f32.gmra.mxu0 %v2665
  %v2733 = vpop.f32.mrf.mxu0
  %v2734 = vadd.f32 0.0, %v2733
  %v2735 = vpop.f32.mrf.mxu0
  %2736 = vdwg.mxu0
  %v2737 = vadd.f32 %v2187, %v2734
  %v2738 = vtanh.pop %v2737
  %v2739 = vmul.f32 %v2738, 0.5
  %v2740 = vadd.f32 %v2739, 0.5
  %v2741 = vsel %vm2240, %v2738, %v2740
  %v2742 = vmul.f32 %v2741, %v2660
  %2744 = vrot.lane.b32.xlu0 %v2741, 64
  %v2745 = vpop.permute.xlu0 %2744
  %v2747 = vmul.f32 %v2741, %v2745
  %2749 = vrot.lane.b32.xlu0 %v2747, 32
  %v2750 = vpop.permute.xlu0 %2749
  %v2752 = vadd.f32 %v2742, %v2750
  %v2753 = vtanh.pop %v2752
  %2755 = vrot.lane.b32.xlu0 %v2753, 64
  %v2756 = vpop.permute.xlu0 %2755
  %v2758 = vmul.f32 %v2741, %v2756
  %vm2759 = vcmp.gt.s32.totalorder %v2237, 4
  %v2760 = vsel %vm2759, 1, 0
  %2761 = vset.pattern.permute.xlu0 0
  %2762 = vperm.xlu0 %2761, %v2760
  %v2763 = vpop.permute.xlu0 %2762
  %vm2764 = vcmp.eq.s32.totalorder %v2763, 1
  %v2765 = vsel %vm2764, %v2758, %v2659
  %v2766 = vsel %vm2764, %v2752, %v2660
  %v2767 = vsel %vm2764, %v2758, 0.0
  %2769 = vrot.lane.b32.xlu0 %v2765, 32
  %v2770 = vpop.permute.xlu0 %2769
  %v2771 = vsel %vm359, %v2770, 0
  %2773 = vmatprep.subr.mxu0 0.0
  %2774 = vmatpush1.msra.mxu0 0.0
  %2775 = vmatprep.subr.mxu0 0.0
  %2776 = vmatpush1.msra.mxu0 0.0
  %2777 = vmatprep.subr.mxu0 0.0
  %2778 = vmatpush1.msra.mxu0 0.0
  %2779 = vmatprep.subr.mxu0 0.0
  %2780 = vmatpush1.msra.mxu0 0.0
  %2781 = vmatprep.subr.mxu0 0.0
  %2782 = vmatpush1.msra.mxu0 0.0
  %2783 = vmatprep.subr.mxu0 0.0
  %2784 = vmatpush1.msra.mxu0 0.0
  %2785 = vmatprep.subr.mxu0 0.0
  %2786 = vmatpush1.msra.mxu0 0.0
  %2787 = vmatprep.subr.mxu0 0.0
  %2788 = vmatpush1.msra.mxu0 0.0
  %2789 = vmatprep.subr.mxu0 0.0
  %2790 = vmatpush1.msra.mxu0 0.0
  %2791 = vmatprep.subr.mxu0 0.0
  %2792 = vmatpush1.msra.mxu0 0.0
  %2793 = vmatprep.subr.mxu0 0.0
  %2794 = vmatpush1.msra.mxu0 0.0
  %2795 = vmatprep.subr.mxu0 0.0
  %2796 = vmatpush1.msra.mxu0 0.0
  %2797 = vmatprep.subr.mxu0 0.0
  %2798 = vmatpush1.msra.mxu0 %v2236
  %2799 = vmatprep.subr.mxu0 0.0
  %2800 = vmatpush1.msra.mxu0 %v2235
  %2801 = vmatprep.subr.mxu0 0.0
  %2802 = vmatpush1.msra.mxu0 %v2234
  %2803 = vmatprep.subr.mxu0 0.0
  %2804 = vmatpush1.msra.mxu0 %v2233
  %2805 = vmatprep.subr.mxu0 0.0
  %2806 = vmatpush2.msra.mxu0 0.0
  %2807 = vmatprep.subr.mxu0 0.0
  %2808 = vmatpush2.msra.mxu0 0.0
  %2809 = vmatprep.subr.mxu0 0.0
  %2810 = vmatpush2.msra.mxu0 0.0
  %2811 = vmatprep.subr.mxu0 0.0
  %2812 = vmatpush2.msra.mxu0 0.0
  %2813 = vmatprep.subr.mxu0 0.0
  %2814 = vmatpush2.msra.mxu0 0.0
  %2815 = vmatprep.subr.mxu0 0.0
  %2816 = vmatpush2.msra.mxu0 0.0
  %2817 = vmatprep.subr.mxu0 0.0
  %2818 = vmatpush2.msra.mxu0 0.0
  %2819 = vmatprep.subr.mxu0 0.0
  %2820 = vmatpush2.msra.mxu0 0.0
  %2821 = vmatprep.subr.mxu0 0.0
  %2822 = vmatpush2.msra.mxu0 0.0
  %2823 = vmatprep.subr.mxu0 0.0
  %2824 = vmatpush2.msra.mxu0 0.0
  %2825 = vmatprep.subr.mxu0 0.0
  %2826 = vmatpush2.msra.mxu0 0.0
  %2827 = vmatprep.subr.mxu0 0.0
  %2828 = vmatpush2.msra.mxu0 0.0
  %2829 = vmatprep.subr.mxu0 0.0
  %2830 = vmatpush2.msra.mxu0 0.0
  %2831 = vmatprep.subr.mxu0 0.0
  %2832 = vmatpush2.msra.mxu0 0.0
  %2833 = vmatprep.subr.mxu0 0.0
  %2834 = vmatpush2.msra.mxu0 0.0
  %2835 = vmatprep.subr.mxu0 0.0
  %2836 = vmatpush2.msra.mxu0 0.0
  %2837 = vmatprep.mubr.f32.mxu0 0.0
  %2838 = vmatmul.mubr.f32.gmra.mxu0 %v2771
  %v2839 = vpop.f32.mrf.mxu0
  %v2840 = vadd.f32 0.0, %v2839
  %v2841 = vpop.f32.mrf.mxu0
  %2842 = vdwg.mxu0
  %v2843 = vadd.f32 %v2190, %v2840
  %v2844 = vtanh.pop %v2843
  %v2845 = vmul.f32 %v2844, 0.5
  %v2846 = vadd.f32 %v2845, 0.5
  %v2847 = vsel %vm2240, %v2844, %v2846
  %v2848 = vmul.f32 %v2847, %v2766
  %2850 = vrot.lane.b32.xlu0 %v2847, 64
  %v2851 = vpop.permute.xlu0 %2850
  %v2853 = vmul.f32 %v2847, %v2851
  %2855 = vrot.lane.b32.xlu0 %v2853, 32
  %v2856 = vpop.permute.xlu0 %2855
  %v2858 = vadd.f32 %v2848, %v2856
  %v2859 = vtanh.pop %v2858
  %2861 = vrot.lane.b32.xlu0 %v2859, 64
  %v2862 = vpop.permute.xlu0 %2861
  %v2864 = vmul.f32 %v2847, %v2862
  %vm2865 = vcmp.gt.s32.totalorder %v2237, 5
  %v2866 = vsel %vm2865, 1, 0
  %2867 = vset.pattern.permute.xlu0 0
  %2868 = vperm.xlu0 %2867, %v2866
  %v2869 = vpop.permute.xlu0 %2868
  %vm2870 = vcmp.eq.s32.totalorder %v2869, 1
  %v2871 = vsel %vm2870, %v2864, %v2765
  %v2872 = vsel %vm2870, %v2858, %v2766
  %v2873 = vsel %vm2870, %v2864, 0.0
  %2875 = vrot.lane.b32.xlu0 %v2871, 32
  %v2876 = vpop.permute.xlu0 %2875
  %v2877 = vsel %vm359, %v2876, 0
  %2879 = vmatprep.subr.mxu0 0.0
  %2880 = vmatpush1.msra.mxu0 0.0
  %2881 = vmatprep.subr.mxu0 0.0
  %2882 = vmatpush1.msra.mxu0 0.0
  %2883 = vmatprep.subr.mxu0 0.0
  %2884 = vmatpush1.msra.mxu0 0.0
  %2885 = vmatprep.subr.mxu0 0.0
  %2886 = vmatpush1.msra.mxu0 0.0
  %2887 = vmatprep.subr.mxu0 0.0
  %2888 = vmatpush1.msra.mxu0 0.0
  %2889 = vmatprep.subr.mxu0 0.0
  %2890 = vmatpush1.msra.mxu0 0.0
  %2891 = vmatprep.subr.mxu0 0.0
  %2892 = vmatpush1.msra.mxu0 0.0
  %2893 = vmatprep.subr.mxu0 0.0
  %2894 = vmatpush1.msra.mxu0 0.0
  %2895 = vmatprep.subr.mxu0 0.0
  %2896 = vmatpush1.msra.mxu0 0.0
  %2897 = vmatprep.subr.mxu0 0.0
  %2898 = vmatpush1.msra.mxu0 0.0
  %2899 = vmatprep.subr.mxu0 0.0
  %2900 = vmatpush1.msra.mxu0 0.0
  %2901 = vmatprep.subr.mxu0 0.0
  %2902 = vmatpush1.msra.mxu0 0.0
  %2903 = vmatprep.subr.mxu0 0.0
  %2904 = vmatpush1.msra.mxu0 %v2236
  %2905 = vmatprep.subr.mxu0 0.0
  %2906 = vmatpush1.msra.mxu0 %v2235
  %2907 = vmatprep.subr.mxu0 0.0
  %2908 = vmatpush1.msra.mxu0 %v2234
  %2909 = vmatprep.subr.mxu0 0.0
  %2910 = vmatpush1.msra.mxu0 %v2233
  %2911 = vmatprep.subr.mxu0 0.0
  %2912 = vmatpush2.msra.mxu0 0.0
  %2913 = vmatprep.subr.mxu0 0.0
  %2914 = vmatpush2.msra.mxu0 0.0
  %2915 = vmatprep.subr.mxu0 0.0
  %2916 = vmatpush2.msra.mxu0 0.0
  %2917 = vmatprep.subr.mxu0 0.0
  %2918 = vmatpush2.msra.mxu0 0.0
  %2919 = vmatprep.subr.mxu0 0.0
  %2920 = vmatpush2.msra.mxu0 0.0
  %2921 = vmatprep.subr.mxu0 0.0
  %2922 = vmatpush2.msra.mxu0 0.0
  %2923 = vmatprep.subr.mxu0 0.0
  %2924 = vmatpush2.msra.mxu0 0.0
  %2925 = vmatprep.subr.mxu0 0.0
  %2926 = vmatpush2.msra.mxu0 0.0
  %2927 = vmatprep.subr.mxu0 0.0
  %2928 = vmatpush2.msra.mxu0 0.0
  %2929 = vmatprep.subr.mxu0 0.0
  %2930 = vmatpush2.msra.mxu0 0.0
  %2931 = vmatprep.subr.mxu0 0.0
  %2932 = vmatpush2.msra.mxu0 0.0
  %2933 = vmatprep.subr.mxu0 0.0
  %2934 = vmatpush2.msra.mxu0 0.0
  %2935 = vmatprep.subr.mxu0 0.0
  %2936 = vmatpush2.msra.mxu0 0.0
  %2937 = vmatprep.subr.mxu0 0.0
  %2938 = vmatpush2.msra.mxu0 0.0
  %2939 = vmatprep.subr.mxu0 0.0
  %2940 = vmatpush2.msra.mxu0 0.0
  %2941 = vmatprep.subr.mxu0 0.0
  %2942 = vmatpush2.msra.mxu0 0.0
  %2943 = vmatprep.mubr.f32.mxu0 0.0
  %2944 = vmatmul.mubr.f32.gmra.mxu0 %v2877
  %v2945 = vpop.f32.mrf.mxu0
  %v2946 = vadd.f32 0.0, %v2945
  %v2947 = vpop.f32.mrf.mxu0
  %2948 = vdwg.mxu0
  %v2949 = vadd.f32 %v2195, %v2946
  %v2950 = vtanh.pop %v2949
  %v2951 = vmul.f32 %v2950, 0.5
  %v2952 = vadd.f32 %v2951, 0.5
  %v2953 = vsel %vm2240, %v2950, %v2952
  %v2954 = vmul.f32 %v2953, %v2872
  %2956 = vrot.lane.b32.xlu0 %v2953, 64
  %v2957 = vpop.permute.xlu0 %2956
  %v2959 = vmul.f32 %v2953, %v2957
  %2961 = vrot.lane.b32.xlu0 %v2959, 32
  %v2962 = vpop.permute.xlu0 %2961
  %v2964 = vadd.f32 %v2954, %v2962
  %v2965 = vtanh.pop %v2964
  %2967 = vrot.lane.b32.xlu0 %v2965, 64
  %v2968 = vpop.permute.xlu0 %2967
  %v2970 = vmul.f32 %v2953, %v2968
  %vm2971 = vcmp.gt.s32.totalorder %v2237, 6
  %v2972 = vsel %vm2971, 1, 0
  %2973 = vset.pattern.permute.xlu0 0
  %2974 = vperm.xlu0 %2973, %v2972
  %v2975 = vpop.permute.xlu0 %2974
  %vm2976 = vcmp.eq.s32.totalorder %v2975, 1
  %v2977 = vsel %vm2976, %v2970, %v2871
  %v2978 = vsel %vm2976, %v2964, %v2872
  %v2979 = vsel %vm2976, %v2970, 0.0
  %2981 = vrot.lane.b32.xlu0 %v2977, 32
  %v2982 = vpop.permute.xlu0 %2981
  %v2983 = vsel %vm359, %v2982, 0
  %2985 = vmatprep.subr.mxu0 0.0
  %2986 = vmatpush1.msra.mxu0 0.0
  %2987 = vmatprep.subr.mxu0 0.0
  %2988 = vmatpush1.msra.mxu0 0.0
  %2989 = vmatprep.subr.mxu0 0.0
  %2990 = vmatpush1.msra.mxu0 0.0
  %2991 = vmatprep.subr.mxu0 0.0
  %2992 = vmatpush1.msra.mxu0 0.0
  %2993 = vmatprep.subr.mxu0 0.0
  %2994 = vmatpush1.msra.mxu0 0.0
  %2995 = vmatprep.subr.mxu0 0.0
  %2996 = vmatpush1.msra.mxu0 0.0
  %2997 = vmatprep.subr.mxu0 0.0
  %2998 = vmatpush1.msra.mxu0 0.0
  %2999 = vmatprep.subr.mxu0 0.0
  %3000 = vmatpush1.msra.mxu0 0.0
  %3001 = vmatprep.subr.mxu0 0.0
  %3002 = vmatpush1.msra.mxu0 0.0
  %3003 = vmatprep.subr.mxu0 0.0
  %3004 = vmatpush1.msra.mxu0 0.0
  %3005 = vmatprep.subr.mxu0 0.0
  %3006 = vmatpush1.msra.mxu0 0.0
  %3007 = vmatprep.subr.mxu0 0.0
  %3008 = vmatpush1.msra.mxu0 0.0
  %3009 = vmatprep.subr.mxu0 0.0
  %3010 = vmatpush1.msra.mxu0 %v2236
  %3011 = vmatprep.subr.mxu0 0.0
  %3012 = vmatpush1.msra.mxu0 %v2235
  %3013 = vmatprep.subr.mxu0 0.0
  %3014 = vmatpush1.msra.mxu0 %v2234
  %3015 = vmatprep.subr.mxu0 0.0
  %3016 = vmatpush1.msra.mxu0 %v2233
  %3017 = vmatprep.subr.mxu0 0.0
  %3018 = vmatpush2.msra.mxu0 0.0
  %3019 = vmatprep.subr.mxu0 0.0
  %3020 = vmatpush2.msra.mxu0 0.0
  %3021 = vmatprep.subr.mxu0 0.0
  %3022 = vmatpush2.msra.mxu0 0.0
  %3023 = vmatprep.subr.mxu0 0.0
  %3024 = vmatpush2.msra.mxu0 0.0
  %3025 = vmatprep.subr.mxu0 0.0
  %3026 = vmatpush2.msra.mxu0 0.0
  %3027 = vmatprep.subr.mxu0 0.0
  %3028 = vmatpush2.msra.mxu0 0.0
  %3029 = vmatprep.subr.mxu0 0.0
  %3030 = vmatpush2.msra.mxu0 0.0
  %3031 = vmatprep.subr.mxu0 0.0
  %3032 = vmatpush2.msra.mxu0 0.0
  %3033 = vmatprep.subr.mxu0 0.0
  %3034 = vmatpush2.msra.mxu0 0.0
  %3035 = vmatprep.subr.mxu0 0.0
  %3036 = vmatpush2.msra.mxu0 0.0
  %3037 = vmatprep.subr.mxu0 0.0
  %3038 = vmatpush2.msra.mxu0 0.0
  %3039 = vmatprep.subr.mxu0 0.0
  %3040 = vmatpush2.msra.mxu0 0.0
  %3041 = vmatprep.subr.mxu0 0.0
  %3042 = vmatpush2.msra.mxu0 0.0
  %3043 = vmatprep.subr.mxu0 0.0
  %3044 = vmatpush2.msra.mxu0 0.0
  %3045 = vmatprep.subr.mxu0 0.0
  %3046 = vmatpush2.msra.mxu0 0.0
  %3047 = vmatprep.subr.mxu0 0.0
  %3048 = vmatpush2.msra.mxu0 0.0
  %3049 = vmatprep.mubr.f32.mxu0 0.0
  %3050 = vmatmul.mubr.f32.gmra.mxu0 %v2983
  %v3051 = vpop.f32.mrf.mxu0
  %v3052 = vadd.f32 0.0, %v3051
  %v3053 = vpop.f32.mrf.mxu0
  %3054 = vdwg.mxu0
  %v3055 = vadd.f32 %v2198, %v3052
  %v3056 = vtanh.pop %v3055
  %v3057 = vmul.f32 %v3056, 0.5
  %v3058 = vadd.f32 %v3057, 0.5
  %v3059 = vsel %vm2240, %v3056, %v3058
  %v3060 = vmul.f32 %v3059, %v2978
  %3062 = vrot.lane.b32.xlu0 %v3059, 64
  %v3063 = vpop.permute.xlu0 %3062
  %v3065 = vmul.f32 %v3059, %v3063
  %3067 = vrot.lane.b32.xlu0 %v3065, 32
  %v3068 = vpop.permute.xlu0 %3067
  %v3070 = vadd.f32 %v3060, %v3068
  %v3071 = vtanh.pop %v3070
  %3073 = vrot.lane.b32.xlu0 %v3071, 64
  %v3074 = vpop.permute.xlu0 %3073
  %v3076 = vmul.f32 %v3059, %v3074
  %vm3077 = vcmp.gt.s32.totalorder %v2237, 7
  %v3078 = vsel %vm3077, 1, 0
  %3079 = vset.pattern.permute.xlu0 0
  %3080 = vperm.xlu0 %3079, %v3078
  %v3081 = vpop.permute.xlu0 %3080
  %vm3082 = vcmp.eq.s32.totalorder %v3081, 1
  %v3083 = vsel %vm3082, %v3076, %v2977
  %v3084 = vsel %vm3082, %v3070, %v2978
  %v3085 = vsel %vm3082, %v3076, 0.0
  %3087 = vrot.lane.b32.xlu0 %v3083, 32
  %v3088 = vpop.permute.xlu0 %3087
  %v3089 = vsel %vm359, %v3088, 0
  %3091 = vmatprep.subr.mxu0 0.0
  %3092 = vmatpush1.msra.mxu0 0.0
  %3093 = vmatprep.subr.mxu0 0.0
  %3094 = vmatpush1.msra.mxu0 0.0
  %3095 = vmatprep.subr.mxu0 0.0
  %3096 = vmatpush1.msra.mxu0 0.0
  %3097 = vmatprep.subr.mxu0 0.0
  %3098 = vmatpush1.msra.mxu0 0.0
  %3099 = vmatprep.subr.mxu0 0.0
  %3100 = vmatpush1.msra.mxu0 0.0
  %3101 = vmatprep.subr.mxu0 0.0
  %3102 = vmatpush1.msra.mxu0 0.0
  %3103 = vmatprep.subr.mxu0 0.0
  %3104 = vmatpush1.msra.mxu0 0.0
  %3105 = vmatprep.subr.mxu0 0.0
  %3106 = vmatpush1.msra.mxu0 0.0
  %3107 = vmatprep.subr.mxu0 0.0
  %3108 = vmatpush1.msra.mxu0 0.0
  %3109 = vmatprep.subr.mxu0 0.0
  %3110 = vmatpush1.msra.mxu0 0.0
  %3111 = vmatprep.subr.mxu0 0.0
  %3112 = vmatpush1.msra.mxu0 0.0
  %3113 = vmatprep.subr.mxu0 0.0
  %3114 = vmatpush1.msra.mxu0 0.0
  %3115 = vmatprep.subr.mxu0 0.0
  %3116 = vmatpush1.msra.mxu0 %v2236
  %3117 = vmatprep.subr.mxu0 0.0
  %3118 = vmatpush1.msra.mxu0 %v2235
  %3119 = vmatprep.subr.mxu0 0.0
  %3120 = vmatpush1.msra.mxu0 %v2234
  %3121 = vmatprep.subr.mxu0 0.0
  %3122 = vmatpush1.msra.mxu0 %v2233
  %3123 = vmatprep.subr.mxu0 0.0
  %3124 = vmatpush2.msra.mxu0 0.0
  %3125 = vmatprep.subr.mxu0 0.0
  %3126 = vmatpush2.msra.mxu0 0.0
  %3127 = vmatprep.subr.mxu0 0.0
  %3128 = vmatpush2.msra.mxu0 0.0
  %3129 = vmatprep.subr.mxu0 0.0
  %3130 = vmatpush2.msra.mxu0 0.0
  %3131 = vmatprep.subr.mxu0 0.0
  %3132 = vmatpush2.msra.mxu0 0.0
  %3133 = vmatprep.subr.mxu0 0.0
  %3134 = vmatpush2.msra.mxu0 0.0
  %3135 = vmatprep.subr.mxu0 0.0
  %3136 = vmatpush2.msra.mxu0 0.0
  %3137 = vmatprep.subr.mxu0 0.0
  %3138 = vmatpush2.msra.mxu0 0.0
  %3139 = vmatprep.subr.mxu0 0.0
  %3140 = vmatpush2.msra.mxu0 0.0
  %3141 = vmatprep.subr.mxu0 0.0
  %3142 = vmatpush2.msra.mxu0 0.0
  %3143 = vmatprep.subr.mxu0 0.0
  %3144 = vmatpush2.msra.mxu0 0.0
  %3145 = vmatprep.subr.mxu0 0.0
  %3146 = vmatpush2.msra.mxu0 0.0
  %3147 = vmatprep.subr.mxu0 0.0
  %3148 = vmatpush2.msra.mxu0 0.0
  %3149 = vmatprep.subr.mxu0 0.0
  %3150 = vmatpush2.msra.mxu0 0.0
  %3151 = vmatprep.subr.mxu0 0.0
  %3152 = vmatpush2.msra.mxu0 0.0
  %3153 = vmatprep.subr.mxu0 0.0
  %3154 = vmatpush2.msra.mxu0 0.0
  %3155 = vmatprep.mubr.f32.mxu0 0.0
  %3156 = vmatmul.mubr.f32.gmra.mxu0 %v3089
  %v3157 = vpop.f32.mrf.mxu0
  %v3158 = vadd.f32 0.0, %v3157
  %v3159 = vpop.f32.mrf.mxu0
  %3160 = vdwg.mxu0
  %v3161 = vadd.f32 %v2203, %v3158
  %v3162 = vtanh.pop %v3161
  %v3163 = vmul.f32 %v3162, 0.5
  %v3164 = vadd.f32 %v3163, 0.5
  %v3165 = vsel %vm2240, %v3162, %v3164
  %v3166 = vmul.f32 %v3165, %v3084
  %3168 = vrot.lane.b32.xlu0 %v3165, 64
  %v3169 = vpop.permute.xlu0 %3168
  %v3171 = vmul.f32 %v3165, %v3169
  %3173 = vrot.lane.b32.xlu0 %v3171, 32
  %v3174 = vpop.permute.xlu0 %3173
  %v3176 = vadd.f32 %v3166, %v3174
  %v3177 = vtanh.pop %v3176
  %3179 = vrot.lane.b32.xlu0 %v3177, 64
  %v3180 = vpop.permute.xlu0 %3179
  %v3182 = vmul.f32 %v3165, %v3180
  %vm3183 = vcmp.gt.s32.totalorder %v2237, 8
  %v3184 = vsel %vm3183, 1, 0
  %3185 = vset.pattern.permute.xlu0 0
  %3186 = vperm.xlu0 %3185, %v3184
  %v3187 = vpop.permute.xlu0 %3186
  %vm3188 = vcmp.eq.s32.totalorder %v3187, 1
  %v3189 = vsel %vm3188, %v3182, %v3083
  %v3190 = vsel %vm3188, %v3176, %v3084
  %v3191 = vsel %vm3188, %v3182, 0.0
  %3193 = vrot.lane.b32.xlu0 %v3189, 32
  %v3194 = vpop.permute.xlu0 %3193
  %v3195 = vsel %vm359, %v3194, 0
  %3197 = vmatprep.subr.mxu0 0.0
  %3198 = vmatpush1.msra.mxu0 0.0
  %3199 = vmatprep.subr.mxu0 0.0
  %3200 = vmatpush1.msra.mxu0 0.0
  %3201 = vmatprep.subr.mxu0 0.0
  %3202 = vmatpush1.msra.mxu0 0.0
  %3203 = vmatprep.subr.mxu0 0.0
  %3204 = vmatpush1.msra.mxu0 0.0
  %3205 = vmatprep.subr.mxu0 0.0
  %3206 = vmatpush1.msra.mxu0 0.0
  %3207 = vmatprep.subr.mxu0 0.0
  %3208 = vmatpush1.msra.mxu0 0.0
  %3209 = vmatprep.subr.mxu0 0.0
  %3210 = vmatpush1.msra.mxu0 0.0
  %3211 = vmatprep.subr.mxu0 0.0
  %3212 = vmatpush1.msra.mxu0 0.0
  %3213 = vmatprep.subr.mxu0 0.0
  %3214 = vmatpush1.msra.mxu0 0.0
  %3215 = vmatprep.subr.mxu0 0.0
  %3216 = vmatpush1.msra.mxu0 0.0
  %3217 = vmatprep.subr.mxu0 0.0
  %3218 = vmatpush1.msra.mxu0 0.0
  %3219 = vmatprep.subr.mxu0 0.0
  %3220 = vmatpush1.msra.mxu0 0.0
  %3221 = vmatprep.subr.mxu0 0.0
  %3222 = vmatpush1.msra.mxu0 %v2236
  %3223 = vmatprep.subr.mxu0 0.0
  %3224 = vmatpush1.msra.mxu0 %v2235
  %3225 = vmatprep.subr.mxu0 0.0
  %3226 = vmatpush1.msra.mxu0 %v2234
  %3227 = vmatprep.subr.mxu0 0.0
  %3228 = vmatpush1.msra.mxu0 %v2233
  %3229 = vmatprep.subr.mxu0 0.0
  %3230 = vmatpush2.msra.mxu0 0.0
  %3231 = vmatprep.subr.mxu0 0.0
  %3232 = vmatpush2.msra.mxu0 0.0
  %3233 = vmatprep.subr.mxu0 0.0
  %3234 = vmatpush2.msra.mxu0 0.0
  %3235 = vmatprep.subr.mxu0 0.0
  %3236 = vmatpush2.msra.mxu0 0.0
  %3237 = vmatprep.subr.mxu0 0.0
  %3238 = vmatpush2.msra.mxu0 0.0
  %3239 = vmatprep.subr.mxu0 0.0
  %3240 = vmatpush2.msra.mxu0 0.0
  %3241 = vmatprep.subr.mxu0 0.0
  %3242 = vmatpush2.msra.mxu0 0.0
  %3243 = vmatprep.subr.mxu0 0.0
  %3244 = vmatpush2.msra.mxu0 0.0
  %3245 = vmatprep.subr.mxu0 0.0
  %3246 = vmatpush2.msra.mxu0 0.0
  %3247 = vmatprep.subr.mxu0 0.0
  %3248 = vmatpush2.msra.mxu0 0.0
  %3249 = vmatprep.subr.mxu0 0.0
  %3250 = vmatpush2.msra.mxu0 0.0
  %3251 = vmatprep.subr.mxu0 0.0
  %3252 = vmatpush2.msra.mxu0 0.0
  %3253 = vmatprep.subr.mxu0 0.0
  %3254 = vmatpush2.msra.mxu0 0.0
  %3255 = vmatprep.subr.mxu0 0.0
  %3256 = vmatpush2.msra.mxu0 0.0
  %3257 = vmatprep.subr.mxu0 0.0
  %3258 = vmatpush2.msra.mxu0 0.0
  %3259 = vmatprep.subr.mxu0 0.0
  %3260 = vmatpush2.msra.mxu0 0.0
  %3261 = vmatprep.mubr.f32.mxu0 0.0
  %3262 = vmatmul.mubr.f32.gmra.mxu0 %v3195
  %v3263 = vpop.f32.mrf.mxu0
  %v3264 = vadd.f32 0.0, %v3263
  %v3265 = vpop.f32.mrf.mxu0
  %3266 = vdwg.mxu0
  %v3267 = vadd.f32 %v2206, %v3264
  %v3268 = vtanh.pop %v3267
  %v3269 = vmul.f32 %v3268, 0.5
  %v3270 = vadd.f32 %v3269, 0.5
  %v3271 = vsel %vm2240, %v3268, %v3270
  %v3272 = vmul.f32 %v3271, %v3190
  %3274 = vrot.lane.b32.xlu0 %v3271, 64
  %v3275 = vpop.permute.xlu0 %3274
  %v3277 = vmul.f32 %v3271, %v3275
  %3279 = vrot.lane.b32.xlu0 %v3277, 32
  %v3280 = vpop.permute.xlu0 %3279
  %v3282 = vadd.f32 %v3272, %v3280
  %v3283 = vtanh.pop %v3282
  %3285 = vrot.lane.b32.xlu0 %v3283, 64
  %v3286 = vpop.permute.xlu0 %3285
  %v3288 = vmul.f32 %v3271, %v3286
  %vm3289 = vcmp.gt.s32.totalorder %v2237, 9
  %v3290 = vsel %vm3289, 1, 0
  %3291 = vset.pattern.permute.xlu0 0
  %3292 = vperm.xlu0 %3291, %v3290
  %v3293 = vpop.permute.xlu0 %3292
  %vm3294 = vcmp.eq.s32.totalorder %v3293, 1
  %v3295 = vsel %vm3294, %v3288, %v3189
  %v3296 = vsel %vm3294, %v3282, %v3190
  %v3297 = vsel %vm3294, %v3288, 0.0
  %3299 = vrot.lane.b32.xlu0 %v3295, 32
  %v3300 = vpop.permute.xlu0 %3299
  %v3301 = vsel %vm359, %v3300, 0
  %3303 = vmatprep.subr.mxu0 0.0
  %3304 = vmatpush1.msra.mxu0 0.0
  %3305 = vmatprep.subr.mxu0 0.0
  %3306 = vmatpush1.msra.mxu0 0.0
  %3307 = vmatprep.subr.mxu0 0.0
  %3308 = vmatpush1.msra.mxu0 0.0
  %3309 = vmatprep.subr.mxu0 0.0
  %3310 = vmatpush1.msra.mxu0 0.0
  %3311 = vmatprep.subr.mxu0 0.0
  %3312 = vmatpush1.msra.mxu0 0.0
  %3313 = vmatprep.subr.mxu0 0.0
  %3314 = vmatpush1.msra.mxu0 0.0
  %3315 = vmatprep.subr.mxu0 0.0
  %3316 = vmatpush1.msra.mxu0 0.0
  %3317 = vmatprep.subr.mxu0 0.0
  %3318 = vmatpush1.msra.mxu0 0.0
  %3319 = vmatprep.subr.mxu0 0.0
  %3320 = vmatpush1.msra.mxu0 0.0
  %3321 = vmatprep.subr.mxu0 0.0
  %3322 = vmatpush1.msra.mxu0 0.0
  %3323 = vmatprep.subr.mxu0 0.0
  %3324 = vmatpush1.msra.mxu0 0.0
  %3325 = vmatprep.subr.mxu0 0.0
  %3326 = vmatpush1.msra.mxu0 0.0
  %3327 = vmatprep.subr.mxu0 0.0
  %3328 = vmatpush1.msra.mxu0 %v2236
  %3329 = vmatprep.subr.mxu0 0.0
  %3330 = vmatpush1.msra.mxu0 %v2235
  %3331 = vmatprep.subr.mxu0 0.0
  %3332 = vmatpush1.msra.mxu0 %v2234
  %3333 = vmatprep.subr.mxu0 0.0
  %3334 = vmatpush1.msra.mxu0 %v2233
  %3335 = vmatprep.subr.mxu0 0.0
  %3336 = vmatpush2.msra.mxu0 0.0
  %3337 = vmatprep.subr.mxu0 0.0
  %3338 = vmatpush2.msra.mxu0 0.0
  %3339 = vmatprep.subr.mxu0 0.0
  %3340 = vmatpush2.msra.mxu0 0.0
  %3341 = vmatprep.subr.mxu0 0.0
  %3342 = vmatpush2.msra.mxu0 0.0
  %3343 = vmatprep.subr.mxu0 0.0
  %3344 = vmatpush2.msra.mxu0 0.0
  %3345 = vmatprep.subr.mxu0 0.0
  %3346 = vmatpush2.msra.mxu0 0.0
  %3347 = vmatprep.subr.mxu0 0.0
  %3348 = vmatpush2.msra.mxu0 0.0
  %3349 = vmatprep.subr.mxu0 0.0
  %3350 = vmatpush2.msra.mxu0 0.0
  %3351 = vmatprep.subr.mxu0 0.0
  %3352 = vmatpush2.msra.mxu0 0.0
  %3353 = vmatprep.subr.mxu0 0.0
  %3354 = vmatpush2.msra.mxu0 0.0
  %3355 = vmatprep.subr.mxu0 0.0
  %3356 = vmatpush2.msra.mxu0 0.0
  %3357 = vmatprep.subr.mxu0 0.0
  %3358 = vmatpush2.msra.mxu0 0.0
  %3359 = vmatprep.subr.mxu0 0.0
  %3360 = vmatpush2.msra.mxu0 0.0
  %3361 = vmatprep.subr.mxu0 0.0
  %3362 = vmatpush2.msra.mxu0 0.0
  %3363 = vmatprep.subr.mxu0 0.0
  %3364 = vmatpush2.msra.mxu0 0.0
  %3365 = vmatprep.subr.mxu0 0.0
  %3366 = vmatpush2.msra.mxu0 0.0
  %3367 = vmatprep.mubr.f32.mxu0 0.0
  %3368 = vmatmul.mubr.f32.gmra.mxu0 %v3301
  %v3369 = vpop.f32.mrf.mxu0
  %v3370 = vadd.f32 0.0, %v3369
  %v3371 = vpop.f32.mrf.mxu0
  %3372 = vdwg.mxu0
  %v3373 = vadd.f32 %v2211, %v3370
  %v3374 = vtanh.pop %v3373
  %v3375 = vmul.f32 %v3374, 0.5
  %v3376 = vadd.f32 %v3375, 0.5
  %v3377 = vsel %vm2240, %v3374, %v3376
  %v3378 = vmul.f32 %v3377, %v3296
  %3380 = vrot.lane.b32.xlu0 %v3377, 64
  %v3381 = vpop.permute.xlu0 %3380
  %v3383 = vmul.f32 %v3377, %v3381
  %3385 = vrot.lane.b32.xlu0 %v3383, 32
  %v3386 = vpop.permute.xlu0 %3385
  %v3388 = vadd.f32 %v3378, %v3386
  %v3389 = vtanh.pop %v3388
  %3391 = vrot.lane.b32.xlu0 %v3389, 64
  %v3392 = vpop.permute.xlu0 %3391
  %v3394 = vmul.f32 %v3377, %v3392
  %vm3395 = vcmp.gt.s32.totalorder %v2237, 10
  %v3396 = vsel %vm3395, 1, 0
  %3397 = vset.pattern.permute.xlu0 0
  %3398 = vperm.xlu0 %3397, %v3396
  %v3399 = vpop.permute.xlu0 %3398
  %vm3400 = vcmp.eq.s32.totalorder %v3399, 1
  %v3401 = vsel %vm3400, %v3394, %v3295
  %v3402 = vsel %vm3400, %v3388, %v3296
  %v3403 = vsel %vm3400, %v3394, 0.0
  %3405 = vrot.lane.b32.xlu0 %v3401, 32
  %v3406 = vpop.permute.xlu0 %3405
  %v3407 = vsel %vm359, %v3406, 0
  %3409 = vmatprep.subr.mxu0 0.0
  %3410 = vmatpush1.msra.mxu0 0.0
  %3411 = vmatprep.subr.mxu0 0.0
  %3412 = vmatpush1.msra.mxu0 0.0
  %3413 = vmatprep.subr.mxu0 0.0
  %3414 = vmatpush1.msra.mxu0 0.0
  %3415 = vmatprep.subr.mxu0 0.0
  %3416 = vmatpush1.msra.mxu0 0.0
  %3417 = vmatprep.subr.mxu0 0.0
  %3418 = vmatpush1.msra.mxu0 0.0
  %3419 = vmatprep.subr.mxu0 0.0
  %3420 = vmatpush1.msra.mxu0 0.0
  %3421 = vmatprep.subr.mxu0 0.0
  %3422 = vmatpush1.msra.mxu0 0.0
  %3423 = vmatprep.subr.mxu0 0.0
  %3424 = vmatpush1.msra.mxu0 0.0
  %3425 = vmatprep.subr.mxu0 0.0
  %3426 = vmatpush1.msra.mxu0 0.0
  %3427 = vmatprep.subr.mxu0 0.0
  %3428 = vmatpush1.msra.mxu0 0.0
  %3429 = vmatprep.subr.mxu0 0.0
  %3430 = vmatpush1.msra.mxu0 0.0
  %3431 = vmatprep.subr.mxu0 0.0
  %3432 = vmatpush1.msra.mxu0 0.0
  %3433 = vmatprep.subr.mxu0 0.0
  %3434 = vmatpush1.msra.mxu0 %v2236
  %3435 = vmatprep.subr.mxu0 0.0
  %3436 = vmatpush1.msra.mxu0 %v2235
  %3437 = vmatprep.subr.mxu0 0.0
  %3438 = vmatpush1.msra.mxu0 %v2234
  %3439 = vmatprep.subr.mxu0 0.0
  %3440 = vmatpush1.msra.mxu0 %v2233
  %3441 = vmatprep.subr.mxu0 0.0
  %3442 = vmatpush2.msra.mxu0 0.0
  %3443 = vmatprep.subr.mxu0 0.0
  %3444 = vmatpush2.msra.mxu0 0.0
  %3445 = vmatprep.subr.mxu0 0.0
  %3446 = vmatpush2.msra.mxu0 0.0
  %3447 = vmatprep.subr.mxu0 0.0
  %3448 = vmatpush2.msra.mxu0 0.0
  %3449 = vmatprep.subr.mxu0 0.0
  %3450 = vmatpush2.msra.mxu0 0.0
  %3451 = vmatprep.subr.mxu0 0.0
  %3452 = vmatpush2.msra.mxu0 0.0
  %3453 = vmatprep.subr.mxu0 0.0
  %3454 = vmatpush2.msra.mxu0 0.0
  %3455 = vmatprep.subr.mxu0 0.0
  %3456 = vmatpush2.msra.mxu0 0.0
  %3457 = vmatprep.subr.mxu0 0.0
  %3458 = vmatpush2.msra.mxu0 0.0
  %3459 = vmatprep.subr.mxu0 0.0
  %3460 = vmatpush2.msra.mxu0 0.0
  %3461 = vmatprep.subr.mxu0 0.0
  %3462 = vmatpush2.msra.mxu0 0.0
  %3463 = vmatprep.subr.mxu0 0.0
  %3464 = vmatpush2.msra.mxu0 0.0
  %3465 = vmatprep.subr.mxu0 0.0
  %3466 = vmatpush2.msra.mxu0 0.0
  %3467 = vmatprep.subr.mxu0 0.0
  %3468 = vmatpush2.msra.mxu0 0.0
  %3469 = vmatprep.subr.mxu0 0.0
  %3470 = vmatpush2.msra.mxu0 0.0
  %3471 = vmatprep.subr.mxu0 0.0
  %3472 = vmatpush2.msra.mxu0 0.0
  %3473 = vmatprep.mubr.f32.mxu0 0.0
  %3474 = vmatmul.mubr.f32.gmra.mxu0 %v3407
  %v3475 = vpop.f32.mrf.mxu0
  %v3476 = vadd.f32 0.0, %v3475
  %v3477 = vpop.f32.mrf.mxu0
  %3478 = vdwg.mxu0
  %v3479 = vadd.f32 %v2214, %v3476
  %v3480 = vtanh.pop %v3479
  %v3481 = vmul.f32 %v3480, 0.5
  %v3482 = vadd.f32 %v3481, 0.5
  %v3483 = vsel %vm2240, %v3480, %v3482
  %v3484 = vmul.f32 %v3483, %v3402
  %3486 = vrot.lane.b32.xlu0 %v3483, 64
  %v3487 = vpop.permute.xlu0 %3486
  %v3489 = vmul.f32 %v3483, %v3487
  %3491 = vrot.lane.b32.xlu0 %v3489, 32
  %v3492 = vpop.permute.xlu0 %3491
  %v3494 = vadd.f32 %v3484, %v3492
  %v3495 = vtanh.pop %v3494
  %3497 = vrot.lane.b32.xlu0 %v3495, 64
  %v3498 = vpop.permute.xlu0 %3497
  %v3500 = vmul.f32 %v3483, %v3498
  %vm3501 = vcmp.gt.s32.totalorder %v2237, 11
  %v3502 = vsel %vm3501, 1, 0
  %3503 = vset.pattern.permute.xlu0 0
  %3504 = vperm.xlu0 %3503, %v3502
  %v3505 = vpop.permute.xlu0 %3504
  %vm3506 = vcmp.eq.s32.totalorder %v3505, 1
  %v3507 = vsel %vm3506, %v3500, %v3401
  %v3508 = vsel %vm3506, %v3494, %v3402
  %v3509 = vsel %vm3506, %v3500, 0.0
  %3511 = vrot.lane.b32.xlu0 %v3507, 32
  %v3512 = vpop.permute.xlu0 %3511
  %v3513 = vsel %vm359, %v3512, 0
  %3515 = vmatprep.subr.mxu0 0.0
  %3516 = vmatpush1.msra.mxu0 0.0
  %3517 = vmatprep.subr.mxu0 0.0
  %3518 = vmatpush1.msra.mxu0 0.0
  %3519 = vmatprep.subr.mxu0 0.0
  %3520 = vmatpush1.msra.mxu0 0.0
  %3521 = vmatprep.subr.mxu0 0.0
  %3522 = vmatpush1.msra.mxu0 0.0
  %3523 = vmatprep.subr.mxu0 0.0
  %3524 = vmatpush1.msra.mxu0 0.0
  %3525 = vmatprep.subr.mxu0 0.0
  %3526 = vmatpush1.msra.mxu0 0.0
  %3527 = vmatprep.subr.mxu0 0.0
  %3528 = vmatpush1.msra.mxu0 0.0
  %3529 = vmatprep.subr.mxu0 0.0
  %3530 = vmatpush1.msra.mxu0 0.0
  %3531 = vmatprep.subr.mxu0 0.0
  %3532 = vmatpush1.msra.mxu0 0.0
  %3533 = vmatprep.subr.mxu0 0.0
  %3534 = vmatpush1.msra.mxu0 0.0
  %3535 = vmatprep.subr.mxu0 0.0
  %3536 = vmatpush1.msra.mxu0 0.0
  %3537 = vmatprep.subr.mxu0 0.0
  %3538 = vmatpush1.msra.mxu0 0.0
  %3539 = vmatprep.subr.mxu0 0.0
  %3540 = vmatpush1.msra.mxu0 %v2236
  %3541 = vmatprep.subr.mxu0 0.0
  %3542 = vmatpush1.msra.mxu0 %v2235
  %3543 = vmatprep.subr.mxu0 0.0
  %3544 = vmatpush1.msra.mxu0 %v2234
  %3545 = vmatprep.subr.mxu0 0.0
  %3546 = vmatpush1.msra.mxu0 %v2233
  %3547 = vmatprep.subr.mxu0 0.0
  %3548 = vmatpush2.msra.mxu0 0.0
  %3549 = vmatprep.subr.mxu0 0.0
  %3550 = vmatpush2.msra.mxu0 0.0
  %3551 = vmatprep.subr.mxu0 0.0
  %3552 = vmatpush2.msra.mxu0 0.0
  %3553 = vmatprep.subr.mxu0 0.0
  %3554 = vmatpush2.msra.mxu0 0.0
  %3555 = vmatprep.subr.mxu0 0.0
  %3556 = vmatpush2.msra.mxu0 0.0
  %3557 = vmatprep.subr.mxu0 0.0
  %3558 = vmatpush2.msra.mxu0 0.0
  %3559 = vmatprep.subr.mxu0 0.0
  %3560 = vmatpush2.msra.mxu0 0.0
  %3561 = vmatprep.subr.mxu0 0.0
  %3562 = vmatpush2.msra.mxu0 0.0
  %3563 = vmatprep.subr.mxu0 0.0
  %3564 = vmatpush2.msra.mxu0 0.0
  %3565 = vmatprep.subr.mxu0 0.0
  %3566 = vmatpush2.msra.mxu0 0.0
  %3567 = vmatprep.subr.mxu0 0.0
  %3568 = vmatpush2.msra.mxu0 0.0
  %3569 = vmatprep.subr.mxu0 0.0
  %3570 = vmatpush2.msra.mxu0 0.0
  %3571 = vmatprep.subr.mxu0 0.0
  %3572 = vmatpush2.msra.mxu0 0.0
  %3573 = vmatprep.subr.mxu0 0.0
  %3574 = vmatpush2.msra.mxu0 0.0
  %3575 = vmatprep.subr.mxu0 0.0
  %3576 = vmatpush2.msra.mxu0 0.0
  %3577 = vmatprep.subr.mxu0 0.0
  %3578 = vmatpush2.msra.mxu0 0.0
  %3579 = vmatprep.mubr.f32.mxu0 0.0
  %3580 = vmatmul.mubr.f32.gmra.mxu0 %v3513
  %v3581 = vpop.f32.mrf.mxu0
  %v3582 = vadd.f32 0.0, %v3581
  %v3583 = vpop.f32.mrf.mxu0
  %3584 = vdwg.mxu0
  %v3585 = vadd.f32 %v2219, %v3582
  %v3586 = vtanh.pop %v3585
  %v3587 = vmul.f32 %v3586, 0.5
  %v3588 = vadd.f32 %v3587, 0.5
  %v3589 = vsel %vm2240, %v3586, %v3588
  %v3590 = vmul.f32 %v3589, %v3508
  %3592 = vrot.lane.b32.xlu0 %v3589, 64
  %v3593 = vpop.permute.xlu0 %3592
  %v3595 = vmul.f32 %v3589, %v3593
  %3597 = vrot.lane.b32.xlu0 %v3595, 32
  %v3598 = vpop.permute.xlu0 %3597
  %v3600 = vadd.f32 %v3590, %v3598
  %v3601 = vtanh.pop %v3600
  %3603 = vrot.lane.b32.xlu0 %v3601, 64
  %v3604 = vpop.permute.xlu0 %3603
  %v3606 = vmul.f32 %v3589, %v3604
  %vm3607 = vcmp.gt.s32.totalorder %v2237, 12
  %v3608 = vsel %vm3607, 1, 0
  %3609 = vset.pattern.permute.xlu0 0
  %3610 = vperm.xlu0 %3609, %v3608
  %v3611 = vpop.permute.xlu0 %3610
  %vm3612 = vcmp.eq.s32.totalorder %v3611, 1
  %v3613 = vsel %vm3612, %v3606, %v3507
  %v3614 = vsel %vm3612, %v3600, %v3508
  %v3615 = vsel %vm3612, %v3606, 0.0
  %3617 = vrot.lane.b32.xlu0 %v3613, 32
  %v3618 = vpop.permute.xlu0 %3617
  %v3619 = vsel %vm359, %v3618, 0
  %3621 = vmatprep.subr.mxu0 0.0
  %3622 = vmatpush1.msra.mxu0 0.0
  %3623 = vmatprep.subr.mxu0 0.0
  %3624 = vmatpush1.msra.mxu0 0.0
  %3625 = vmatprep.subr.mxu0 0.0
  %3626 = vmatpush1.msra.mxu0 0.0
  %3627 = vmatprep.subr.mxu0 0.0
  %3628 = vmatpush1.msra.mxu0 0.0
  %3629 = vmatprep.subr.mxu0 0.0
  %3630 = vmatpush1.msra.mxu0 0.0
  %3631 = vmatprep.subr.mxu0 0.0
  %3632 = vmatpush1.msra.mxu0 0.0
  %3633 = vmatprep.subr.mxu0 0.0
  %3634 = vmatpush1.msra.mxu0 0.0
  %3635 = vmatprep.subr.mxu0 0.0
  %3636 = vmatpush1.msra.mxu0 0.0
  %3637 = vmatprep.subr.mxu0 0.0
  %3638 = vmatpush1.msra.mxu0 0.0
  %3639 = vmatprep.subr.mxu0 0.0
  %3640 = vmatpush1.msra.mxu0 0.0
  %3641 = vmatprep.subr.mxu0 0.0
  %3642 = vmatpush1.msra.mxu0 0.0
  %3643 = vmatprep.subr.mxu0 0.0
  %3644 = vmatpush1.msra.mxu0 0.0
  %3645 = vmatprep.subr.mxu0 0.0
  %3646 = vmatpush1.msra.mxu0 %v2236
  %3647 = vmatprep.subr.mxu0 0.0
  %3648 = vmatpush1.msra.mxu0 %v2235
  %3649 = vmatprep.subr.mxu0 0.0
  %3650 = vmatpush1.msra.mxu0 %v2234
  %3651 = vmatprep.subr.mxu0 0.0
  %3652 = vmatpush1.msra.mxu0 %v2233
  %3653 = vmatprep.subr.mxu0 0.0
  %3654 = vmatpush2.msra.mxu0 0.0
  %3655 = vmatprep.subr.mxu0 0.0
  %3656 = vmatpush2.msra.mxu0 0.0
  %3657 = vmatprep.subr.mxu0 0.0
  %3658 = vmatpush2.msra.mxu0 0.0
  %3659 = vmatprep.subr.mxu0 0.0
  %3660 = vmatpush2.msra.mxu0 0.0
  %3661 = vmatprep.subr.mxu0 0.0
  %3662 = vmatpush2.msra.mxu0 0.0
  %3663 = vmatprep.subr.mxu0 0.0
  %3664 = vmatpush2.msra.mxu0 0.0
  %3665 = vmatprep.subr.mxu0 0.0
  %3666 = vmatpush2.msra.mxu0 0.0
  %3667 = vmatprep.subr.mxu0 0.0
  %3668 = vmatpush2.msra.mxu0 0.0
  %3669 = vmatprep.subr.mxu0 0.0
  %3670 = vmatpush2.msra.mxu0 0.0
  %3671 = vmatprep.subr.mxu0 0.0
  %3672 = vmatpush2.msra.mxu0 0.0
  %3673 = vmatprep.subr.mxu0 0.0
  %3674 = vmatpush2.msra.mxu0 0.0
  %3675 = vmatprep.subr.mxu0 0.0
  %3676 = vmatpush2.msra.mxu0 0.0
  %3677 = vmatprep.subr.mxu0 0.0
  %3678 = vmatpush2.msra.mxu0 0.0
  %3679 = vmatprep.subr.mxu0 0.0
  %3680 = vmatpush2.msra.mxu0 0.0
  %3681 = vmatprep.subr.mxu0 0.0
  %3682 = vmatpush2.msra.mxu0 0.0
  %3683 = vmatprep.subr.mxu0 0.0
  %3684 = vmatpush2.msra.mxu0 0.0
  %3685 = vmatprep.mubr.f32.mxu0 0.0
  %3686 = vmatmul.mubr.f32.gmra.mxu0 %v3619
  %v3687 = vpop.f32.mrf.mxu0
  %v3688 = vadd.f32 0.0, %v3687
  %v3689 = vpop.f32.mrf.mxu0
  %3690 = vdwg.mxu0
  %v3691 = vadd.f32 %v2222, %v3688
  %v3692 = vtanh.pop %v3691
  %v3693 = vmul.f32 %v3692, 0.5
  %v3694 = vadd.f32 %v3693, 0.5
  %v3695 = vsel %vm2240, %v3692, %v3694
  %v3696 = vmul.f32 %v3695, %v3614
  %3698 = vrot.lane.b32.xlu0 %v3695, 64
  %v3699 = vpop.permute.xlu0 %3698
  %v3701 = vmul.f32 %v3695, %v3699
  %3703 = vrot.lane.b32.xlu0 %v3701, 32
  %v3704 = vpop.permute.xlu0 %3703
  %v3706 = vadd.f32 %v3696, %v3704
  %v3707 = vtanh.pop %v3706
  %3709 = vrot.lane.b32.xlu0 %v3707, 64
  %v3710 = vpop.permute.xlu0 %3709
  %v3712 = vmul.f32 %v3695, %v3710
  %vm3713 = vcmp.gt.s32.totalorder %v2237, 13
  %v3714 = vsel %vm3713, 1, 0
  %3715 = vset.pattern.permute.xlu0 0
  %3716 = vperm.xlu0 %3715, %v3714
  %v3717 = vpop.permute.xlu0 %3716
  %vm3718 = vcmp.eq.s32.totalorder %v3717, 1
  %v3719 = vsel %vm3718, %v3712, %v3613
  %v3720 = vsel %vm3718, %v3706, %v3614
  %v3721 = vsel %vm3718, %v3712, 0.0
  %3723 = vrot.lane.b32.xlu0 %v3719, 32
  %v3724 = vpop.permute.xlu0 %3723
  %v3725 = vsel %vm359, %v3724, 0
  %3727 = vmatprep.subr.mxu0 0.0
  %3728 = vmatpush1.msra.mxu0 0.0
  %3729 = vmatprep.subr.mxu0 0.0
  %3730 = vmatpush1.msra.mxu0 0.0
  %3731 = vmatprep.subr.mxu0 0.0
  %3732 = vmatpush1.msra.mxu0 0.0
  %3733 = vmatprep.subr.mxu0 0.0
  %3734 = vmatpush1.msra.mxu0 0.0
  %3735 = vmatprep.subr.mxu0 0.0
  %3736 = vmatpush1.msra.mxu0 0.0
  %3737 = vmatprep.subr.mxu0 0.0
  %3738 = vmatpush1.msra.mxu0 0.0
  %3739 = vmatprep.subr.mxu0 0.0
  %3740 = vmatpush1.msra.mxu0 0.0
  %3741 = vmatprep.subr.mxu0 0.0
  %3742 = vmatpush1.msra.mxu0 0.0
  %3743 = vmatprep.subr.mxu0 0.0
  %3744 = vmatpush1.msra.mxu0 0.0
  %3745 = vmatprep.subr.mxu0 0.0
  %3746 = vmatpush1.msra.mxu0 0.0
  %3747 = vmatprep.subr.mxu0 0.0
  %3748 = vmatpush1.msra.mxu0 0.0
  %3749 = vmatprep.subr.mxu0 0.0
  %3750 = vmatpush1.msra.mxu0 0.0
  %3751 = vmatprep.subr.mxu0 0.0
  %3752 = vmatpush1.msra.mxu0 %v2236
  %3753 = vmatprep.subr.mxu0 0.0
  %3754 = vmatpush1.msra.mxu0 %v2235
  %3755 = vmatprep.subr.mxu0 0.0
  %3756 = vmatpush1.msra.mxu0 %v2234
  %3757 = vmatprep.subr.mxu0 0.0
  %3758 = vmatpush1.msra.mxu0 %v2233
  %3759 = vmatprep.subr.mxu0 0.0
  %3760 = vmatpush2.msra.mxu0 0.0
  %3761 = vmatprep.subr.mxu0 0.0
  %3762 = vmatpush2.msra.mxu0 0.0
  %3763 = vmatprep.subr.mxu0 0.0
  %3764 = vmatpush2.msra.mxu0 0.0
  %3765 = vmatprep.subr.mxu0 0.0
  %3766 = vmatpush2.msra.mxu0 0.0
  %3767 = vmatprep.subr.mxu0 0.0
  %3768 = vmatpush2.msra.mxu0 0.0
  %3769 = vmatprep.subr.mxu0 0.0
  %3770 = vmatpush2.msra.mxu0 0.0
  %3771 = vmatprep.subr.mxu0 0.0
  %3772 = vmatpush2.msra.mxu0 0.0
  %3773 = vmatprep.subr.mxu0 0.0
  %3774 = vmatpush2.msra.mxu0 0.0
  %3775 = vmatprep.subr.mxu0 0.0
  %3776 = vmatpush2.msra.mxu0 0.0
  %3777 = vmatprep.subr.mxu0 0.0
  %3778 = vmatpush2.msra.mxu0 0.0
  %3779 = vmatprep.subr.mxu0 0.0
  %3780 = vmatpush2.msra.mxu0 0.0
  %3781 = vmatprep.subr.mxu0 0.0
  %3782 = vmatpush2.msra.mxu0 0.0
  %3783 = vmatprep.subr.mxu0 0.0
  %3784 = vmatpush2.msra.mxu0 0.0
  %3785 = vmatprep.subr.mxu0 0.0
  %3786 = vmatpush2.msra.mxu0 0.0
  %3787 = vmatprep.subr.mxu0 0.0
  %3788 = vmatpush2.msra.mxu0 0.0
  %3789 = vmatprep.subr.mxu0 0.0
  %3790 = vmatpush2.msra.mxu0 0.0
  %3791 = vmatprep.mubr.f32.mxu0 0.0
  %3792 = vmatmul.mubr.f32.gmra.mxu0 %v3725
  %v3793 = vpop.f32.mrf.mxu0
  %v3794 = vadd.f32 0.0, %v3793
  %v3795 = vpop.f32.mrf.mxu0
  %3796 = vdwg.mxu0
  %v3797 = vadd.f32 %v2227, %v3794
  %v3798 = vtanh.pop %v3797
  %v3799 = vmul.f32 %v3798, 0.5
  %v3800 = vadd.f32 %v3799, 0.5
  %v3801 = vsel %vm2240, %v3798, %v3800
  %v3802 = vmul.f32 %v3801, %v3720
  %3804 = vrot.lane.b32.xlu0 %v3801, 64
  %v3805 = vpop.permute.xlu0 %3804
  %v3807 = vmul.f32 %v3801, %v3805
  %3809 = vrot.lane.b32.xlu0 %v3807, 32
  %v3810 = vpop.permute.xlu0 %3809
  %v3812 = vadd.f32 %v3802, %v3810
  %v3813 = vtanh.pop %v3812
  %3815 = vrot.lane.b32.xlu0 %v3813, 64
  %v3816 = vpop.permute.xlu0 %3815
  %v3818 = vmul.f32 %v3801, %v3816
  %vm3819 = vcmp.gt.s32.totalorder %v2237, 14
  %v3820 = vsel %vm3819, 1, 0
  %3821 = vset.pattern.permute.xlu0 0
  %3822 = vperm.xlu0 %3821, %v3820
  %v3823 = vpop.permute.xlu0 %3822
  %vm3824 = vcmp.eq.s32.totalorder %v3823, 1
  %v3825 = vsel %vm3824, %v3818, %v3719
  %v3826 = vsel %vm3824, %v3812, %v3720
  %v3827 = vsel %vm3824, %v3818, 0.0
  %3829 = vrot.lane.b32.xlu0 %v3825, 32
  %v3830 = vpop.permute.xlu0 %3829
  %v3831 = vsel %vm359, %v3830, 0
  %3833 = vmatprep.subr.mxu0 0.0
  %3834 = vmatpush1.msra.mxu0 0.0
  %3835 = vmatprep.subr.mxu0 0.0
  %3836 = vmatpush1.msra.mxu0 0.0
  %3837 = vmatprep.subr.mxu0 0.0
  %3838 = vmatpush1.msra.mxu0 0.0
  %3839 = vmatprep.subr.mxu0 0.0
  %3840 = vmatpush1.msra.mxu0 0.0
  %3841 = vmatprep.subr.mxu0 0.0
  %3842 = vmatpush1.msra.mxu0 0.0
  %3843 = vmatprep.subr.mxu0 0.0
  %3844 = vmatpush1.msra.mxu0 0.0
  %3845 = vmatprep.subr.mxu0 0.0
  %3846 = vmatpush1.msra.mxu0 0.0
  %3847 = vmatprep.subr.mxu0 0.0
  %3848 = vmatpush1.msra.mxu0 0.0
  %3849 = vmatprep.subr.mxu0 0.0
  %3850 = vmatpush1.msra.mxu0 0.0
  %3851 = vmatprep.subr.mxu0 0.0
  %3852 = vmatpush1.msra.mxu0 0.0
  %3853 = vmatprep.subr.mxu0 0.0
  %3854 = vmatpush1.msra.mxu0 0.0
  %3855 = vmatprep.subr.mxu0 0.0
  %3856 = vmatpush1.msra.mxu0 0.0
  %3857 = vmatprep.subr.mxu0 0.0
  %3858 = vmatpush1.msra.mxu0 %v2236
  %3859 = vmatprep.subr.mxu0 0.0
  %3860 = vmatpush1.msra.mxu0 %v2235
  %3861 = vmatprep.subr.mxu0 0.0
  %3862 = vmatpush1.msra.mxu0 %v2234
  %3863 = vmatprep.subr.mxu0 0.0
  %3864 = vmatpush1.msra.mxu0 %v2233
  %3865 = vmatprep.subr.mxu0 0.0
  %3866 = vmatpush2.msra.mxu0 0.0
  %3867 = vmatprep.subr.mxu0 0.0
  %3868 = vmatpush2.msra.mxu0 0.0
  %3869 = vmatprep.subr.mxu0 0.0
  %3870 = vmatpush2.msra.mxu0 0.0
  %3871 = vmatprep.subr.mxu0 0.0
  %3872 = vmatpush2.msra.mxu0 0.0
  %3873 = vmatprep.subr.mxu0 0.0
  %3874 = vmatpush2.msra.mxu0 0.0
  %3875 = vmatprep.subr.mxu0 0.0
  %3876 = vmatpush2.msra.mxu0 0.0
  %3877 = vmatprep.subr.mxu0 0.0
  %3878 = vmatpush2.msra.mxu0 0.0
  %3879 = vmatprep.subr.mxu0 0.0
  %3880 = vmatpush2.msra.mxu0 0.0
  %3881 = vmatprep.subr.mxu0 0.0
  %3882 = vmatpush2.msra.mxu0 0.0
  %3883 = vmatprep.subr.mxu0 0.0
  %3884 = vmatpush2.msra.mxu0 0.0
  %3885 = vmatprep.subr.mxu0 0.0
  %3886 = vmatpush2.msra.mxu0 0.0
  %3887 = vmatprep.subr.mxu0 0.0
  %3888 = vmatpush2.msra.mxu0 0.0
  %3889 = vmatprep.subr.mxu0 0.0
  %3890 = vmatpush2.msra.mxu0 0.0
  %3891 = vmatprep.subr.mxu0 0.0
  %3892 = vmatpush2.msra.mxu0 0.0
  %3893 = vmatprep.subr.mxu0 0.0
  %3894 = vmatpush2.msra.mxu0 0.0
  %3895 = vmatprep.subr.mxu0 0.0
  %3896 = vmatpush2.msra.mxu0 0.0
  %3897 = vmatprep.mubr.f32.mxu0 0.0
  %3898 = vmatmul.mubr.f32.gmra.mxu0 %v3831
  %v3899 = vpop.f32.mrf.mxu0
  %v3900 = vadd.f32 0.0, %v3899
  %v3901 = vpop.f32.mrf.mxu0
  %3902 = vdwg.mxu0
  %v3903 = vadd.f32 %v2230, %v3900
  %v3904 = vtanh.pop %v3903
  %v3905 = vmul.f32 %v3904, 0.5
  %v3906 = vadd.f32 %v3905, 0.5
  %v3907 = vsel %vm2240, %v3904, %v3906
  %v3908 = vmul.f32 %v3907, %v3826
  %3910 = vrot.lane.b32.xlu0 %v3907, 64
  %v3911 = vpop.permute.xlu0 %3910
  %v3913 = vmul.f32 %v3907, %v3911
  %3915 = vrot.lane.b32.xlu0 %v3913, 32
  %v3916 = vpop.permute.xlu0 %3915
  %v3918 = vadd.f32 %v3908, %v3916
  %v3919 = vtanh.pop %v3918
  %3921 = vrot.lane.b32.xlu0 %v3919, 64
  %v3922 = vpop.permute.xlu0 %3921
  %v3924 = vmul.f32 %v3907, %v3922
  %vm3925 = vcmp.gt.s32.totalorder %v2237, 15
  %v3926 = vsel %vm3925, 1, 0
  %3927 = vset.pattern.permute.xlu0 0
  %3928 = vperm.xlu0 %3927, %v3926
  %v3929 = vpop.permute.xlu0 %3928
  %vm3930 = vcmp.eq.s32.totalorder %v3929, 1
  %v3931 = vsel %vm3930, %v3924, 0.0
  %v3932 = vpack.c.bf16 %v2449, %v2342
  %v3933 = vpack.c.bf16 %v2661, %v2555
  %v3934 = vpack.c.bf16 %v2873, %v2767
  %v3935 = vpack.c.bf16 %v3085, %v2979
  %v3936 = vpack.c.bf16 %v3297, %v3191
  %v3937 = vpack.c.bf16 %v3509, %v3403
  %v3938 = vpack.c.bf16 %v3721, %v3615
  %v3939 = vpack.c.bf16 %v3931, %v3827
  %v3940 = vld [vmem:[%s13] sm:$0xf]
  %v3941 = vld [vmem:[%s13 + $0x4] sm:$0xf]
  %v3942 = vld [vmem:[%s13 + $0x8] sm:$0xf]
  %v3943 = vld [vmem:[%s13 + $0xc] sm:$0xf]
  %v3944 = vld [vmem:[%s14] sm:$0x1]
  %v3946 = vlaneseq
  %v3947 = vshrl.u32 %v3946, 7
  %v3948 = vsub.s32 0, %v3947
  %v3949 = vrot.slane %v3944, %v3948
  %3959 = vrot.lane.b32.xlu0 %v3932, 32
  %v3960 = vpop.permute.xlu0 %3959
  %3961 = vrot.lane.b32.xlu0 %v3933, 32
  %v3962 = vpop.permute.xlu0 %3961
  %3963 = vrot.lane.b32.xlu0 %v3934, 32
  %v3964 = vpop.permute.xlu0 %3963
  %3965 = vrot.lane.b32.xlu0 %v3935, 32
  %v3966 = vpop.permute.xlu0 %3965
  %3967 = vrot.lane.b32.xlu0 %v3936, 32
  %v3968 = vpop.permute.xlu0 %3967
  %3969 = vrot.lane.b32.xlu0 %v3937, 32
  %v3970 = vpop.permute.xlu0 %3969
  %3971 = vrot.lane.b32.xlu0 %v3938, 32
  %v3972 = vpop.permute.xlu0 %3971
  %3973 = vrot.lane.b32.xlu0 %v3939, 32
  %v3974 = vpop.permute.xlu0 %3973
  %v3979 = vunpack.c.l.b16 %v3940
  %v3980 = vunpack.c.l.b16 %v3941
  %v3981 = vunpack.c.l.b16 %v3942
  %v3982 = vunpack.c.l.b16 %v3943
  %v3983 = vpack.c.b16 %v3980, %v3979
  %v3984 = vpack.c.b16 %v3982, %v3981
  %v3988 = vsel %vm359, %v3960, 0
  %v3991 = vsel %vm359, %v3962, 0
  %v3994 = vsel %vm359, %v3964, 0
  %v3997 = vsel %vm359, %v3966, 0
  %v4000 = vsel %vm359, %v3968, 0
  %v4003 = vsel %vm359, %v3970, 0
  %v4006 = vsel %vm359, %v3972, 0
  %v4009 = vsel %vm359, %v3974, 0
  %4011 = vmatprep.subr.bf16.mxu0 0
  %4012 = vmatpush1.bf16.msra.mxu0 0
  %4013 = vmatprep.subr.bf16.mxu0 0
  %4014 = vmatpush1.bf16.msra.mxu0 0
  %4015 = vmatprep.subr.bf16.mxu0 0
  %4016 = vmatpush1.bf16.msra.mxu0 0
  %4017 = vmatprep.subr.bf16.mxu0 0
  %4018 = vmatpush1.bf16.msra.mxu0 0
  %4019 = vmatprep.subr.bf16.mxu0 0
  %4020 = vmatpush1.bf16.msra.mxu0 0
  %4021 = vmatprep.subr.bf16.mxu0 0
  %4022 = vmatpush1.bf16.msra.mxu0 0
  %4023 = vmatprep.subr.bf16.mxu0 0
  %4024 = vmatpush1.bf16.msra.mxu0 %v3984
  %4025 = vmatprep.subr.bf16.mxu0 0
  %4026 = vmatpush1.bf16.msra.mxu0 %v3983
  %4027 = vmatprep.subr.bf16.mxu0 0
  %4028 = vmatpush2.bf16.msra.mxu0 0
  %4029 = vmatprep.subr.bf16.mxu0 0
  %4030 = vmatpush2.bf16.msra.mxu0 0
  %4031 = vmatprep.subr.bf16.mxu0 0
  %4032 = vmatpush2.bf16.msra.mxu0 0
  %4033 = vmatprep.subr.bf16.mxu0 0
  %4034 = vmatpush2.bf16.msra.mxu0 0
  %4035 = vmatprep.subr.bf16.mxu0 0
  %4036 = vmatpush2.bf16.msra.mxu0 0
  %4037 = vmatprep.subr.bf16.mxu0 0
  %4038 = vmatpush2.bf16.msra.mxu0 0
  %4039 = vmatprep.subr.bf16.mxu0 0
  %4040 = vmatpush2.bf16.msra.mxu0 0
  %4041 = vmatprep.subr.bf16.mxu0 0
  %4042 = vmatpush2.bf16.msra.mxu0 0
  %4043 = vmatprep.mubr.bf16.mxu0 0
  %4044 = vmatmul.mubr.bf16.gmra.mxu0 %v3988
  %v4045 = vpop.f32.mrf.mxu0
  %v4046 = vadd.f32 %v3949, %v4045
  %v4047 = vpop.f32.mrf.mxu0
  %v4048 = vpop.f32.mrf.mxu0
  %v4049 = vadd.f32 %v3949, %v4048
  %v4050 = vpop.f32.mrf.mxu0
  %4051 = vmatprep.mubr.bf16.mxu0 0
  %4052 = vmatmul.mubr.bf16.gmra.mxu0 %v3991
  %v4053 = vpop.f32.mrf.mxu0
  %v4054 = vadd.f32 %v3949, %v4053
  %v4055 = vpop.f32.mrf.mxu0
  %v4056 = vpop.f32.mrf.mxu0
  %v4057 = vadd.f32 %v3949, %v4056
  %v4058 = vpop.f32.mrf.mxu0
  %4059 = vmatprep.mubr.bf16.mxu0 0
  %4060 = vmatmul.mubr.bf16.gmra.mxu0 %v3994
  %v4061 = vpop.f32.mrf.mxu0
  %v4062 = vadd.f32 %v3949, %v4061
  %v4063 = vpop.f32.mrf.mxu0
  %v4064 = vpop.f32.mrf.mxu0
  %v4065 = vadd.f32 %v3949, %v4064
  %v4066 = vpop.f32.mrf.mxu0
  %4067 = vmatprep.mubr.bf16.mxu0 0
  %4068 = vmatmul.mubr.bf16.gmra.mxu0 %v3997
  %v4069 = vpop.f32.mrf.mxu0
  %v4070 = vadd.f32 %v3949, %v4069
  %v4071 = vpop.f32.mrf.mxu0
  %v4072 = vpop.f32.mrf.mxu0
  %v4073 = vadd.f32 %v3949, %v4072
  %v4074 = vpop.f32.mrf.mxu0
  %4075 = vmatprep.mubr.bf16.mxu0 0
  %4076 = vmatmul.mubr.bf16.gmra.mxu0 %v4000
  %v4077 = vpop.f32.mrf.mxu0
  %v4078 = vadd.f32 %v3949, %v4077
  %v4079 = vpop.f32.mrf.mxu0
  %v4080 = vpop.f32.mrf.mxu0
  %v4081 = vadd.f32 %v3949, %v4080
  %v4082 = vpop.f32.mrf.mxu0
  %4083 = vmatprep.mubr.bf16.mxu0 0
  %4084 = vmatmul.mubr.bf16.gmra.mxu0 %v4003
  %v4085 = vpop.f32.mrf.mxu0
  %v4086 = vadd.f32 %v3949, %v4085
  %v4087 = vpop.f32.mrf.mxu0
  %v4088 = vpop.f32.mrf.mxu0
  %v4089 = vadd.f32 %v3949, %v4088
  %v4090 = vpop.f32.mrf.mxu0
  %4091 = vmatprep.mubr.bf16.mxu0 0
  %4092 = vmatmul.mubr.bf16.gmra.mxu0 %v4006
  %v4093 = vpop.f32.mrf.mxu0
  %v4094 = vadd.f32 %v3949, %v4093
  %v4095 = vpop.f32.mrf.mxu0
  %v4096 = vpop.f32.mrf.mxu0
  %v4097 = vadd.f32 %v3949, %v4096
  %v4098 = vpop.f32.mrf.mxu0
  %4099 = vmatprep.mubr.bf16.mxu0 0
  %4100 = vmatmul.mubr.bf16.gmra.mxu0 %v4009
  %v4101 = vpop.f32.mrf.mxu0
  %v4102 = vadd.f32 %v3949, %v4101
  %v4103 = vpop.f32.mrf.mxu0
  %v4104 = vpop.f32.mrf.mxu0
  %v4105 = vadd.f32 %v3949, %v4104
  %v4106 = vpop.f32.mrf.mxu0
  %4107 = vdwg.mxu0
  %4108 = vst [vmem:[%s15] sm:$0xff] %v4046
  %4109 = vst [vmem:[%s15 + $0x8] sm:$0xff] %v4049
  %4110 = vst [vmem:[%s15 + $0x10] sm:$0xff] %v4054
  %4111 = vst [vmem:[%s15 + $0x18] sm:$0xff] %v4057
  %4112 = vst [vmem:[%s15 + $0x20] sm:$0xff] %v4062
  %4113 = vst [vmem:[%s15 + $0x28] sm:$0xff] %v4065
  %4114 = vst [vmem:[%s15 + $0x30] sm:$0xff] %v4070
  %4115 = vst [vmem:[%s15 + $0x38] sm:$0xff] %v4073
  %4116 = vst [vmem:[%s15 + $0x40] sm:$0xff] %v4078
  %4117 = vst [vmem:[%s15 + $0x48] sm:$0xff] %v4081
  %4118 = vst [vmem:[%s15 + $0x50] sm:$0xff] %v4086
  %4119 = vst [vmem:[%s15 + $0x58] sm:$0xff] %v4089
  %4120 = vst [vmem:[%s15 + $0x60] sm:$0xff] %v4094
  %4121 = vst [vmem:[%s15 + $0x68] sm:$0xff] %v4097
  %4122 = vst [vmem:[%s15 + $0x70] sm:$0xff] %v4102
  %4123 = vst [vmem:[%s15 + $0x78] sm:$0xff] %v4105
  // Predicated region
  $region62: #{word_sequence_forward.1} parent=0 // pred_check
    _
  $region63: #{word_sequence_forward.1} parent=0 // pred_check_branch
    %4125 = sbr.rel (0) target = $region65
  $region64: #{word_sequence_forward.1} parent=0 // pred_region
    _
  $region65: #{word_sequence_forward.1} parent=0 // pred_fallthru
    _
  // Predicated region
  $region66: #{word_sequence_forward.1} parent=0 // pred_check
    _
  $region67: #{word_sequence_forward.1} parent=0 // pred_check_branch
    %4127 = sbr.rel (0) target = $region69
  $region68: #{word_sequence_forward.1} parent=0 // pred_region
    _
  $region69: #{word_sequence_forward.1} parent=0 // pred_fallthru
    _
  // Predicated region
  $region70: #{word_sequence_forward.1} parent=0 // pred_check
    _
  $region71: #{word_sequence_forward.1} parent=0 // pred_check_branch
    %4129 = sbr.rel (0) target = $region73
  $region72: #{word_sequence_forward.1} parent=0 // pred_region
    _
  $region73: #{word_sequence_forward.1} parent=0 // pred_fallthru
    _
  // Predicated region
  $region74: #{word_sequence_forward.1} parent=0 // pred_check
    _
  $region75: #{word_sequence_forward.1} parent=0 // pred_check_branch
    %4131 = sbr.rel (0) target = $region77
  $region76: #{word_sequence_forward.1} parent=0 // pred_region
    _
  $region77: #{word_sequence_forward.1} parent=0 // pred_fallthru
    _

</llo_original>
